<compile_context>
chip_gen: v6e
topology: v6e:2x2x1
jax: 0.10.0
libtpu: 0.0.40
codegen_flags: <defaults>
</compile_context>

<pallas_src>
import jax
import jax.numpy as jnp
from jax import lax
from jax.experimental import pallas as pl
from jax.experimental.pallas import tpu as pltpu

VMEM_LIMIT = 32 * 1024 * 1024


# ---------------------------------------------------------------------------
# fusion_prep: initial = x + y, channel mean/max maps (for SpatialAttention)
# and the global-avg-pool channel sums (for ChannelAttention), all in one pass.
# Inputs/outputs are lane-dense (B, C, H*W) / (B, 2, H*W).
# ---------------------------------------------------------------------------
def fusion_prep(xd, yd):
    B, C, HW = xd.shape
    inv_c = 1.0 / float(C)
    inv_hw = 1.0 / float(HW)

    def kernel(x_ref, y_ref, init_ref, stats_ref, pool_ref):
        xi = x_ref[0] + y_ref[0]                                    # (C, HW)
        init_ref[0] = xi
        xf = xi.astype(jnp.float32)
        stats_ref[0, 0:1, :] = (jnp.sum(xf, axis=0, keepdims=True) * inv_c).astype(stats_ref.dtype)
        stats_ref[0, 1:2, :] = jnp.max(xf, axis=0, keepdims=True).astype(stats_ref.dtype)
        pool_ref[0] = jnp.sum(xf, axis=1, keepdims=True) * inv_hw   # (C, 1) f32

    # TODO(synk): for production H*W, tile the HW axis (grid=(B, HW//t_hw)) and carry the
    # pooled sum in a VMEM scratch accumulator; at these test sizes each per-batch block is
    # ~32 KB, far below even v7x's 32 MiB scoped VMEM, so a single block per batch is best.
    initial, stats, pooled = pl.pallas_call(
        kernel,
        out_shape=(
            jax.ShapeDtypeStruct((B, C, HW), xd.dtype),
            jax.ShapeDtypeStruct((B, 2, HW), xd.dtype),
            jax.ShapeDtypeStruct((B, C, 1), jnp.float32),
        ),
        grid=(B,),
        in_specs=[
            pl.BlockSpec((1, C, HW), lambda b: (b, 0, 0)),
            pl.BlockSpec((1, C, HW), lambda b: (b, 0, 0)),
        ],
        out_specs=(
            pl.BlockSpec((1, C, HW), lambda b: (b, 0, 0)),
            pl.BlockSpec((1, 2, HW), lambda b: (b, 0, 0)),
            pl.BlockSpec((1, C, 1), lambda b: (b, 0, 0)),
        ),
        compiler_params=pltpu.CompilerParams(
            dimension_semantics=("parallel",), vmem_limit_bytes=VMEM_LIMIT),
    )(xd, yd)
    return initial, stats, pooled


# ---------------------------------------------------------------------------
# ChannelAttention MLP on the (already pooled) channel means, folded together
# with the pixel-attention constant:  caconst = pa_b + cattn * sum_k(wp[:, k]).
# Tiny (B, C) problem -> one grid step.
# ---------------------------------------------------------------------------
def channel_attention_const(pooled, ca_w1, ca_b1, ca_w2, ca_b2, wp_sum, pa_bias):
    B, C = pooled.shape
    Cr = ca_w1.shape[0]
    w1t = jnp.asarray(ca_w1, jnp.float32).T                          # (C, Cr)
    w2t = jnp.asarray(ca_w2, jnp.float32).T                          # (Cr, C)
    b1r = jnp.asarray(ca_b1, jnp.float32).reshape(1, Cr)
    b2r = jnp.asarray(ca_b2, jnp.float32).reshape(1, C)

    def kernel(pool_ref, w1t_ref, b1_ref, w2t_ref, b2_ref, wps_ref, pb_ref, o_ref):
        pv = pool_ref[...].astype(jnp.float32)                       # (B, C)
        h = jnp.dot(pv, w1t_ref[...], preferred_element_type=jnp.float32) + b1_ref[...]
        h = jnp.maximum(h, 0.0)
        cat = jnp.dot(h, w2t_ref[...], preferred_element_type=jnp.float32) + b2_ref[...]
        o_ref[...] = (pb_ref[...] + cat * wps_ref[...]).astype(o_ref.dtype)

    return pl.pallas_call(
        kernel,
        out_shape=jax.ShapeDtypeStruct((B, C), jnp.float32),
        grid=(1,),
        in_specs=[
            pl.BlockSpec((B, C), lambda i: (0, 0)),
            pl.BlockSpec((C, Cr), lambda i: (0, 0)),
            pl.BlockSpec((1, Cr), lambda i: (0, 0)),
            pl.BlockSpec((Cr, C), lambda i: (0, 0)),
            pl.BlockSpec((1, C), lambda i: (0, 0)),
            pl.BlockSpec((1, C), lambda i: (0, 0)),
            pl.BlockSpec((1, C), lambda i: (0, 0)),
        ],
        out_specs=pl.BlockSpec((B, C), lambda i: (0, 0)),
        compiler_params=pltpu.CompilerParams(
            dimension_semantics=("arbitrary",), vmem_limit_bytes=VMEM_LIMIT),
    )(pooled, w1t, b1r, w2t, b2r, wp_sum, pa_bias)


# ---------------------------------------------------------------------------
# SpatialAttention: 7x7 reflect conv over [channel-mean, channel-max].
# The padded input is flattened to (2, Lp) so each tap is one constant-offset
# lane slice; valid columns are compacted into a lane-dense (B, 1, H*W) output.
# ---------------------------------------------------------------------------
def spatial_attention(stats_flat, sa_w, sa_b, H, W, Wp):
    B = stats_flat.shape[0]
    Lp = stats_flat.shape[2]
    HW = H * W
    HWo = H * Wp
    w_flat = jnp.asarray(sa_w, jnp.float32).reshape(-1)              # (2*7*7,)
    b_flat = jnp.asarray(sa_b, jnp.float32).reshape(-1)              # (1,)

    def kernel(w_ref, b_ref, s_ref, o_ref):
        acc = jnp.full((1, HWo), b_ref[0], jnp.float32)
        for t in range(2):
            for dy in range(7):
                for dx in range(7):
                    k = t * 49 + dy * 7 + dx
                    off = dy * Wp + dx
                    acc = acc + w_ref[k] * s_ref[0, t:t + 1, off:off + HWo].astype(jnp.float32)
        # compact the width-padded columns away; HBM store stays lane-dense.
        for h in range(H):
            o_ref[0, :, h * W:(h + 1) * W] = acc[:, h * Wp:h * Wp + W].astype(o_ref.dtype)

    return pl.pallas_call(
        kernel,
        out_shape=jax.ShapeDtypeStruct((B, 1, HW), stats_flat.dtype),
        grid=(B,),
        in_specs=[
            pl.BlockSpec(memory_space=pltpu.MemorySpace.SMEM),
            pl.BlockSpec(memory_space=pltpu.MemorySpace.SMEM),
            pl.BlockSpec((1, 2, Lp), lambda b: (b, 0, 0)),
        ],
        out_specs=pl.BlockSpec((1, 1, HW), lambda b: (b, 0, 0)),
        compiler_params=pltpu.CompilerParams(
            dimension_semantics=("parallel",), vmem_limit_bytes=VMEM_LIMIT),
    )(w_flat, b_flat, stats_flat)


# ---------------------------------------------------------------------------
# Fused PixelAttention (grouped 7x7 reflect conv, double sigmoid) + combine
# (initial + p2*x + (1-p2)*y) + final 1x1 conv as a (C,C)@(C,HW) MXU matmul.
# pattn1 = sattn + cattn is folded analytically: conv(pattn1) = conv(sattn)
# + cattn*sum(wp)  (exact: cattn is spatially constant, reflect pad preserves it).
# pattn2 never touches HBM; initial = x + y is recomputed in-kernel for the combine.
# ---------------------------------------------------------------------------
def pa_combine_conv(caconst3, wx, wpp, wc, bc, init_pad_flat, sat_pad_flat, xd, yd, H, W, Wp):
    B, C, HW = xd.shape
    Lp = init_pad_flat.shape[2]
    HWo = H * Wp

    def kernel(cc_ref, wx_ref, wp_ref, wc_ref, bc_ref, ipf_ref, satf_ref,
               x_ref, y_ref, o_ref, pa_scr):
        # 7x7 conv, channel-vectorized.  Each tap is one constant-offset lane slice of the
        # width-padded flattened inputs; the shifted sattn slice is shared across channels.
        acc = jnp.zeros((C, HWo), jnp.float32)
        for dy in range(7):
            for dx in range(7):
                k = dy * 7 + dx
                off = dy * Wp + dx
                acc = (acc
                       + wx_ref[:, k:k + 1] * ipf_ref[0, :, off:off + HWo].astype(jnp.float32)
                       + wp_ref[:, k:k + 1] * satf_ref[0, :, off:off + HWo].astype(jnp.float32))

        # Compact the width-padded garbage columns away inside VMEM (small masked VMEM
        # stores); everything downstream, including the HBM store, is lane-dense (C, H*W).
        for h in range(H):
            pa_scr[:, h * W:(h + 1) * W] = acc[:, h * Wp:h * Wp + W]

        pa = pa_scr[...] + cc_ref[0]                                 # + pa_b + cattn*sum(wp)
        # Double sigmoid (PixelAttention's + Fusion's) via tanh -> EUP slot, not VALU divide.
        p2 = 0.5 * jnp.tanh(0.5 * pa) + 0.5
        p2 = 0.5 * jnp.tanh(0.5 * p2) + 0.5

        xv = x_ref[0].astype(jnp.float32)
        yv = y_ref[0].astype(jnp.float32)
        r = (xv + yv) + p2 * xv + (1.0 - p2) * yv                    # initial + p2*x + (1-p2)*y

        out = jnp.dot(wc_ref[...], r, preferred_element_type=jnp.float32) + bc_ref[...]
        o_ref[0] = out.astype(o_ref.dtype)

    # TODO(synk): for production H*W, tile the HW axis (with a 6-row halo on the padded
    # inputs) so the per-batch block stays within v7x's scoped VMEM; trivial at test size.
    return pl.pallas_call(
        kernel,
        out_shape=jax.ShapeDtypeStruct((B, C, HW), xd.dtype),
        grid=(B,),
        in_specs=[
            pl.BlockSpec((1, C, 1), lambda b: (b, 0, 0)),
            pl.BlockSpec((C, 49), lambda b: (0, 0)),
            pl.BlockSpec((C, 49), lambda b: (0, 0)),
            pl.BlockSpec((C, C), lambda b: (0, 0)),
            pl.BlockSpec((C, 1), lambda b: (0, 0)),
            pl.BlockSpec((1, C, Lp), lambda b: (b, 0, 0)),
            pl.BlockSpec((1, 1, Lp), lambda b: (b, 0, 0)),
            pl.BlockSpec((1, C, HW), lambda b: (b, 0, 0)),
            pl.BlockSpec((1, C, HW), lambda b: (b, 0, 0)),
        ],
        out_specs=pl.BlockSpec((1, C, HW), lambda b: (b, 0, 0)),
        scratch_shapes=[pltpu.VMEM((C, HW), jnp.float32)],
        compiler_params=pltpu.CompilerParams(
            dimension_semantics=("parallel",), vmem_limit_bytes=VMEM_LIMIT),
    )(caconst3, wx, wpp, wc, bc, init_pad_flat, sat_pad_flat, xd, yd)


# ---------------------------------------------------------------------------
# Full Fusion.forward
# ---------------------------------------------------------------------------
def fusion_forward(x, y, p):
    B, C, H, W = x.shape
    HW = H * W
    Wp = W + 6
    Hp = H + 7          # one extra reflected bottom row so flattened tap slices stay in bounds
    Lp = Hp * Wp

    xd = x.reshape(B, C, HW)
    yd = y.reshape(B, C, HW)

    # initial, channel mean/max maps and global-avg-pool sums in one HBM pass.
    initial_d, stats_d, pooled = fusion_prep(xd, yd)

    # Pixel-attention taps: group c sees [initial_c, pattn1_c].
    pa_w = jnp.asarray(p["pa_w"], jnp.float32)                        # (C, 2, 7, 7)
    wx = pa_w[:, 0].reshape(C, 49)                                    # taps on initial
    wpp = pa_w[:, 1].reshape(C, 49)                                   # taps on pattn1
    wp_sum = jnp.sum(wpp, axis=1)[None, :]                            # (1, C)
    pa_bias = jnp.asarray(p["pa_b"], jnp.float32)[None, :]            # (1, C)

    # cattn folded to its only use: caconst = pa_b + cattn * sum(wp).
    caconst = channel_attention_const(pooled.reshape(B, C),
                                      p["ca_w1"], p["ca_b1"], p["ca_w2"], p["ca_b2"],
                                      wp_sum, pa_bias)                # (B, C) f32

    # SpatialAttention on reflect-padded mean/max maps (pad+reshape are wrapper glue).
    stats_pad = jnp.pad(stats_d.reshape(B, 2, H, W),
                        ((0, 0), (0, 0), (3, 4), (3, 3)), mode="reflect")
    sattn_d = spatial_attention(stats_pad.reshape(B, 2, Lp),
                                p["sa_w"], p["sa_b"], H, W, Wp)       # (B, 1, HW)

    sat_pad = jnp.pad(sattn_d.reshape(B, H, W),
                      ((0, 0), (3, 4), (3, 3)), mode="reflect").reshape(B, 1, Lp)
    init_pad = jnp.pad(initial_d.reshape(B, C, H, W),
                       ((0, 0), (0, 0), (3, 4), (3, 3)), mode="reflect").reshape(B, C, Lp)

    wc = jnp.asarray(p["conv_w"], jnp.float32).reshape(C, C)
    bc = jnp.asarray(p["conv_b"], jnp.float32).reshape(C, 1)

    out_d = pa_combine_conv(caconst[:, :, None], wx, wpp, wc, bc,
                            init_pad, sat_pad, xd, yd, H, W, Wp)
    return out_d.reshape(B, C, H, W)


# ---------------------------------------------------------------------------
# Pure-JAX reference (mirrors the PyTorch Fusion module).
# ---------------------------------------------------------------------------
def fusion_reference(x, y, p):
    B, C, H, W = x.shape
    dn = ("NCHW", "OIHW", "NCHW")
    hi = lax.Precision.HIGHEST
    initial = x + y
    # ChannelAttention
    pooled = jnp.mean(initial, axis=(2, 3))                                   # (B, C)
    h = jnp.maximum(jnp.einsum("bc,rc->br", pooled, p["ca_w1"], precision=hi) + p["ca_b1"], 0.0)
    cattn = (jnp.einsum("br,cr->bc", h, p["ca_w2"], precision=hi) + p["ca_b2"])[:, :, None, None]
    # SpatialAttention
    x_avg = jnp.mean(initial, axis=1, keepdims=True)
    x_max = jnp.max(initial, axis=1, keepdims=True)
    s2 = jnp.concatenate([x_avg, x_max], axis=1)
    s2p = jnp.pad(s2, ((0, 0), (0, 0), (3, 3), (3, 3)), mode="reflect")
    sattn = lax.conv_general_dilated(s2p, p["sa_w"], (1, 1), "VALID",
                                     dimension_numbers=dn, precision=hi)
    sattn = sattn + p["sa_b"][None, :, None, None]
    # PixelAttention (double sigmoid, as in Fusion.forward)
    pattn1 = sattn + cattn
    x2 = jnp.concatenate([initial[:, :, None], pattn1[:, :, None]], axis=2).reshape(B, 2 * C, H, W)
    x2p = jnp.pad(x2, ((0, 0), (0, 0), (3, 3), (3, 3)), mode="reflect")
    pa = lax.conv_general_dilated(x2p, p["pa_w"], (1, 1), "VALID",
                                  dimension_numbers=dn, feature_group_count=C, precision=hi)
    pa = pa + p["pa_b"][None, :, None, None]
    pattn2 = jax.nn.sigmoid(jax.nn.sigmoid(pa))
    # Combine + 1x1 conv
    result = initial + pattn2 * x + (1.0 - pattn2) * y
    out = lax.conv_general_dilated(result, p["conv_w"][:, :, None, None], (1, 1), "VALID",
                                   dimension_numbers=dn, precision=hi)
    return out + p["conv_b"][None, :, None, None]


if __name__ == "__main__":
    dim, reduction = 32, 8
    Cr = dim // reduction
    B, H, W = 2, 16, 16

    key = jax.random.PRNGKey(0)
    keys = jax.random.split(key, 12)
    x = jax.random.normal(keys[0], (B, dim, H, W), dtype=jnp.float32)
    y = jax.random.normal(keys[1], (B, dim, H, W), dtype=jnp.float32)

    params = dict(
        ca_w1=jax.random.normal(keys[2], (Cr, dim), jnp.float32) * 0.1,     # Conv2d(dim, dim//r, 1)
        ca_b1=jax.random.normal(keys[3], (Cr,), jnp.float32) * 0.1,
        ca_w2=jax.random.normal(keys[4], (dim, Cr), jnp.float32) * 0.1,     # Conv2d(dim//r, dim, 1)
        ca_b2=jax.random.normal(keys[5], (dim,), jnp.float32) * 0.1,
        sa_w=jax.random.normal(keys[6], (1, 2, 7, 7), jnp.float32) * 0.1,   # Conv2d(2, 1, 7)
        sa_b=jax.random.normal(keys[7], (1,), jnp.float32) * 0.1,
        pa_w=jax.random.normal(keys[8], (dim, 2, 7, 7), jnp.float32) * 0.1, # Conv2d(2*dim, dim, 7, groups=dim)
        pa_b=jax.random.normal(keys[9], (dim,), jnp.float32) * 0.1,
        conv_w=jax.random.normal(keys[10], (dim, dim), jnp.float32) * 0.1,  # Conv2d(dim, dim, 1)
        conv_b=jax.random.normal(keys[11], (dim,), jnp.float32) * 0.1,
    )

    out = jax.jit(fusion_forward)(x, y, params)
    out = jax.block_until_ready(out)
    assert out.shape == (B, dim, H, W)

    ref = jax.block_until_ready(fusion_reference(x, y, params))
    err = float(jnp.max(jnp.abs(out - ref)))
    assert jnp.allclose(out, ref, atol=2e-3, rtol=2e-3), f"max abs err {err}"

    print("KERNEL_OK")
</pallas_src>

<mosaic_0001>
module attributes {stable_mosaic.version = 11 : i64} {
  func.func @kernel(%arg0: i32, %arg1: memref<1x32x256xf32, #tpu.memory_space<vmem>>, %arg2: memref<1x32x256xf32, #tpu.memory_space<vmem>>, %arg3: memref<1x32x256xf32, #tpu.memory_space<vmem>>, %arg4: memref<1x2x256xf32, #tpu.memory_space<vmem>>, %arg5: memref<1x32x1xf32, #tpu.memory_space<vmem>>) attributes {dimension_semantics = [#tpu.dimension_semantics<parallel>], iteration_bounds = array<i64: 2>, scalar_prefetch = 0 : i64, scratch_operands = 0 : i64, tpu.core_type = #tpu.core_type<tc>, window_params = [{transform_indices = @transform_0, window_bounds = array<i64: 1, 32, 256>}, {transform_indices = @transform_1, window_bounds = array<i64: 1, 32, 256>}, {transform_indices = @transform_2, window_bounds = array<i64: 1, 32, 256>}, {transform_indices = @transform_3, window_bounds = array<i64: 1, 2, 256>}, {transform_indices = @transform_4, window_bounds = array<i64: 1, 32, 1>}]} {
    %c0 = arith.constant 0 : index
    %c0_0 = arith.constant 0 : index
    %c0_1 = arith.constant 0 : index
    %0 = vector.load %arg1[%c0, %c0_0, %c0_1] : memref<1x32x256xf32, #tpu.memory_space<vmem>>, vector<1x32x256xf32>
    %1 = vector.shape_cast %0 : vector<1x32x256xf32> to vector<32x256xf32>
    %c0_2 = arith.constant 0 : index
    %c0_3 = arith.constant 0 : index
    %c0_4 = arith.constant 0 : index
    %2 = vector.load %arg2[%c0_2, %c0_3, %c0_4] : memref<1x32x256xf32, #tpu.memory_space<vmem>>, vector<1x32x256xf32>
    %3 = vector.shape_cast %2 : vector<1x32x256xf32> to vector<32x256xf32>
    %4 = arith.addf %1, %3 : vector<32x256xf32>
    %c0_5 = arith.constant 0 : index
    %c0_6 = arith.constant 0 : index
    %c0_7 = arith.constant 0 : index
    %5 = vector.load %arg3[%c0_5, %c0_6, %c0_7] : memref<1x32x256xf32, #tpu.memory_space<vmem>>, vector<1x32x256xf32>
    %6 = vector.shape_cast %5 : vector<1x32x256xf32> to vector<32x256xf32>
    %7 = vector.shape_cast %4 : vector<32x256xf32> to vector<1x32x256xf32>
    tpu.vector_store %arg3[%c0_5, %c0_6, %c0_7], %7 {strides = array<i32>} : memref<1x32x256xf32, #tpu.memory_space<vmem>>, vector<1x32x256xf32>,
    %cst = arith.constant dense<0.000000e+00> : vector<256xf32>
    %8 = vector.multi_reduction <add>, %4, %cst [0] : vector<32x256xf32> to vector<256xf32>
    %9 = vector.shape_cast %8 : vector<256xf32> to vector<1x256xf32>
    %cst_8 = arith.constant 3.125000e-02 : f32
    %10 = vector.broadcast %cst_8 : f32 to vector<1x256xf32>
    %11 = arith.mulf %9, %10 : vector<1x256xf32>
    %c0_9 = arith.constant 0 : index
    %c0_10 = arith.constant 0 : index
    %c0_11 = arith.constant 0 : index
    %12 = vector.load %arg4[%c0_9, %c0_10, %c0_11] : memref<1x2x256xf32, #tpu.memory_space<vmem>>, vector<1x1x256xf32>
    %13 = vector.shape_cast %12 : vector<1x1x256xf32> to vector<1x256xf32>
    %14 = vector.shape_cast %11 : vector<1x256xf32> to vector<1x1x256xf32>
    tpu.vector_store %arg4[%c0_9, %c0_10, %c0_11], %14 {strides = array<i32>} : memref<1x2x256xf32, #tpu.memory_space<vmem>>, vector<1x1x256xf32>,
    %cst_12 = arith.constant dense<0xFF800000> : vector<256xf32>
    %15 = vector.multi_reduction <maximumf>, %4, %cst_12 [0] : vector<32x256xf32> to vector<256xf32>
    %16 = vector.shape_cast %15 : vector<256xf32> to vector<1x256xf32>
    %c0_13 = arith.constant 0 : index
    %c1 = arith.constant 1 : index
    %c0_14 = arith.constant 0 : index
    %17 = vector.load %arg4[%c0_13, %c1, %c0_14] : memref<1x2x256xf32, #tpu.memory_space<vmem>>, vector<1x1x256xf32>
    %18 = vector.shape_cast %17 : vector<1x1x256xf32> to vector<1x256xf32>
    %19 = vector.shape_cast %16 : vector<1x256xf32> to vector<1x1x256xf32>
    tpu.vector_store %arg4[%c0_13, %c1, %c0_14], %19 {strides = array<i32>} : memref<1x2x256xf32, #tpu.memory_space<vmem>>, vector<1x1x256xf32>,
    %cst_15 = arith.constant dense<0.000000e+00> : vector<32xf32>
    %20 = vector.multi_reduction <add>, %4, %cst_15 [1] : vector<32x256xf32> to vector<32xf32>
    %21 = vector.shape_cast %20 : vector<32xf32> to vector<32x1xf32>
    %cst_16 = arith.constant 3.906250e-03 : f32
    %22 = vector.broadcast %cst_16 : f32 to vector<32x1xf32>
    %23 = arith.mulf %21, %22 : vector<32x1xf32>
    %c0_17 = arith.constant 0 : index
    %c0_18 = arith.constant 0 : index
    %c0_19 = arith.constant 0 : index
    %24 = vector.load %arg5[%c0_17, %c0_18, %c0_19] : memref<1x32x1xf32, #tpu.memory_space<vmem>>, vector<1x32x1xf32>
    %25 = vector.shape_cast %24 : vector<1x32x1xf32> to vector<32x1xf32>
    %26 = vector.shape_cast %23 : vector<32x1xf32> to vector<1x32x1xf32>
    tpu.vector_store %arg5[%c0_17, %c0_18, %c0_19], %26 {strides = array<i32>} : memref<1x32x1xf32, #tpu.memory_space<vmem>>, vector<1x32x1xf32>,
    return
  }
  func.func @transform_0(%arg0: i32) -> (i32, i32, i32) {
    %c0_i32 = arith.constant 0 : i32
    %c0_i32_0 = arith.constant 0 : i32
    %c0_i32_1 = arith.constant 0 : i32
    return %arg0, %c0_i32, %c0_i32_0 : i32, i32, i32
  }
  func.func @transform_1(%arg0: i32) -> (i32, i32, i32) {
    %c0_i32 = arith.constant 0 : i32
    %c0_i32_0 = arith.constant 0 : i32
    %c0_i32_1 = arith.constant 0 : i32
    return %arg0, %c0_i32, %c0_i32_0 : i32, i32, i32
  }
  func.func @transform_2(%arg0: i32) -> (i32, i32, i32) {
    %c0_i32 = arith.constant 0 : i32
    %c0_i32_0 = arith.constant 0 : i32
    %c0_i32_1 = arith.constant 0 : i32
    return %arg0, %c0_i32, %c0_i32_0 : i32, i32, i32
  }
  func.func @transform_3(%arg0: i32) -> (i32, i32, i32) {
    %c0_i32 = arith.constant 0 : i32
    %c0_i32_0 = arith.constant 0 : i32
    %c0_i32_1 = arith.constant 0 : i32
    return %arg0, %c0_i32, %c0_i32_0 : i32, i32, i32
  }
  func.func @transform_4(%arg0: i32) -> (i32, i32, i32) {
    %c0_i32 = arith.constant 0 : i32
    %c0_i32_0 = arith.constant 0 : i32
    %c0_i32_1 = arith.constant 0 : i32
    return %arg0, %c0_i32, %c0_i32_0 : i32, i32, i32
  }
}

module attributes {stable_mosaic.version = 11 : i64} {
  func.func @kernel(%arg0: i32, %arg1: memref<98xf32, #tpu.memory_space<smem>>, %arg2: memref<1xf32, #tpu.memory_space<smem>>, %arg3: memref<1x2x506xf32, #tpu.memory_space<vmem>>, %arg4: memref<1x1x256xf32, #tpu.memory_space<vmem>>) attributes {dimension_semantics = [#tpu.dimension_semantics<parallel>], iteration_bounds = array<i64: 2>, scalar_prefetch = 0 : i64, scratch_operands = 0 : i64, tpu.core_type = #tpu.core_type<tc>, window_params = [{transform_indices = @transform_0, window_bounds = array<i64: 98>}, {transform_indices = @transform_1, window_bounds = array<i64: 1>}, {transform_indices = @transform_2, window_bounds = array<i64: 1, 2, 506>}, {transform_indices = @transform_3, window_bounds = array<i64: 1, 1, 256>}]} {
    %c0 = arith.constant 0 : index
    %0 = memref.load %arg2[%c0] : memref<1xf32, #tpu.memory_space<smem>>
    %1 = vector.broadcast %0 : f32 to vector<1x352xf32>
    %c0_0 = arith.constant 0 : index
    %2 = memref.load %arg1[%c0_0] : memref<98xf32, #tpu.memory_space<smem>>
    %c0_1 = arith.constant 0 : index
    %c0_2 = arith.constant 0 : index
    %c0_3 = arith.constant 0 : index
    %3 = vector.load %arg3[%c0_1, %c0_2, %c0_3] : memref<1x2x506xf32, #tpu.memory_space<vmem>>, vector<1x1x352xf32>
    %4 = vector.shape_cast %3 : vector<1x1x352xf32> to vector<1x352xf32>
    %5 = vector.broadcast %2 : f32 to vector<1x352xf32>
    %6 = arith.mulf %5, %4 : vector<1x352xf32>
    %7 = arith.addf %1, %6 : vector<1x352xf32>
    %c1 = arith.constant 1 : index
    %8 = memref.load %arg1[%c1] : memref<98xf32, #tpu.memory_space<smem>>
    %c0_4 = arith.constant 0 : index
    %c0_5 = arith.constant 0 : index
    %c1_6 = arith.constant 1 : index
    %9 = vector.load %arg3[%c0_4, %c0_5, %c1_6] : memref<1x2x506xf32, #tpu.memory_space<vmem>>, vector<1x1x352xf32>
    %10 = vector.shape_cast %9 : vector<1x1x352xf32> to vector<1x352xf32>
    %11 = vector.broadcast %8 : f32 to vector<1x352xf32>
    %12 = arith.mulf %11, %10 : vector<1x352xf32>
    %13 = arith.addf %7, %12 : vector<1x352xf32>
    %c2 = arith.constant 2 : index
    %14 = memref.load %arg1[%c2] : memref<98xf32, #tpu.memory_space<smem>>
    %c0_7 = arith.constant 0 : index
    %c0_8 = arith.constant 0 : index
    %c2_9 = arith.constant 2 : index
    %15 = vector.load %arg3[%c0_7, %c0_8, %c2_9] : memref<1x2x506xf32, #tpu.memory_space<vmem>>, vector<1x1x352xf32>
    %16 = vector.shape_cast %15 : vector<1x1x352xf32> to vector<1x352xf32>
    %17 = vector.broadcast %14 : f32 to vector<1x352xf32>
    %18 = arith.mulf %17, %16 : vector<1x352xf32>
    %19 = arith.addf %13, %18 : vector<1x352xf32>
    %c3 = arith.constant 3 : index
    %20 = memref.load %arg1[%c3] : memref<98xf32, #tpu.memory_space<smem>>
    %c0_10 = arith.constant 0 : index
    %c0_11 = arith.constant 0 : index
    %c3_12 = arith.constant 3 : index
    %21 = vector.load %arg3[%c0_10, %c0_11, %c3_12] : memref<1x2x506xf32, #tpu.memory_space<vmem>>, vector<1x1x352xf32>
    %22 = vector.shape_cast %21 : vector<1x1x352xf32> to vector<1x352xf32>
    %23 = vector.broadcast %20 : f32 to vector<1x352xf32>
    %24 = arith.mulf %23, %22 : vector<1x352xf32>
    %25 = arith.addf %19, %24 : vector<1x352xf32>
    %c4 = arith.constant 4 : index
    %26 = memref.load %arg1[%c4] : memref<98xf32, #tpu.memory_space<smem>>
    %c0_13 = arith.constant 0 : index
    %c0_14 = arith.constant 0 : index
    %c4_15 = arith.constant 4 : index
    %27 = vector.load %arg3[%c0_13, %c0_14, %c4_15] : memref<1x2x506xf32, #tpu.memory_space<vmem>>, vector<1x1x352xf32>
    %28 = vector.shape_cast %27 : vector<1x1x352xf32> to vector<1x352xf32>
    %29 = vector.broadcast %26 : f32 to vector<1x352xf32>
    %30 = arith.mulf %29, %28 : vector<1x352xf32>
    %31 = arith.addf %25, %30 : vector<1x352xf32>
    %c5 = arith.constant 5 : index
    %32 = memref.load %arg1[%c5] : memref<98xf32, #tpu.memory_space<smem>>
    %c0_16 = arith.constant 0 : index
    %c0_17 = arith.constant 0 : index
    %c5_18 = arith.constant 5 : index
    %33 = vector.load %arg3[%c0_16, %c0_17, %c5_18] : memref<1x2x506xf32, #tpu.memory_space<vmem>>, vector<1x1x352xf32>
    %34 = vector.shape_cast %33 : vector<1x1x352xf32> to vector<1x352xf32>
    %35 = vector.broadcast %32 : f32 to vector<1x352xf32>
    %36 = arith.mulf %35, %34 : vector<1x352xf32>
    %37 = arith.addf %31, %36 : vector<1x352xf32>
    %c6 = arith.constant 6 : index
    %38 = memref.load %arg1[%c6] : memref<98xf32, #tpu.memory_space<smem>>
    %c0_19 = arith.constant 0 : index
    %c0_20 = arith.constant 0 : index
    %c6_21 = arith.constant 6 : index
    %39 = vector.load %arg3[%c0_19, %c0_20, %c6_21] : memref<1x2x506xf32, #tpu.memory_space<vmem>>, vector<1x1x352xf32>
    %40 = vector.shape_cast %39 : vector<1x1x352xf32> to vector<1x352xf32>
    %41 = vector.broadcast %38 : f32 to vector<1x352xf32>
    %42 = arith.mulf %41, %40 : vector<1x352xf32>
    %43 = arith.addf %37, %42 : vector<1x352xf32>
    %c7 = arith.constant 7 : index
    %44 = memref.load %arg1[%c7] : memref<98xf32, #tpu.memory_space<smem>>
    %c0_22 = arith.constant 0 : index
    %c0_23 = arith.constant 0 : index
    %c22 = arith.constant 22 : index
    %45 = vector.load %arg3[%c0_22, %c0_23, %c22] : memref<1x2x506xf32, #tpu.memory_space<vmem>>, vector<1x1x352xf32>
    %46 = vector.shape_cast %45 : vector<1x1x352xf32> to vector<1x352xf32>
    %47 = vector.broadcast %44 : f32 to vector<1x352xf32>
    %48 = arith.mulf %47, %46 : vector<1x352xf32>
    %49 = arith.addf %43, %48 : vector<1x352xf32>
    %c8 = arith.constant 8 : index
    %50 = memref.load %arg1[%c8] : memref<98xf32, #tpu.memory_space<smem>>
    %c0_24 = arith.constant 0 : index
    %c0_25 = arith.constant 0 : index
    %c23 = arith.constant 23 : index
    %51 = vector.load %arg3[%c0_24, %c0_25, %c23] : memref<1x2x506xf32, #tpu.memory_space<vmem>>, vector<1x1x352xf32>
    %52 = vector.shape_cast %51 : vector<1x1x352xf32> to vector<1x352xf32>
    %53 = vector.broadcast %50 : f32 to vector<1x352xf32>
    %54 = arith.mulf %53, %52 : vector<1x352xf32>
    %55 = arith.addf %49, %54 : vector<1x352xf32>
    %c9 = arith.constant 9 : index
    %56 = memref.load %arg1[%c9] : memref<98xf32, #tpu.memory_space<smem>>
    %c0_26 = arith.constant 0 : index
    %c0_27 = arith.constant 0 : index
    %c24 = arith.constant 24 : index
    %57 = vector.load %arg3[%c0_26, %c0_27, %c24] : memref<1x2x506xf32, #tpu.memory_space<vmem>>, vector<1x1x352xf32>
    %58 = vector.shape_cast %57 : vector<1x1x352xf32> to vector<1x352xf32>
    %59 = vector.broadcast %56 : f32 to vector<1x352xf32>
    %60 = arith.mulf %59, %58 : vector<1x352xf32>
    %61 = arith.addf %55, %60 : vector<1x352xf32>
    %c10 = arith.constant 10 : index
    %62 = memref.load %arg1[%c10] : memref<98xf32, #tpu.memory_space<smem>>
    %c0_28 = arith.constant 0 : index
    %c0_29 = arith.constant 0 : index
    %c25 = arith.constant 25 : index
    %63 = vector.load %arg3[%c0_28, %c0_29, %c25] : memref<1x2x506xf32, #tpu.memory_space<vmem>>, vector<1x1x352xf32>
    %64 = vector.shape_cast %63 : vector<1x1x352xf32> to vector<1x352xf32>
    %65 = vector.broadcast %62 : f32 to vector<1x352xf32>
    %66 = arith.mulf %65, %64 : vector<1x352xf32>
    %67 = arith.addf %61, %66 : vector<1x352xf32>
    %c11 = arith.constant 11 : index
    %68 = memref.load %arg1[%c11] : memref<98xf32, #tpu.memory_space<smem>>
    %c0_30 = arith.constant 0 : index
    %c0_31 = arith.constant 0 : index
    %c26 = arith.constant 26 : index
    %69 = vector.load %arg3[%c0_30, %c0_31, %c26] : memref<1x2x506xf32, #tpu.memory_space<vmem>>, vector<1x1x352xf32>
    %70 = vector.shape_cast %69 : vector<1x1x352xf32> to vector<1x352xf32>
    %71 = vector.broadcast %68 : f32 to vector<1x352xf32>
    %72 = arith.mulf %71, %70 : vector<1x352xf32>
    %73 = arith.addf %67, %72 : vector<1x352xf32>
    %c12 = arith.constant 12 : index
    %74 = memref.load %arg1[%c12] : memref<98xf32, #tpu.memory_space<smem>>
    %c0_32 = arith.constant 0 : index
    %c0_33 = arith.constant 0 : index
    %c27 = arith.constant 27 : index
    %75 = vector.load %arg3[%c0_32, %c0_33, %c27] : memref<1x2x506xf32, #tpu.memory_space<vmem>>, vector<1x1x352xf32>
    %76 = vector.shape_cast %75 : vector<1x1x352xf32> to vector<1x352xf32>
    %77 = vector.broadcast %74 : f32 to vector<1x352xf32>
    %78 = arith.mulf %77, %76 : vector<1x352xf32>
    %79 = arith.addf %73, %78 : vector<1x352xf32>
    %c13 = arith.constant 13 : index
    %80 = memref.load %arg1[%c13] : memref<98xf32, #tpu.memory_space<smem>>
    %c0_34 = arith.constant 0 : index
    %c0_35 = arith.constant 0 : index
    %c28 = arith.constant 28 : index
    %81 = vector.load %arg3[%c0_34, %c0_35, %c28] : memref<1x2x506xf32, #tpu.memory_space<vmem>>, vector<1x1x352xf32>
    %82 = vector.shape_cast %81 : vector<1x1x352xf32> to vector<1x352xf32>
    %83 = vector.broadcast %80 : f32 to vector<1x352xf32>
    %84 = arith.mulf %83, %82 : vector<1x352xf32>
    %85 = arith.addf %79, %84 : vector<1x352xf32>
    %c14 = arith.constant 14 : index
    %86 = memref.load %arg1[%c14] : memref<98xf32, #tpu.memory_space<smem>>
    %c0_36 = arith.constant 0 : index
    %c0_37 = arith.constant 0 : index
    %c44 = arith.constant 44 : index
    %87 = vector.load %arg3[%c0_36, %c0_37, %c44] : memref<1x2x506xf32, #tpu.memory_space<vmem>>, vector<1x1x352xf32>
    %88 = vector.shape_cast %87 : vector<1x1x352xf32> to vector<1x352xf32>
    %89 = vector.broadcast %86 : f32 to vector<1x352xf32>
    %90 = arith.mulf %89, %88 : vector<1x352xf32>
    %91 = arith.addf %85, %90 : vector<1x352xf32>
    %c15 = arith.constant 15 : index
    %92 = memref.load %arg1[%c15] : memref<98xf32, #tpu.memory_space<smem>>
    %c0_38 = arith.constant 0 : index
    %c0_39 = arith.constant 0 : index
    %c45 = arith.constant 45 : index
    %93 = vector.load %arg3[%c0_38, %c0_39, %c45] : memref<1x2x506xf32, #tpu.memory_space<vmem>>, vector<1x1x352xf32>
    %94 = vector.shape_cast %93 : vector<1x1x352xf32> to vector<1x352xf32>
    %95 = vector.broadcast %92 : f32 to vector<1x352xf32>
    %96 = arith.mulf %95, %94 : vector<1x352xf32>
    %97 = arith.addf %91, %96 : vector<1x352xf32>
    %c16 = arith.constant 16 : index
    %98 = memref.load %arg1[%c16] : memref<98xf32, #tpu.memory_space<smem>>
    %c0_40 = arith.constant 0 : index
    %c0_41 = arith.constant 0 : index
    %c46 = arith.constant 46 : index
    %99 = vector.load %arg3[%c0_40, %c0_41, %c46] : memref<1x2x506xf32, #tpu.memory_space<vmem>>, vector<1x1x352xf32>
    %100 = vector.shape_cast %99 : vector<1x1x352xf32> to vector<1x352xf32>
    %101 = vector.broadcast %98 : f32 to vector<1x352xf32>
    %102 = arith.mulf %101, %100 : vector<1x352xf32>
    %103 = arith.addf %97, %102 : vector<1x352xf32>
    %c17 = arith.constant 17 : index
    %104 = memref.load %arg1[%c17] : memref<98xf32, #tpu.memory_space<smem>>
    %c0_42 = arith.constant 0 : index
    %c0_43 = arith.constant 0 : index
    %c47 = arith.constant 47 : index
    %105 = vector.load %arg3[%c0_42, %c0_43, %c47] : memref<1x2x506xf32, #tpu.memory_space<vmem>>, vector<1x1x352xf32>
    %106 = vector.shape_cast %105 : vector<1x1x352xf32> to vector<1x352xf32>
    %107 = vector.broadcast %104 : f32 to vector<1x352xf32>
    %108 = arith.mulf %107, %106 : vector<1x352xf32>
    %109 = arith.addf %103, %108 : vector<1x352xf32>
    %c18 = arith.constant 18 : index
    %110 = memref.load %arg1[%c18] : memref<98xf32, #tpu.memory_space<smem>>
    %c0_44 = arith.constant 0 : index
    %c0_45 = arith.constant 0 : index
    %c48 = arith.constant 48 : index
    %111 = vector.load %arg3[%c0_44, %c0_45, %c48] : memref<1x2x506xf32, #tpu.memory_space<vmem>>, vector<1x1x352xf32>
    %112 = vector.shape_cast %111 : vector<1x1x352xf32> to vector<1x352xf32>
    %113 = vector.broadcast %110 : f32 to vector<1x352xf32>
    %114 = arith.mulf %113, %112 : vector<1x352xf32>
    %115 = arith.addf %109, %114 : vector<1x352xf32>
    %c19 = arith.constant 19 : index
    %116 = memref.load %arg1[%c19] : memref<98xf32, #tpu.memory_space<smem>>
    %c0_46 = arith.constant 0 : index
    %c0_47 = arith.constant 0 : index
    %c49 = arith.constant 49 : index
    %117 = vector.load %arg3[%c0_46, %c0_47, %c49] : memref<1x2x506xf32, #tpu.memory_space<vmem>>, vector<1x1x352xf32>
    %118 = vector.shape_cast %117 : vector<1x1x352xf32> to vector<1x352xf32>
    %119 = vector.broadcast %116 : f32 to vector<1x352xf32>
    %120 = arith.mulf %119, %118 : vector<1x352xf32>
    %121 = arith.addf %115, %120 : vector<1x352xf32>
    %c20 = arith.constant 20 : index
    %122 = memref.load %arg1[%c20] : memref<98xf32, #tpu.memory_space<smem>>
    %c0_48 = arith.constant 0 : index
    %c0_49 = arith.constant 0 : index
    %c50 = arith.constant 50 : index
    %123 = vector.load %arg3[%c0_48, %c0_49, %c50] : memref<1x2x506xf32, #tpu.memory_space<vmem>>, vector<1x1x352xf32>
    %124 = vector.shape_cast %123 : vector<1x1x352xf32> to vector<1x352xf32>
    %125 = vector.broadcast %122 : f32 to vector<1x352xf32>
    %126 = arith.mulf %125, %124 : vector<1x352xf32>
    %127 = arith.addf %121, %126 : vector<1x352xf32>
    %c21 = arith.constant 21 : index
    %128 = memref.load %arg1[%c21] : memref<98xf32, #tpu.memory_space<smem>>
    %c0_50 = arith.constant 0 : index
    %c0_51 = arith.constant 0 : index
    %c66 = arith.constant 66 : index
    %129 = vector.load %arg3[%c0_50, %c0_51, %c66] : memref<1x2x506xf32, #tpu.memory_space<vmem>>, vector<1x1x352xf32>
    %130 = vector.shape_cast %129 : vector<1x1x352xf32> to vector<1x352xf32>
    %131 = vector.broadcast %128 : f32 to vector<1x352xf32>
    %132 = arith.mulf %131, %130 : vector<1x352xf32>
    %133 = arith.addf %127, %132 : vector<1x352xf32>
    %c22_52 = arith.constant 22 : index
    %134 = memref.load %arg1[%c22_52] : memref<98xf32, #tpu.memory_space<smem>>
    %c0_53 = arith.constant 0 : index
    %c0_54 = arith.constant 0 : index
    %c67 = arith.constant 67 : index
    %135 = vector.load %arg3[%c0_53, %c0_54, %c67] : memref<1x2x506xf32, #tpu.memory_space<vmem>>, vector<1x1x352xf32>
    %136 = vector.shape_cast %135 : vector<1x1x352xf32> to vector<1x352xf32>
    %137 = vector.broadcast %134 : f32 to vector<1x352xf32>
    %138 = arith.mulf %137, %136 : vector<1x352xf32>
    %139 = arith.addf %133, %138 : vector<1x352xf32>
    %c23_55 = arith.constant 23 : index
    %140 = memref.load %arg1[%c23_55] : memref<98xf32, #tpu.memory_space<smem>>
    %c0_56 = arith.constant 0 : index
    %c0_57 = arith.constant 0 : index
    %c68 = arith.constant 68 : index
    %141 = vector.load %arg3[%c0_56, %c0_57, %c68] : memref<1x2x506xf32, #tpu.memory_space<vmem>>, vector<1x1x352xf32>
    %142 = vector.shape_cast %141 : vector<1x1x352xf32> to vector<1x352xf32>
    %143 = vector.broadcast %140 : f32 to vector<1x352xf32>
    %144 = arith.mulf %143, %142 : vector<1x352xf32>
    %145 = arith.addf %139, %144 : vector<1x352xf32>
    %c24_58 = arith.constant 24 : index
    %146 = memref.load %arg1[%c24_58] : memref<98xf32, #tpu.memory_space<smem>>
    %c0_59 = arith.constant 0 : index
    %c0_60 = arith.constant 0 : index
    %c69 = arith.constant 69 : index
    %147 = vector.load %arg3[%c0_59, %c0_60, %c69] : memref<1x2x506xf32, #tpu.memory_space<vmem>>, vector<1x1x352xf32>
    %148 = vector.shape_cast %147 : vector<1x1x352xf32> to vector<1x352xf32>
    %149 = vector.broadcast %146 : f32 to vector<1x352xf32>
    %150 = arith.mulf %149, %148 : vector<1x352xf32>
    %151 = arith.addf %145, %150 : vector<1x352xf32>
    %c25_61 = arith.constant 25 : index
    %152 = memref.load %arg1[%c25_61] : memref<98xf32, #tpu.memory_space<smem>>
    %c0_62 = arith.constant 0 : index
    %c0_63 = arith.constant 0 : index
    %c70 = arith.constant 70 : index
    %153 = vector.load %arg3[%c0_62, %c0_63, %c70] : memref<1x2x506xf32, #tpu.memory_space<vmem>>, vector<1x1x352xf32>
    %154 = vector.shape_cast %153 : vector<1x1x352xf32> to vector<1x352xf32>
    %155 = vector.broadcast %152 : f32 to vector<1x352xf32>
    %156 = arith.mulf %155, %154 : vector<1x352xf32>
    %157 = arith.addf %151, %156 : vector<1x352xf32>
    %c26_64 = arith.constant 26 : index
    %158 = memref.load %arg1[%c26_64] : memref<98xf32, #tpu.memory_space<smem>>
    %c0_65 = arith.constant 0 : index
    %c0_66 = arith.constant 0 : index
    %c71 = arith.constant 71 : index
    %159 = vector.load %arg3[%c0_65, %c0_66, %c71] : memref<1x2x506xf32, #tpu.memory_space<vmem>>, vector<1x1x352xf32>
    %160 = vector.shape_cast %159 : vector<1x1x352xf32> to vector<1x352xf32>
    %161 = vector.broadcast %158 : f32 to vector<1x352xf32>
    %162 = arith.mulf %161, %160 : vector<1x352xf32>
    %163 = arith.addf %157, %162 : vector<1x352xf32>
    %c27_67 = arith.constant 27 : index
    %164 = memref.load %arg1[%c27_67] : memref<98xf32, #tpu.memory_space<smem>>
    %c0_68 = arith.constant 0 : index
    %c0_69 = arith.constant 0 : index
    %c72 = arith.constant 72 : index
    %165 = vector.load %arg3[%c0_68, %c0_69, %c72] : memref<1x2x506xf32, #tpu.memory_space<vmem>>, vector<1x1x352xf32>
    %166 = vector.shape_cast %165 : vector<1x1x352xf32> to vector<1x352xf32>
    %167 = vector.broadcast %164 : f32 to vector<1x352xf32>
    %168 = arith.mulf %167, %166 : vector<1x352xf32>
    %169 = arith.addf %163, %168 : vector<1x352xf32>
    %c28_70 = arith.constant 28 : index
    %170 = memref.load %arg1[%c28_70] : memref<98xf32, #tpu.memory_space<smem>>
    %c0_71 = arith.constant 0 : index
    %c0_72 = arith.constant 0 : index
    %c88 = arith.constant 88 : index
    %171 = vector.load %arg3[%c0_71, %c0_72, %c88] : memref<1x2x506xf32, #tpu.memory_space<vmem>>, vector<1x1x352xf32>
    %172 = vector.shape_cast %171 : vector<1x1x352xf32> to vector<1x352xf32>
    %173 = vector.broadcast %170 : f32 to vector<1x352xf32>
    %174 = arith.mulf %173, %172 : vector<1x352xf32>
    %175 = arith.addf %169, %174 : vector<1x352xf32>
    %c29 = arith.constant 29 : index
    %176 = memref.load %arg1[%c29] : memref<98xf32, #tpu.memory_space<smem>>
    %c0_73 = arith.constant 0 : index
    %c0_74 = arith.constant 0 : index
    %c89 = arith.constant 89 : index
    %177 = vector.load %arg3[%c0_73, %c0_74, %c89] : memref<1x2x506xf32, #tpu.memory_space<vmem>>, vector<1x1x352xf32>
    %178 = vector.shape_cast %177 : vector<1x1x352xf32> to vector<1x352xf32>
    %179 = vector.broadcast %176 : f32 to vector<1x352xf32>
    %180 = arith.mulf %179, %178 : vector<1x352xf32>
    %181 = arith.addf %175, %180 : vector<1x352xf32>
    %c30 = arith.constant 30 : index
    %182 = memref.load %arg1[%c30] : memref<98xf32, #tpu.memory_space<smem>>
    %c0_75 = arith.constant 0 : index
    %c0_76 = arith.constant 0 : index
    %c90 = arith.constant 90 : index
    %183 = vector.load %arg3[%c0_75, %c0_76, %c90] : memref<1x2x506xf32, #tpu.memory_space<vmem>>, vector<1x1x352xf32>
    %184 = vector.shape_cast %183 : vector<1x1x352xf32> to vector<1x352xf32>
    %185 = vector.broadcast %182 : f32 to vector<1x352xf32>
    %186 = arith.mulf %185, %184 : vector<1x352xf32>
    %187 = arith.addf %181, %186 : vector<1x352xf32>
    %c31 = arith.constant 31 : index
    %188 = memref.load %arg1[%c31] : memref<98xf32, #tpu.memory_space<smem>>
    %c0_77 = arith.constant 0 : index
    %c0_78 = arith.constant 0 : index
    %c91 = arith.constant 91 : index
    %189 = vector.load %arg3[%c0_77, %c0_78, %c91] : memref<1x2x506xf32, #tpu.memory_space<vmem>>, vector<1x1x352xf32>
    %190 = vector.shape_cast %189 : vector<1x1x352xf32> to vector<1x352xf32>
    %191 = vector.broadcast %188 : f32 to vector<1x352xf32>
    %192 = arith.mulf %191, %190 : vector<1x352xf32>
    %193 = arith.addf %187, %192 : vector<1x352xf32>
    %c32 = arith.constant 32 : index
    %194 = memref.load %arg1[%c32] : memref<98xf32, #tpu.memory_space<smem>>
    %c0_79 = arith.constant 0 : index
    %c0_80 = arith.constant 0 : index
    %c92 = arith.constant 92 : index
    %195 = vector.load %arg3[%c0_79, %c0_80, %c92] : memref<1x2x506xf32, #tpu.memory_space<vmem>>, vector<1x1x352xf32>
    %196 = vector.shape_cast %195 : vector<1x1x352xf32> to vector<1x352xf32>
    %197 = vector.broadcast %194 : f32 to vector<1x352xf32>
    %198 = arith.mulf %197, %196 : vector<1x352xf32>
    %199 = arith.addf %193, %198 : vector<1x352xf32>
    %c33 = arith.constant 33 : index
    %200 = memref.load %arg1[%c33] : memref<98xf32, #tpu.memory_space<smem>>
    %c0_81 = arith.constant 0 : index
    %c0_82 = arith.constant 0 : index
    %c93 = arith.constant 93 : index
    %201 = vector.load %arg3[%c0_81, %c0_82, %c93] : memref<1x2x506xf32, #tpu.memory_space<vmem>>, vector<1x1x352xf32>
    %202 = vector.shape_cast %201 : vector<1x1x352xf32> to vector<1x352xf32>
    %203 = vector.broadcast %200 : f32 to vector<1x352xf32>
    %204 = arith.mulf %203, %202 : vector<1x352xf32>
    %205 = arith.addf %199, %204 : vector<1x352xf32>
    %c34 = arith.constant 34 : index
    %206 = memref.load %arg1[%c34] : memref<98xf32, #tpu.memory_space<smem>>
    %c0_83 = arith.constant 0 : index
    %c0_84 = arith.constant 0 : index
    %c94 = arith.constant 94 : index
    %207 = vector.load %arg3[%c0_83, %c0_84, %c94] : memref<1x2x506xf32, #tpu.memory_space<vmem>>, vector<1x1x352xf32>
    %208 = vector.shape_cast %207 : vector<1x1x352xf32> to vector<1x352xf32>
    %209 = vector.broadcast %206 : f32 to vector<1x352xf32>
    %210 = arith.mulf %209, %208 : vector<1x352xf32>
    %211 = arith.addf %205, %210 : vector<1x352xf32>
    %c35 = arith.constant 35 : index
    %212 = memref.load %arg1[%c35] : memref<98xf32, #tpu.memory_space<smem>>
    %c0_85 = arith.constant 0 : index
    %c0_86 = arith.constant 0 : index
    %c110 = arith.constant 110 : index
    %213 = vector.load %arg3[%c0_85, %c0_86, %c110] : memref<1x2x506xf32, #tpu.memory_space<vmem>>, vector<1x1x352xf32>
    %214 = vector.shape_cast %213 : vector<1x1x352xf32> to vector<1x352xf32>
    %215 = vector.broadcast %212 : f32 to vector<1x352xf32>
    %216 = arith.mulf %215, %214 : vector<1x352xf32>
    %217 = arith.addf %211, %216 : vector<1x352xf32>
    %c36 = arith.constant 36 : index
    %218 = memref.load %arg1[%c36] : memref<98xf32, #tpu.memory_space<smem>>
    %c0_87 = arith.constant 0 : index
    %c0_88 = arith.constant 0 : index
    %c111 = arith.constant 111 : index
    %219 = vector.load %arg3[%c0_87, %c0_88, %c111] : memref<1x2x506xf32, #tpu.memory_space<vmem>>, vector<1x1x352xf32>
    %220 = vector.shape_cast %219 : vector<1x1x352xf32> to vector<1x352xf32>
    %221 = vector.broadcast %218 : f32 to vector<1x352xf32>
    %222 = arith.mulf %221, %220 : vector<1x352xf32>
    %223 = arith.addf %217, %222 : vector<1x352xf32>
    %c37 = arith.constant 37 : index
    %224 = memref.load %arg1[%c37] : memref<98xf32, #tpu.memory_space<smem>>
    %c0_89 = arith.constant 0 : index
    %c0_90 = arith.constant 0 : index
    %c112 = arith.constant 112 : index
    %225 = vector.load %arg3[%c0_89, %c0_90, %c112] : memref<1x2x506xf32, #tpu.memory_space<vmem>>, vector<1x1x352xf32>
    %226 = vector.shape_cast %225 : vector<1x1x352xf32> to vector<1x352xf32>
    %227 = vector.broadcast %224 : f32 to vector<1x352xf32>
    %228 = arith.mulf %227, %226 : vector<1x352xf32>
    %229 = arith.addf %223, %228 : vector<1x352xf32>
    %c38 = arith.constant 38 : index
    %230 = memref.load %arg1[%c38] : memref<98xf32, #tpu.memory_space<smem>>
    %c0_91 = arith.constant 0 : index
    %c0_92 = arith.constant 0 : index
    %c113 = arith.constant 113 : index
    %231 = vector.load %arg3[%c0_91, %c0_92, %c113] : memref<1x2x506xf32, #tpu.memory_space<vmem>>, vector<1x1x352xf32>
    %232 = vector.shape_cast %231 : vector<1x1x352xf32> to vector<1x352xf32>
    %233 = vector.broadcast %230 : f32 to vector<1x352xf32>
    %234 = arith.mulf %233, %232 : vector<1x352xf32>
    %235 = arith.addf %229, %234 : vector<1x352xf32>
    %c39 = arith.constant 39 : index
    %236 = memref.load %arg1[%c39] : memref<98xf32, #tpu.memory_space<smem>>
    %c0_93 = arith.constant 0 : index
    %c0_94 = arith.constant 0 : index
    %c114 = arith.constant 114 : index
    %237 = vector.load %arg3[%c0_93, %c0_94, %c114] : memref<1x2x506xf32, #tpu.memory_space<vmem>>, vector<1x1x352xf32>
    %238 = vector.shape_cast %237 : vector<1x1x352xf32> to vector<1x352xf32>
    %239 = vector.broadcast %236 : f32 to vector<1x352xf32>
    %240 = arith.mulf %239, %238 : vector<1x352xf32>
    %241 = arith.addf %235, %240 : vector<1x352xf32>
    %c40 = arith.constant 40 : index
    %242 = memref.load %arg1[%c40] : memref<98xf32, #tpu.memory_space<smem>>
    %c0_95 = arith.constant 0 : index
    %c0_96 = arith.constant 0 : index
    %c115 = arith.constant 115 : index
    %243 = vector.load %arg3[%c0_95, %c0_96, %c115] : memref<1x2x506xf32, #tpu.memory_space<vmem>>, vector<1x1x352xf32>
    %244 = vector.shape_cast %243 : vector<1x1x352xf32> to vector<1x352xf32>
    %245 = vector.broadcast %242 : f32 to vector<1x352xf32>
    %246 = arith.mulf %245, %244 : vector<1x352xf32>
    %247 = arith.addf %241, %246 : vector<1x352xf32>
    %c41 = arith.constant 41 : index
    %248 = memref.load %arg1[%c41] : memref<98xf32, #tpu.memory_space<smem>>
    %c0_97 = arith.constant 0 : index
    %c0_98 = arith.constant 0 : index
    %c116 = arith.constant 116 : index
    %249 = vector.load %arg3[%c0_97, %c0_98, %c116] : memref<1x2x506xf32, #tpu.memory_space<vmem>>, vector<1x1x352xf32>
    %250 = vector.shape_cast %249 : vector<1x1x352xf32> to vector<1x352xf32>
    %251 = vector.broadcast %248 : f32 to vector<1x352xf32>
    %252 = arith.mulf %251, %250 : vector<1x352xf32>
    %253 = arith.addf %247, %252 : vector<1x352xf32>
    %c42 = arith.constant 42 : index
    %254 = memref.load %arg1[%c42] : memref<98xf32, #tpu.memory_space<smem>>
    %c0_99 = arith.constant 0 : index
    %c0_100 = arith.constant 0 : index
    %c132 = arith.constant 132 : index
    %255 = vector.load %arg3[%c0_99, %c0_100, %c132] : memref<1x2x506xf32, #tpu.memory_space<vmem>>, vector<1x1x352xf32>
    %256 = vector.shape_cast %255 : vector<1x1x352xf32> to vector<1x352xf32>
    %257 = vector.broadcast %254 : f32 to vector<1x352xf32>
    %258 = arith.mulf %257, %256 : vector<1x352xf32>
    %259 = arith.addf %253, %258 : vector<1x352xf32>
    %c43 = arith.constant 43 : index
    %260 = memref.load %arg1[%c43] : memref<98xf32, #tpu.memory_space<smem>>
    %c0_101 = arith.constant 0 : index
    %c0_102 = arith.constant 0 : index
    %c133 = arith.constant 133 : index
    %261 = vector.load %arg3[%c0_101, %c0_102, %c133] : memref<1x2x506xf32, #tpu.memory_space<vmem>>, vector<1x1x352xf32>
    %262 = vector.shape_cast %261 : vector<1x1x352xf32> to vector<1x352xf32>
    %263 = vector.broadcast %260 : f32 to vector<1x352xf32>
    %264 = arith.mulf %263, %262 : vector<1x352xf32>
    %265 = arith.addf %259, %264 : vector<1x352xf32>
    %c44_103 = arith.constant 44 : index
    %266 = memref.load %arg1[%c44_103] : memref<98xf32, #tpu.memory_space<smem>>
    %c0_104 = arith.constant 0 : index
    %c0_105 = arith.constant 0 : index
    %c134 = arith.constant 134 : index
    %267 = vector.load %arg3[%c0_104, %c0_105, %c134] : memref<1x2x506xf32, #tpu.memory_space<vmem>>, vector<1x1x352xf32>
    %268 = vector.shape_cast %267 : vector<1x1x352xf32> to vector<1x352xf32>
    %269 = vector.broadcast %266 : f32 to vector<1x352xf32>
    %270 = arith.mulf %269, %268 : vector<1x352xf32>
    %271 = arith.addf %265, %270 : vector<1x352xf32>
    %c45_106 = arith.constant 45 : index
    %272 = memref.load %arg1[%c45_106] : memref<98xf32, #tpu.memory_space<smem>>
    %c0_107 = arith.constant 0 : index
    %c0_108 = arith.constant 0 : index
    %c135 = arith.constant 135 : index
    %273 = vector.load %arg3[%c0_107, %c0_108, %c135] : memref<1x2x506xf32, #tpu.memory_space<vmem>>, vector<1x1x352xf32>
    %274 = vector.shape_cast %273 : vector<1x1x352xf32> to vector<1x352xf32>
    %275 = vector.broadcast %272 : f32 to vector<1x352xf32>
    %276 = arith.mulf %275, %274 : vector<1x352xf32>
    %277 = arith.addf %271, %276 : vector<1x352xf32>
    %c46_109 = arith.constant 46 : index
    %278 = memref.load %arg1[%c46_109] : memref<98xf32, #tpu.memory_space<smem>>
    %c0_110 = arith.constant 0 : index
    %c0_111 = arith.constant 0 : index
    %c136 = arith.constant 136 : index
    %279 = vector.load %arg3[%c0_110, %c0_111, %c136] : memref<1x2x506xf32, #tpu.memory_space<vmem>>, vector<1x1x352xf32>
    %280 = vector.shape_cast %279 : vector<1x1x352xf32> to vector<1x352xf32>
    %281 = vector.broadcast %278 : f32 to vector<1x352xf32>
    %282 = arith.mulf %281, %280 : vector<1x352xf32>
    %283 = arith.addf %277, %282 : vector<1x352xf32>
    %c47_112 = arith.constant 47 : index
    %284 = memref.load %arg1[%c47_112] : memref<98xf32, #tpu.memory_space<smem>>
    %c0_113 = arith.constant 0 : index
    %c0_114 = arith.constant 0 : index
    %c137 = arith.constant 137 : index
    %285 = vector.load %arg3[%c0_113, %c0_114, %c137] : memref<1x2x506xf32, #tpu.memory_space<vmem>>, vector<1x1x352xf32>
    %286 = vector.shape_cast %285 : vector<1x1x352xf32> to vector<1x352xf32>
    %287 = vector.broadcast %284 : f32 to vector<1x352xf32>
    %288 = arith.mulf %287, %286 : vector<1x352xf32>
    %289 = arith.addf %283, %288 : vector<1x352xf32>
    %c48_115 = arith.constant 48 : index
    %290 = memref.load %arg1[%c48_115] : memref<98xf32, #tpu.memory_space<smem>>
    %c0_116 = arith.constant 0 : index
    %c0_117 = arith.constant 0 : index
    %c138 = arith.constant 138 : index
    %291 = vector.load %arg3[%c0_116, %c0_117, %c138] : memref<1x2x506xf32, #tpu.memory_space<vmem>>, vector<1x1x352xf32>
    %292 = vector.shape_cast %291 : vector<1x1x352xf32> to vector<1x352xf32>
    %293 = vector.broadcast %290 : f32 to vector<1x352xf32>
    %294 = arith.mulf %293, %292 : vector<1x352xf32>
    %295 = arith.addf %289, %294 : vector<1x352xf32>
    %c49_118 = arith.constant 49 : index
    %296 = memref.load %arg1[%c49_118] : memref<98xf32, #tpu.memory_space<smem>>
    %c0_119 = arith.constant 0 : index
    %c1_120 = arith.constant 1 : index
    %c0_121 = arith.constant 0 : index
    %297 = vector.load %arg3[%c0_119, %c1_120, %c0_121] : memref<1x2x506xf32, #tpu.memory_space<vmem>>, vector<1x1x352xf32>
    %298 = vector.shape_cast %297 : vector<1x1x352xf32> to vector<1x352xf32>
    %299 = vector.broadcast %296 : f32 to vector<1x352xf32>
    %300 = arith.mulf %299, %298 : vector<1x352xf32>
    %301 = arith.addf %295, %300 : vector<1x352xf32>
    %c50_122 = arith.constant 50 : index
    %302 = memref.load %arg1[%c50_122] : memref<98xf32, #tpu.memory_space<smem>>
    %c0_123 = arith.constant 0 : index
    %c1_124 = arith.constant 1 : index
    %c1_125 = arith.constant 1 : index
    %303 = vector.load %arg3[%c0_123, %c1_124, %c1_125] : memref<1x2x506xf32, #tpu.memory_space<vmem>>, vector<1x1x352xf32>
    %304 = vector.shape_cast %303 : vector<1x1x352xf32> to vector<1x352xf32>
    %305 = vector.broadcast %302 : f32 to vector<1x352xf32>
    %306 = arith.mulf %305, %304 : vector<1x352xf32>
    %307 = arith.addf %301, %306 : vector<1x352xf32>
    %c51 = arith.constant 51 : index
    %308 = memref.load %arg1[%c51] : memref<98xf32, #tpu.memory_space<smem>>
    %c0_126 = arith.constant 0 : index
    %c1_127 = arith.constant 1 : index
    %c2_128 = arith.constant 2 : index
    %309 = vector.load %arg3[%c0_126, %c1_127, %c2_128] : memref<1x2x506xf32, #tpu.memory_space<vmem>>, vector<1x1x352xf32>
    %310 = vector.shape_cast %309 : vector<1x1x352xf32> to vector<1x352xf32>
    %311 = vector.broadcast %308 : f32 to vector<1x352xf32>
    %312 = arith.mulf %311, %310 : vector<1x352xf32>
    %313 = arith.addf %307, %312 : vector<1x352xf32>
    %c52 = arith.constant 52 : index
    %314 = memref.load %arg1[%c52] : memref<98xf32, #tpu.memory_space<smem>>
    %c0_129 = arith.constant 0 : index
    %c1_130 = arith.constant 1 : index
    %c3_131 = arith.constant 3 : index
    %315 = vector.load %arg3[%c0_129, %c1_130, %c3_131] : memref<1x2x506xf32, #tpu.memory_space<vmem>>, vector<1x1x352xf32>
    %316 = vector.shape_cast %315 : vector<1x1x352xf32> to vector<1x352xf32>
    %317 = vector.broadcast %314 : f32 to vector<1x352xf32>
    %318 = arith.mulf %317, %316 : vector<1x352xf32>
    %319 = arith.addf %313, %318 : vector<1x352xf32>
    %c53 = arith.constant 53 : index
    %320 = memref.load %arg1[%c53] : memref<98xf32, #tpu.memory_space<smem>>
    %c0_132 = arith.constant 0 : index
    %c1_133 = arith.constant 1 : index
    %c4_134 = arith.constant 4 : index
    %321 = vector.load %arg3[%c0_132, %c1_133, %c4_134] : memref<1x2x506xf32, #tpu.memory_space<vmem>>, vector<1x1x352xf32>
    %322 = vector.shape_cast %321 : vector<1x1x352xf32> to vector<1x352xf32>
    %323 = vector.broadcast %320 : f32 to vector<1x352xf32>
    %324 = arith.mulf %323, %322 : vector<1x352xf32>
    %325 = arith.addf %319, %324 : vector<1x352xf32>
    %c54 = arith.constant 54 : index
    %326 = memref.load %arg1[%c54] : memref<98xf32, #tpu.memory_space<smem>>
    %c0_135 = arith.constant 0 : index
    %c1_136 = arith.constant 1 : index
    %c5_137 = arith.constant 5 : index
    %327 = vector.load %arg3[%c0_135, %c1_136, %c5_137] : memref<1x2x506xf32, #tpu.memory_space<vmem>>, vector<1x1x352xf32>
    %328 = vector.shape_cast %327 : vector<1x1x352xf32> to vector<1x352xf32>
    %329 = vector.broadcast %326 : f32 to vector<1x352xf32>
    %330 = arith.mulf %329, %328 : vector<1x352xf32>
    %331 = arith.addf %325, %330 : vector<1x352xf32>
    %c55 = arith.constant 55 : index
    %332 = memref.load %arg1[%c55] : memref<98xf32, #tpu.memory_space<smem>>
    %c0_138 = arith.constant 0 : index
    %c1_139 = arith.constant 1 : index
    %c6_140 = arith.constant 6 : index
    %333 = vector.load %arg3[%c0_138, %c1_139, %c6_140] : memref<1x2x506xf32, #tpu.memory_space<vmem>>, vector<1x1x352xf32>
    %334 = vector.shape_cast %333 : vector<1x1x352xf32> to vector<1x352xf32>
    %335 = vector.broadcast %332 : f32 to vector<1x352xf32>
    %336 = arith.mulf %335, %334 : vector<1x352xf32>
    %337 = arith.addf %331, %336 : vector<1x352xf32>
    %c56 = arith.constant 56 : index
    %338 = memref.load %arg1[%c56] : memref<98xf32, #tpu.memory_space<smem>>
    %c0_141 = arith.constant 0 : index
    %c1_142 = arith.constant 1 : index
    %c22_143 = arith.constant 22 : index
    %339 = vector.load %arg3[%c0_141, %c1_142, %c22_143] : memref<1x2x506xf32, #tpu.memory_space<vmem>>, vector<1x1x352xf32>
    %340 = vector.shape_cast %339 : vector<1x1x352xf32> to vector<1x352xf32>
    %341 = vector.broadcast %338 : f32 to vector<1x352xf32>
    %342 = arith.mulf %341, %340 : vector<1x352xf32>
    %343 = arith.addf %337, %342 : vector<1x352xf32>
    %c57 = arith.constant 57 : index
    %344 = memref.load %arg1[%c57] : memref<98xf32, #tpu.memory_space<smem>>
    %c0_144 = arith.constant 0 : index
    %c1_145 = arith.constant 1 : index
    %c23_146 = arith.constant 23 : index
    %345 = vector.load %arg3[%c0_144, %c1_145, %c23_146] : memref<1x2x506xf32, #tpu.memory_space<vmem>>, vector<1x1x352xf32>
    %346 = vector.shape_cast %345 : vector<1x1x352xf32> to vector<1x352xf32>
    %347 = vector.broadcast %344 : f32 to vector<1x352xf32>
    %348 = arith.mulf %347, %346 : vector<1x352xf32>
    %349 = arith.addf %343, %348 : vector<1x352xf32>
    %c58 = arith.constant 58 : index
    %350 = memref.load %arg1[%c58] : memref<98xf32, #tpu.memory_space<smem>>
    %c0_147 = arith.constant 0 : index
    %c1_148 = arith.constant 1 : index
    %c24_149 = arith.constant 24 : index
    %351 = vector.load %arg3[%c0_147, %c1_148, %c24_149] : memref<1x2x506xf32, #tpu.memory_space<vmem>>, vector<1x1x352xf32>
    %352 = vector.shape_cast %351 : vector<1x1x352xf32> to vector<1x352xf32>
    %353 = vector.broadcast %350 : f32 to vector<1x352xf32>
    %354 = arith.mulf %353, %352 : vector<1x352xf32>
    %355 = arith.addf %349, %354 : vector<1x352xf32>
    %c59 = arith.constant 59 : index
    %356 = memref.load %arg1[%c59] : memref<98xf32, #tpu.memory_space<smem>>
    %c0_150 = arith.constant 0 : index
    %c1_151 = arith.constant 1 : index
    %c25_152 = arith.constant 25 : index
    %357 = vector.load %arg3[%c0_150, %c1_151, %c25_152] : memref<1x2x506xf32, #tpu.memory_space<vmem>>, vector<1x1x352xf32>
    %358 = vector.shape_cast %357 : vector<1x1x352xf32> to vector<1x352xf32>
    %359 = vector.broadcast %356 : f32 to vector<1x352xf32>
    %360 = arith.mulf %359, %358 : vector<1x352xf32>
    %361 = arith.addf %355, %360 : vector<1x352xf32>
    %c60 = arith.constant 60 : index
    %362 = memref.load %arg1[%c60] : memref<98xf32, #tpu.memory_space<smem>>
    %c0_153 = arith.constant 0 : index
    %c1_154 = arith.constant 1 : index
    %c26_155 = arith.constant 26 : index
    %363 = vector.load %arg3[%c0_153, %c1_154, %c26_155] : memref<1x2x506xf32, #tpu.memory_space<vmem>>, vector<1x1x352xf32>
    %364 = vector.shape_cast %363 : vector<1x1x352xf32> to vector<1x352xf32>
    %365 = vector.broadcast %362 : f32 to vector<1x352xf32>
    %366 = arith.mulf %365, %364 : vector<1x352xf32>
    %367 = arith.addf %361, %366 : vector<1x352xf32>
    %c61 = arith.constant 61 : index
    %368 = memref.load %arg1[%c61] : memref<98xf32, #tpu.memory_space<smem>>
    %c0_156 = arith.constant 0 : index
    %c1_157 = arith.constant 1 : index
    %c27_158 = arith.constant 27 : index
    %369 = vector.load %arg3[%c0_156, %c1_157, %c27_158] : memref<1x2x506xf32, #tpu.memory_space<vmem>>, vector<1x1x352xf32>
    %370 = vector.shape_cast %369 : vector<1x1x352xf32> to vector<1x352xf32>
    %371 = vector.broadcast %368 : f32 to vector<1x352xf32>
    %372 = arith.mulf %371, %370 : vector<1x352xf32>
    %373 = arith.addf %367, %372 : vector<1x352xf32>
    %c62 = arith.constant 62 : index
    %374 = memref.load %arg1[%c62] : memref<98xf32, #tpu.memory_space<smem>>
    %c0_159 = arith.constant 0 : index
    %c1_160 = arith.constant 1 : index
    %c28_161 = arith.constant 28 : index
    %375 = vector.load %arg3[%c0_159, %c1_160, %c28_161] : memref<1x2x506xf32, #tpu.memory_space<vmem>>, vector<1x1x352xf32>
    %376 = vector.shape_cast %375 : vector<1x1x352xf32> to vector<1x352xf32>
    %377 = vector.broadcast %374 : f32 to vector<1x352xf32>
    %378 = arith.mulf %377, %376 : vector<1x352xf32>
    %379 = arith.addf %373, %378 : vector<1x352xf32>
    %c63 = arith.constant 63 : index
    %380 = memref.load %arg1[%c63] : memref<98xf32, #tpu.memory_space<smem>>
    %c0_162 = arith.constant 0 : index
    %c1_163 = arith.constant 1 : index
    %c44_164 = arith.constant 44 : index
    %381 = vector.load %arg3[%c0_162, %c1_163, %c44_164] : memref<1x2x506xf32, #tpu.memory_space<vmem>>, vector<1x1x352xf32>
    %382 = vector.shape_cast %381 : vector<1x1x352xf32> to vector<1x352xf32>
    %383 = vector.broadcast %380 : f32 to vector<1x352xf32>
    %384 = arith.mulf %383, %382 : vector<1x352xf32>
    %385 = arith.addf %379, %384 : vector<1x352xf32>
    %c64 = arith.constant 64 : index
    %386 = memref.load %arg1[%c64] : memref<98xf32, #tpu.memory_space<smem>>
    %c0_165 = arith.constant 0 : index
    %c1_166 = arith.constant 1 : index
    %c45_167 = arith.constant 45 : index
    %387 = vector.load %arg3[%c0_165, %c1_166, %c45_167] : memref<1x2x506xf32, #tpu.memory_space<vmem>>, vector<1x1x352xf32>
    %388 = vector.shape_cast %387 : vector<1x1x352xf32> to vector<1x352xf32>
    %389 = vector.broadcast %386 : f32 to vector<1x352xf32>
    %390 = arith.mulf %389, %388 : vector<1x352xf32>
    %391 = arith.addf %385, %390 : vector<1x352xf32>
    %c65 = arith.constant 65 : index
    %392 = memref.load %arg1[%c65] : memref<98xf32, #tpu.memory_space<smem>>
    %c0_168 = arith.constant 0 : index
    %c1_169 = arith.constant 1 : index
    %c46_170 = arith.constant 46 : index
    %393 = vector.load %arg3[%c0_168, %c1_169, %c46_170] : memref<1x2x506xf32, #tpu.memory_space<vmem>>, vector<1x1x352xf32>
    %394 = vector.shape_cast %393 : vector<1x1x352xf32> to vector<1x352xf32>
    %395 = vector.broadcast %392 : f32 to vector<1x352xf32>
    %396 = arith.mulf %395, %394 : vector<1x352xf32>
    %397 = arith.addf %391, %396 : vector<1x352xf32>
    %c66_171 = arith.constant 66 : index
    %398 = memref.load %arg1[%c66_171] : memref<98xf32, #tpu.memory_space<smem>>
    %c0_172 = arith.constant 0 : index
    %c1_173 = arith.constant 1 : index
    %c47_174 = arith.constant 47 : index
    %399 = vector.load %arg3[%c0_172, %c1_173, %c47_174] : memref<1x2x506xf32, #tpu.memory_space<vmem>>, vector<1x1x352xf32>
    %400 = vector.shape_cast %399 : vector<1x1x352xf32> to vector<1x352xf32>
    %401 = vector.broadcast %398 : f32 to vector<1x352xf32>
    %402 = arith.mulf %401, %400 : vector<1x352xf32>
    %403 = arith.addf %397, %402 : vector<1x352xf32>
    %c67_175 = arith.constant 67 : index
    %404 = memref.load %arg1[%c67_175] : memref<98xf32, #tpu.memory_space<smem>>
    %c0_176 = arith.constant 0 : index
    %c1_177 = arith.constant 1 : index
    %c48_178 = arith.constant 48 : index
    %405 = vector.load %arg3[%c0_176, %c1_177, %c48_178] : memref<1x2x506xf32, #tpu.memory_space<vmem>>, vector<1x1x352xf32>
    %406 = vector.shape_cast %405 : vector<1x1x352xf32> to vector<1x352xf32>
    %407 = vector.broadcast %404 : f32 to vector<1x352xf32>
    %408 = arith.mulf %407, %406 : vector<1x352xf32>
    %409 = arith.addf %403, %408 : vector<1x352xf32>
    %c68_179 = arith.constant 68 : index
    %410 = memref.load %arg1[%c68_179] : memref<98xf32, #tpu.memory_space<smem>>
    %c0_180 = arith.constant 0 : index
    %c1_181 = arith.constant 1 : index
    %c49_182 = arith.constant 49 : index
    %411 = vector.load %arg3[%c0_180, %c1_181, %c49_182] : memref<1x2x506xf32, #tpu.memory_space<vmem>>, vector<1x1x352xf32>
    %412 = vector.shape_cast %411 : vector<1x1x352xf32> to vector<1x352xf32>
    %413 = vector.broadcast %410 : f32 to vector<1x352xf32>
    %414 = arith.mulf %413, %412 : vector<1x352xf32>
    %415 = arith.addf %409, %414 : vector<1x352xf32>
    %c69_183 = arith.constant 69 : index
    %416 = memref.load %arg1[%c69_183] : memref<98xf32, #tpu.memory_space<smem>>
    %c0_184 = arith.constant 0 : index
    %c1_185 = arith.constant 1 : index
    %c50_186 = arith.constant 50 : index
    %417 = vector.load %arg3[%c0_184, %c1_185, %c50_186] : memref<1x2x506xf32, #tpu.memory_space<vmem>>, vector<1x1x352xf32>
    %418 = vector.shape_cast %417 : vector<1x1x352xf32> to vector<1x352xf32>
    %419 = vector.broadcast %416 : f32 to vector<1x352xf32>
    %420 = arith.mulf %419, %418 : vector<1x352xf32>
    %421 = arith.addf %415, %420 : vector<1x352xf32>
    %c70_187 = arith.constant 70 : index
    %422 = memref.load %arg1[%c70_187] : memref<98xf32, #tpu.memory_space<smem>>
    %c0_188 = arith.constant 0 : index
    %c1_189 = arith.constant 1 : index
    %c66_190 = arith.constant 66 : index
    %423 = vector.load %arg3[%c0_188, %c1_189, %c66_190] : memref<1x2x506xf32, #tpu.memory_space<vmem>>, vector<1x1x352xf32>
    %424 = vector.shape_cast %423 : vector<1x1x352xf32> to vector<1x352xf32>
    %425 = vector.broadcast %422 : f32 to vector<1x352xf32>
    %426 = arith.mulf %425, %424 : vector<1x352xf32>
    %427 = arith.addf %421, %426 : vector<1x352xf32>
    %c71_191 = arith.constant 71 : index
    %428 = memref.load %arg1[%c71_191] : memref<98xf32, #tpu.memory_space<smem>>
    %c0_192 = arith.constant 0 : index
    %c1_193 = arith.constant 1 : index
    %c67_194 = arith.constant 67 : index
    %429 = vector.load %arg3[%c0_192, %c1_193, %c67_194] : memref<1x2x506xf32, #tpu.memory_space<vmem>>, vector<1x1x352xf32>
    %430 = vector.shape_cast %429 : vector<1x1x352xf32> to vector<1x352xf32>
    %431 = vector.broadcast %428 : f32 to vector<1x352xf32>
    %432 = arith.mulf %431, %430 : vector<1x352xf32>
    %433 = arith.addf %427, %432 : vector<1x352xf32>
    %c72_195 = arith.constant 72 : index
    %434 = memref.load %arg1[%c72_195] : memref<98xf32, #tpu.memory_space<smem>>
    %c0_196 = arith.constant 0 : index
    %c1_197 = arith.constant 1 : index
    %c68_198 = arith.constant 68 : index
    %435 = vector.load %arg3[%c0_196, %c1_197, %c68_198] : memref<1x2x506xf32, #tpu.memory_space<vmem>>, vector<1x1x352xf32>
    %436 = vector.shape_cast %435 : vector<1x1x352xf32> to vector<1x352xf32>
    %437 = vector.broadcast %434 : f32 to vector<1x352xf32>
    %438 = arith.mulf %437, %436 : vector<1x352xf32>
    %439 = arith.addf %433, %438 : vector<1x352xf32>
    %c73 = arith.constant 73 : index
    %440 = memref.load %arg1[%c73] : memref<98xf32, #tpu.memory_space<smem>>
    %c0_199 = arith.constant 0 : index
    %c1_200 = arith.constant 1 : index
    %c69_201 = arith.constant 69 : index
    %441 = vector.load %arg3[%c0_199, %c1_200, %c69_201] : memref<1x2x506xf32, #tpu.memory_space<vmem>>, vector<1x1x352xf32>
    %442 = vector.shape_cast %441 : vector<1x1x352xf32> to vector<1x352xf32>
    %443 = vector.broadcast %440 : f32 to vector<1x352xf32>
    %444 = arith.mulf %443, %442 : vector<1x352xf32>
    %445 = arith.addf %439, %444 : vector<1x352xf32>
    %c74 = arith.constant 74 : index
    %446 = memref.load %arg1[%c74] : memref<98xf32, #tpu.memory_space<smem>>
    %c0_202 = arith.constant 0 : index
    %c1_203 = arith.constant 1 : index
    %c70_204 = arith.constant 70 : index
    %447 = vector.load %arg3[%c0_202, %c1_203, %c70_204] : memref<1x2x506xf32, #tpu.memory_space<vmem>>, vector<1x1x352xf32>
    %448 = vector.shape_cast %447 : vector<1x1x352xf32> to vector<1x352xf32>
    %449 = vector.broadcast %446 : f32 to vector<1x352xf32>
    %450 = arith.mulf %449, %448 : vector<1x352xf32>
    %451 = arith.addf %445, %450 : vector<1x352xf32>
    %c75 = arith.constant 75 : index
    %452 = memref.load %arg1[%c75] : memref<98xf32, #tpu.memory_space<smem>>
    %c0_205 = arith.constant 0 : index
    %c1_206 = arith.constant 1 : index
    %c71_207 = arith.constant 71 : index
    %453 = vector.load %arg3[%c0_205, %c1_206, %c71_207] : memref<1x2x506xf32, #tpu.memory_space<vmem>>, vector<1x1x352xf32>
    %454 = vector.shape_cast %453 : vector<1x1x352xf32> to vector<1x352xf32>
    %455 = vector.broadcast %452 : f32 to vector<1x352xf32>
    %456 = arith.mulf %455, %454 : vector<1x352xf32>
    %457 = arith.addf %451, %456 : vector<1x352xf32>
    %c76 = arith.constant 76 : index
    %458 = memref.load %arg1[%c76] : memref<98xf32, #tpu.memory_space<smem>>
    %c0_208 = arith.constant 0 : index
    %c1_209 = arith.constant 1 : index
    %c72_210 = arith.constant 72 : index
    %459 = vector.load %arg3[%c0_208, %c1_209, %c72_210] : memref<1x2x506xf32, #tpu.memory_space<vmem>>, vector<1x1x352xf32>
    %460 = vector.shape_cast %459 : vector<1x1x352xf32> to vector<1x352xf32>
    %461 = vector.broadcast %458 : f32 to vector<1x352xf32>
    %462 = arith.mulf %461, %460 : vector<1x352xf32>
    %463 = arith.addf %457, %462 : vector<1x352xf32>
    %c77 = arith.constant 77 : index
    %464 = memref.load %arg1[%c77] : memref<98xf32, #tpu.memory_space<smem>>
    %c0_211 = arith.constant 0 : index
    %c1_212 = arith.constant 1 : index
    %c88_213 = arith.constant 88 : index
    %465 = vector.load %arg3[%c0_211, %c1_212, %c88_213] : memref<1x2x506xf32, #tpu.memory_space<vmem>>, vector<1x1x352xf32>
    %466 = vector.shape_cast %465 : vector<1x1x352xf32> to vector<1x352xf32>
    %467 = vector.broadcast %464 : f32 to vector<1x352xf32>
    %468 = arith.mulf %467, %466 : vector<1x352xf32>
    %469 = arith.addf %463, %468 : vector<1x352xf32>
    %c78 = arith.constant 78 : index
    %470 = memref.load %arg1[%c78] : memref<98xf32, #tpu.memory_space<smem>>
    %c0_214 = arith.constant 0 : index
    %c1_215 = arith.constant 1 : index
    %c89_216 = arith.constant 89 : index
    %471 = vector.load %arg3[%c0_214, %c1_215, %c89_216] : memref<1x2x506xf32, #tpu.memory_space<vmem>>, vector<1x1x352xf32>
    %472 = vector.shape_cast %471 : vector<1x1x352xf32> to vector<1x352xf32>
    %473 = vector.broadcast %470 : f32 to vector<1x352xf32>
    %474 = arith.mulf %473, %472 : vector<1x352xf32>
    %475 = arith.addf %469, %474 : vector<1x352xf32>
    %c79 = arith.constant 79 : index
    %476 = memref.load %arg1[%c79] : memref<98xf32, #tpu.memory_space<smem>>
    %c0_217 = arith.constant 0 : index
    %c1_218 = arith.constant 1 : index
    %c90_219 = arith.constant 90 : index
    %477 = vector.load %arg3[%c0_217, %c1_218, %c90_219] : memref<1x2x506xf32, #tpu.memory_space<vmem>>, vector<1x1x352xf32>
    %478 = vector.shape_cast %477 : vector<1x1x352xf32> to vector<1x352xf32>
    %479 = vector.broadcast %476 : f32 to vector<1x352xf32>
    %480 = arith.mulf %479, %478 : vector<1x352xf32>
    %481 = arith.addf %475, %480 : vector<1x352xf32>
    %c80 = arith.constant 80 : index
    %482 = memref.load %arg1[%c80] : memref<98xf32, #tpu.memory_space<smem>>
    %c0_220 = arith.constant 0 : index
    %c1_221 = arith.constant 1 : index
    %c91_222 = arith.constant 91 : index
    %483 = vector.load %arg3[%c0_220, %c1_221, %c91_222] : memref<1x2x506xf32, #tpu.memory_space<vmem>>, vector<1x1x352xf32>
    %484 = vector.shape_cast %483 : vector<1x1x352xf32> to vector<1x352xf32>
    %485 = vector.broadcast %482 : f32 to vector<1x352xf32>
    %486 = arith.mulf %485, %484 : vector<1x352xf32>
    %487 = arith.addf %481, %486 : vector<1x352xf32>
    %c81 = arith.constant 81 : index
    %488 = memref.load %arg1[%c81] : memref<98xf32, #tpu.memory_space<smem>>
    %c0_223 = arith.constant 0 : index
    %c1_224 = arith.constant 1 : index
    %c92_225 = arith.constant 92 : index
    %489 = vector.load %arg3[%c0_223, %c1_224, %c92_225] : memref<1x2x506xf32, #tpu.memory_space<vmem>>, vector<1x1x352xf32>
    %490 = vector.shape_cast %489 : vector<1x1x352xf32> to vector<1x352xf32>
    %491 = vector.broadcast %488 : f32 to vector<1x352xf32>
    %492 = arith.mulf %491, %490 : vector<1x352xf32>
    %493 = arith.addf %487, %492 : vector<1x352xf32>
    %c82 = arith.constant 82 : index
    %494 = memref.load %arg1[%c82] : memref<98xf32, #tpu.memory_space<smem>>
    %c0_226 = arith.constant 0 : index
    %c1_227 = arith.constant 1 : index
    %c93_228 = arith.constant 93 : index
    %495 = vector.load %arg3[%c0_226, %c1_227, %c93_228] : memref<1x2x506xf32, #tpu.memory_space<vmem>>, vector<1x1x352xf32>
    %496 = vector.shape_cast %495 : vector<1x1x352xf32> to vector<1x352xf32>
    %497 = vector.broadcast %494 : f32 to vector<1x352xf32>
    %498 = arith.mulf %497, %496 : vector<1x352xf32>
    %499 = arith.addf %493, %498 : vector<1x352xf32>
    %c83 = arith.constant 83 : index
    %500 = memref.load %arg1[%c83] : memref<98xf32, #tpu.memory_space<smem>>
    %c0_229 = arith.constant 0 : index
    %c1_230 = arith.constant 1 : index
    %c94_231 = arith.constant 94 : index
    %501 = vector.load %arg3[%c0_229, %c1_230, %c94_231] : memref<1x2x506xf32, #tpu.memory_space<vmem>>, vector<1x1x352xf32>
    %502 = vector.shape_cast %501 : vector<1x1x352xf32> to vector<1x352xf32>
    %503 = vector.broadcast %500 : f32 to vector<1x352xf32>
    %504 = arith.mulf %503, %502 : vector<1x352xf32>
    %505 = arith.addf %499, %504 : vector<1x352xf32>
    %c84 = arith.constant 84 : index
    %506 = memref.load %arg1[%c84] : memref<98xf32, #tpu.memory_space<smem>>
    %c0_232 = arith.constant 0 : index
    %c1_233 = arith.constant 1 : index
    %c110_234 = arith.constant 110 : index
    %507 = vector.load %arg3[%c0_232, %c1_233, %c110_234] : memref<1x2x506xf32, #tpu.memory_space<vmem>>, vector<1x1x352xf32>
    %508 = vector.shape_cast %507 : vector<1x1x352xf32> to vector<1x352xf32>
    %509 = vector.broadcast %506 : f32 to vector<1x352xf32>
    %510 = arith.mulf %509, %508 : vector<1x352xf32>
    %511 = arith.addf %505, %510 : vector<1x352xf32>
    %c85 = arith.constant 85 : index
    %512 = memref.load %arg1[%c85] : memref<98xf32, #tpu.memory_space<smem>>
    %c0_235 = arith.constant 0 : index
    %c1_236 = arith.constant 1 : index
    %c111_237 = arith.constant 111 : index
    %513 = vector.load %arg3[%c0_235, %c1_236, %c111_237] : memref<1x2x506xf32, #tpu.memory_space<vmem>>, vector<1x1x352xf32>
    %514 = vector.shape_cast %513 : vector<1x1x352xf32> to vector<1x352xf32>
    %515 = vector.broadcast %512 : f32 to vector<1x352xf32>
    %516 = arith.mulf %515, %514 : vector<1x352xf32>
    %517 = arith.addf %511, %516 : vector<1x352xf32>
    %c86 = arith.constant 86 : index
    %518 = memref.load %arg1[%c86] : memref<98xf32, #tpu.memory_space<smem>>
    %c0_238 = arith.constant 0 : index
    %c1_239 = arith.constant 1 : index
    %c112_240 = arith.constant 112 : index
    %519 = vector.load %arg3[%c0_238, %c1_239, %c112_240] : memref<1x2x506xf32, #tpu.memory_space<vmem>>, vector<1x1x352xf32>
    %520 = vector.shape_cast %519 : vector<1x1x352xf32> to vector<1x352xf32>
    %521 = vector.broadcast %518 : f32 to vector<1x352xf32>
    %522 = arith.mulf %521, %520 : vector<1x352xf32>
    %523 = arith.addf %517, %522 : vector<1x352xf32>
    %c87 = arith.constant 87 : index
    %524 = memref.load %arg1[%c87] : memref<98xf32, #tpu.memory_space<smem>>
    %c0_241 = arith.constant 0 : index
    %c1_242 = arith.constant 1 : index
    %c113_243 = arith.constant 113 : index
    %525 = vector.load %arg3[%c0_241, %c1_242, %c113_243] : memref<1x2x506xf32, #tpu.memory_space<vmem>>, vector<1x1x352xf32>
    %526 = vector.shape_cast %525 : vector<1x1x352xf32> to vector<1x352xf32>
    %527 = vector.broadcast %524 : f32 to vector<1x352xf32>
    %528 = arith.mulf %527, %526 : vector<1x352xf32>
    %529 = arith.addf %523, %528 : vector<1x352xf32>
    %c88_244 = arith.constant 88 : index
    %530 = memref.load %arg1[%c88_244] : memref<98xf32, #tpu.memory_space<smem>>
    %c0_245 = arith.constant 0 : index
    %c1_246 = arith.constant 1 : index
    %c114_247 = arith.constant 114 : index
    %531 = vector.load %arg3[%c0_245, %c1_246, %c114_247] : memref<1x2x506xf32, #tpu.memory_space<vmem>>, vector<1x1x352xf32>
    %532 = vector.shape_cast %531 : vector<1x1x352xf32> to vector<1x352xf32>
    %533 = vector.broadcast %530 : f32 to vector<1x352xf32>
    %534 = arith.mulf %533, %532 : vector<1x352xf32>
    %535 = arith.addf %529, %534 : vector<1x352xf32>
    %c89_248 = arith.constant 89 : index
    %536 = memref.load %arg1[%c89_248] : memref<98xf32, #tpu.memory_space<smem>>
    %c0_249 = arith.constant 0 : index
    %c1_250 = arith.constant 1 : index
    %c115_251 = arith.constant 115 : index
    %537 = vector.load %arg3[%c0_249, %c1_250, %c115_251] : memref<1x2x506xf32, #tpu.memory_space<vmem>>, vector<1x1x352xf32>
    %538 = vector.shape_cast %537 : vector<1x1x352xf32> to vector<1x352xf32>
    %539 = vector.broadcast %536 : f32 to vector<1x352xf32>
    %540 = arith.mulf %539, %538 : vector<1x352xf32>
    %541 = arith.addf %535, %540 : vector<1x352xf32>
    %c90_252 = arith.constant 90 : index
    %542 = memref.load %arg1[%c90_252] : memref<98xf32, #tpu.memory_space<smem>>
    %c0_253 = arith.constant 0 : index
    %c1_254 = arith.constant 1 : index
    %c116_255 = arith.constant 116 : index
    %543 = vector.load %arg3[%c0_253, %c1_254, %c116_255] : memref<1x2x506xf32, #tpu.memory_space<vmem>>, vector<1x1x352xf32>
    %544 = vector.shape_cast %543 : vector<1x1x352xf32> to vector<1x352xf32>
    %545 = vector.broadcast %542 : f32 to vector<1x352xf32>
    %546 = arith.mulf %545, %544 : vector<1x352xf32>
    %547 = arith.addf %541, %546 : vector<1x352xf32>
    %c91_256 = arith.constant 91 : index
    %548 = memref.load %arg1[%c91_256] : memref<98xf32, #tpu.memory_space<smem>>
    %c0_257 = arith.constant 0 : index
    %c1_258 = arith.constant 1 : index
    %c132_259 = arith.constant 132 : index
    %549 = vector.load %arg3[%c0_257, %c1_258, %c132_259] : memref<1x2x506xf32, #tpu.memory_space<vmem>>, vector<1x1x352xf32>
    %550 = vector.shape_cast %549 : vector<1x1x352xf32> to vector<1x352xf32>
    %551 = vector.broadcast %548 : f32 to vector<1x352xf32>
    %552 = arith.mulf %551, %550 : vector<1x352xf32>
    %553 = arith.addf %547, %552 : vector<1x352xf32>
    %c92_260 = arith.constant 92 : index
    %554 = memref.load %arg1[%c92_260] : memref<98xf32, #tpu.memory_space<smem>>
    %c0_261 = arith.constant 0 : index
    %c1_262 = arith.constant 1 : index
    %c133_263 = arith.constant 133 : index
    %555 = vector.load %arg3[%c0_261, %c1_262, %c133_263] : memref<1x2x506xf32, #tpu.memory_space<vmem>>, vector<1x1x352xf32>
    %556 = vector.shape_cast %555 : vector<1x1x352xf32> to vector<1x352xf32>
    %557 = vector.broadcast %554 : f32 to vector<1x352xf32>
    %558 = arith.mulf %557, %556 : vector<1x352xf32>
    %559 = arith.addf %553, %558 : vector<1x352xf32>
    %c93_264 = arith.constant 93 : index
    %560 = memref.load %arg1[%c93_264] : memref<98xf32, #tpu.memory_space<smem>>
    %c0_265 = arith.constant 0 : index
    %c1_266 = arith.constant 1 : index
    %c134_267 = arith.constant 134 : index
    %561 = vector.load %arg3[%c0_265, %c1_266, %c134_267] : memref<1x2x506xf32, #tpu.memory_space<vmem>>, vector<1x1x352xf32>
    %562 = vector.shape_cast %561 : vector<1x1x352xf32> to vector<1x352xf32>
    %563 = vector.broadcast %560 : f32 to vector<1x352xf32>
    %564 = arith.mulf %563, %562 : vector<1x352xf32>
    %565 = arith.addf %559, %564 : vector<1x352xf32>
    %c94_268 = arith.constant 94 : index
    %566 = memref.load %arg1[%c94_268] : memref<98xf32, #tpu.memory_space<smem>>
    %c0_269 = arith.constant 0 : index
    %c1_270 = arith.constant 1 : index
    %c135_271 = arith.constant 135 : index
    %567 = vector.load %arg3[%c0_269, %c1_270, %c135_271] : memref<1x2x506xf32, #tpu.memory_space<vmem>>, vector<1x1x352xf32>
    %568 = vector.shape_cast %567 : vector<1x1x352xf32> to vector<1x352xf32>
    %569 = vector.broadcast %566 : f32 to vector<1x352xf32>
    %570 = arith.mulf %569, %568 : vector<1x352xf32>
    %571 = arith.addf %565, %570 : vector<1x352xf32>
    %c95 = arith.constant 95 : index
    %572 = memref.load %arg1[%c95] : memref<98xf32, #tpu.memory_space<smem>>
    %c0_272 = arith.constant 0 : index
    %c1_273 = arith.constant 1 : index
    %c136_274 = arith.constant 136 : index
    %573 = vector.load %arg3[%c0_272, %c1_273, %c136_274] : memref<1x2x506xf32, #tpu.memory_space<vmem>>, vector<1x1x352xf32>
    %574 = vector.shape_cast %573 : vector<1x1x352xf32> to vector<1x352xf32>
    %575 = vector.broadcast %572 : f32 to vector<1x352xf32>
    %576 = arith.mulf %575, %574 : vector<1x352xf32>
    %577 = arith.addf %571, %576 : vector<1x352xf32>
    %c96 = arith.constant 96 : index
    %578 = memref.load %arg1[%c96] : memref<98xf32, #tpu.memory_space<smem>>
    %c0_275 = arith.constant 0 : index
    %c1_276 = arith.constant 1 : index
    %c137_277 = arith.constant 137 : index
    %579 = vector.load %arg3[%c0_275, %c1_276, %c137_277] : memref<1x2x506xf32, #tpu.memory_space<vmem>>, vector<1x1x352xf32>
    %580 = vector.shape_cast %579 : vector<1x1x352xf32> to vector<1x352xf32>
    %581 = vector.broadcast %578 : f32 to vector<1x352xf32>
    %582 = arith.mulf %581, %580 : vector<1x352xf32>
    %583 = arith.addf %577, %582 : vector<1x352xf32>
    %c97 = arith.constant 97 : index
    %584 = memref.load %arg1[%c97] : memref<98xf32, #tpu.memory_space<smem>>
    %c0_278 = arith.constant 0 : index
    %c1_279 = arith.constant 1 : index
    %c138_280 = arith.constant 138 : index
    %585 = vector.load %arg3[%c0_278, %c1_279, %c138_280] : memref<1x2x506xf32, #tpu.memory_space<vmem>>, vector<1x1x352xf32>
    %586 = vector.shape_cast %585 : vector<1x1x352xf32> to vector<1x352xf32>
    %587 = vector.broadcast %584 : f32 to vector<1x352xf32>
    %588 = arith.mulf %587, %586 : vector<1x352xf32>
    %589 = arith.addf %583, %588 : vector<1x352xf32>
    %590 = vector.extract_strided_slice %589 {offsets = [0, 0], sizes = [1, 16], strides = [1, 1]} : vector<1x352xf32> to vector<1x16xf32>
    %c0_281 = arith.constant 0 : index
    %c0_282 = arith.constant 0 : index
    %c0_283 = arith.constant 0 : index
    %591 = vector.load %arg4[%c0_281, %c0_282, %c0_283] : memref<1x1x256xf32, #tpu.memory_space<vmem>>, vector<1x1x16xf32>
    %592 = vector.shape_cast %591 : vector<1x1x16xf32> to vector<1x16xf32>
    %593 = vector.shape_cast %590 : vector<1x16xf32> to vector<1x1x16xf32>
    tpu.vector_store %arg4[%c0_281, %c0_282, %c0_283], %593 {strides = array<i32>} : memref<1x1x256xf32, #tpu.memory_space<vmem>>, vector<1x1x16xf32>,
    %594 = vector.extract_strided_slice %589 {offsets = [0, 22], sizes = [1, 16], strides = [1, 1]} : vector<1x352xf32> to vector<1x16xf32>
    %c0_284 = arith.constant 0 : index
    %c0_285 = arith.constant 0 : index
    %c16_286 = arith.constant 16 : index
    %595 = vector.load %arg4[%c0_284, %c0_285, %c16_286] : memref<1x1x256xf32, #tpu.memory_space<vmem>>, vector<1x1x16xf32>
    %596 = vector.shape_cast %595 : vector<1x1x16xf32> to vector<1x16xf32>
    %597 = vector.shape_cast %594 : vector<1x16xf32> to vector<1x1x16xf32>
    tpu.vector_store %arg4[%c0_284, %c0_285, %c16_286], %597 {strides = array<i32>} : memref<1x1x256xf32, #tpu.memory_space<vmem>>, vector<1x1x16xf32>,
    %598 = vector.extract_strided_slice %589 {offsets = [0, 44], sizes = [1, 16], strides = [1, 1]} : vector<1x352xf32> to vector<1x16xf32>
    %c0_287 = arith.constant 0 : index
    %c0_288 = arith.constant 0 : index
    %c32_289 = arith.constant 32 : index
    %599 = vector.load %arg4[%c0_287, %c0_288, %c32_289] : memref<1x1x256xf32, #tpu.memory_space<vmem>>, vector<1x1x16xf32>
    %600 = vector.shape_cast %599 : vector<1x1x16xf32> to vector<1x16xf32>
    %601 = vector.shape_cast %598 : vector<1x16xf32> to vector<1x1x16xf32>
    tpu.vector_store %arg4[%c0_287, %c0_288, %c32_289], %601 {strides = array<i32>} : memref<1x1x256xf32, #tpu.memory_space<vmem>>, vector<1x1x16xf32>,
    %602 = vector.extract_strided_slice %589 {offsets = [0, 66], sizes = [1, 16], strides = [1, 1]} : vector<1x352xf32> to vector<1x16xf32>
    %c0_290 = arith.constant 0 : index
    %c0_291 = arith.constant 0 : index
    %c48_292 = arith.constant 48 : index
    %603 = vector.load %arg4[%c0_290, %c0_291, %c48_292] : memref<1x1x256xf32, #tpu.memory_space<vmem>>, vector<1x1x16xf32>
    %604 = vector.shape_cast %603 : vector<1x1x16xf32> to vector<1x16xf32>
    %605 = vector.shape_cast %602 : vector<1x16xf32> to vector<1x1x16xf32>
    tpu.vector_store %arg4[%c0_290, %c0_291, %c48_292], %605 {strides = array<i32>} : memref<1x1x256xf32, #tpu.memory_space<vmem>>, vector<1x1x16xf32>,
    %606 = vector.extract_strided_slice %589 {offsets = [0, 88], sizes = [1, 16], strides = [1, 1]} : vector<1x352xf32> to vector<1x16xf32>
    %c0_293 = arith.constant 0 : index
    %c0_294 = arith.constant 0 : index
    %c64_295 = arith.constant 64 : index
    %607 = vector.load %arg4[%c0_293, %c0_294, %c64_295] : memref<1x1x256xf32, #tpu.memory_space<vmem>>, vector<1x1x16xf32>
    %608 = vector.shape_cast %607 : vector<1x1x16xf32> to vector<1x16xf32>
    %609 = vector.shape_cast %606 : vector<1x16xf32> to vector<1x1x16xf32>
    tpu.vector_store %arg4[%c0_293, %c0_294, %c64_295], %609 {strides = array<i32>} : memref<1x1x256xf32, #tpu.memory_space<vmem>>, vector<1x1x16xf32>,
    %610 = vector.extract_strided_slice %589 {offsets = [0, 110], sizes = [1, 16], strides = [1, 1]} : vector<1x352xf32> to vector<1x16xf32>
    %c0_296 = arith.constant 0 : index
    %c0_297 = arith.constant 0 : index
    %c80_298 = arith.constant 80 : index
    %611 = vector.load %arg4[%c0_296, %c0_297, %c80_298] : memref<1x1x256xf32, #tpu.memory_space<vmem>>, vector<1x1x16xf32>
    %612 = vector.shape_cast %611 : vector<1x1x16xf32> to vector<1x16xf32>
    %613 = vector.shape_cast %610 : vector<1x16xf32> to vector<1x1x16xf32>
    tpu.vector_store %arg4[%c0_296, %c0_297, %c80_298], %613 {strides = array<i32>} : memref<1x1x256xf32, #tpu.memory_space<vmem>>, vector<1x1x16xf32>,
    %614 = vector.extract_strided_slice %589 {offsets = [0, 132], sizes = [1, 16], strides = [1, 1]} : vector<1x352xf32> to vector<1x16xf32>
    %c0_299 = arith.constant 0 : index
    %c0_300 = arith.constant 0 : index
    %c96_301 = arith.constant 96 : index
    %615 = vector.load %arg4[%c0_299, %c0_300, %c96_301] : memref<1x1x256xf32, #tpu.memory_space<vmem>>, vector<1x1x16xf32>
    %616 = vector.shape_cast %615 : vector<1x1x16xf32> to vector<1x16xf32>
    %617 = vector.shape_cast %614 : vector<1x16xf32> to vector<1x1x16xf32>
    tpu.vector_store %arg4[%c0_299, %c0_300, %c96_301], %617 {strides = array<i32>} : memref<1x1x256xf32, #tpu.memory_space<vmem>>, vector<1x1x16xf32>,
    %618 = vector.extract_strided_slice %589 {offsets = [0, 154], sizes = [1, 16], strides = [1, 1]} : vector<1x352xf32> to vector<1x16xf32>
    %c0_302 = arith.constant 0 : index
    %c0_303 = arith.constant 0 : index
    %c112_304 = arith.constant 112 : index
    %619 = vector.load %arg4[%c0_302, %c0_303, %c112_304] : memref<1x1x256xf32, #tpu.memory_space<vmem>>, vector<1x1x16xf32>
    %620 = vector.shape_cast %619 : vector<1x1x16xf32> to vector<1x16xf32>
    %621 = vector.shape_cast %618 : vector<1x16xf32> to vector<1x1x16xf32>
    tpu.vector_store %arg4[%c0_302, %c0_303, %c112_304], %621 {strides = array<i32>} : memref<1x1x256xf32, #tpu.memory_space<vmem>>, vector<1x1x16xf32>,
    %622 = vector.extract_strided_slice %589 {offsets = [0, 176], sizes = [1, 16], strides = [1, 1]} : vector<1x352xf32> to vector<1x16xf32>
    %c0_305 = arith.constant 0 : index
    %c0_306 = arith.constant 0 : index
    %c128 = arith.constant 128 : index
    %623 = vector.load %arg4[%c0_305, %c0_306, %c128] : memref<1x1x256xf32, #tpu.memory_space<vmem>>, vector<1x1x16xf32>
    %624 = vector.shape_cast %623 : vector<1x1x16xf32> to vector<1x16xf32>
    %625 = vector.shape_cast %622 : vector<1x16xf32> to vector<1x1x16xf32>
    tpu.vector_store %arg4[%c0_305, %c0_306, %c128], %625 {strides = array<i32>} : memref<1x1x256xf32, #tpu.memory_space<vmem>>, vector<1x1x16xf32>,
    %626 = vector.extract_strided_slice %589 {offsets = [0, 198], sizes = [1, 16], strides = [1, 1]} : vector<1x352xf32> to vector<1x16xf32>
    %c0_307 = arith.constant 0 : index
    %c0_308 = arith.constant 0 : index
    %c144 = arith.constant 144 : index
    %627 = vector.load %arg4[%c0_307, %c0_308, %c144] : memref<1x1x256xf32, #tpu.memory_space<vmem>>, vector<1x1x16xf32>
    %628 = vector.shape_cast %627 : vector<1x1x16xf32> to vector<1x16xf32>
    %629 = vector.shape_cast %626 : vector<1x16xf32> to vector<1x1x16xf32>
    tpu.vector_store %arg4[%c0_307, %c0_308, %c144], %629 {strides = array<i32>} : memref<1x1x256xf32, #tpu.memory_space<vmem>>, vector<1x1x16xf32>,
    %630 = vector.extract_strided_slice %589 {offsets = [0, 220], sizes = [1, 16], strides = [1, 1]} : vector<1x352xf32> to vector<1x16xf32>
    %c0_309 = arith.constant 0 : index
    %c0_310 = arith.constant 0 : index
    %c160 = arith.constant 160 : index
    %631 = vector.load %arg4[%c0_309, %c0_310, %c160] : memref<1x1x256xf32, #tpu.memory_space<vmem>>, vector<1x1x16xf32>
    %632 = vector.shape_cast %631 : vector<1x1x16xf32> to vector<1x16xf32>
    %633 = vector.shape_cast %630 : vector<1x16xf32> to vector<1x1x16xf32>
    tpu.vector_store %arg4[%c0_309, %c0_310, %c160], %633 {strides = array<i32>} : memref<1x1x256xf32, #tpu.memory_space<vmem>>, vector<1x1x16xf32>,
    %634 = vector.extract_strided_slice %589 {offsets = [0, 242], sizes = [1, 16], strides = [1, 1]} : vector<1x352xf32> to vector<1x16xf32>
    %c0_311 = arith.constant 0 : index
    %c0_312 = arith.constant 0 : index
    %c176 = arith.constant 176 : index
    %635 = vector.load %arg4[%c0_311, %c0_312, %c176] : memref<1x1x256xf32, #tpu.memory_space<vmem>>, vector<1x1x16xf32>
    %636 = vector.shape_cast %635 : vector<1x1x16xf32> to vector<1x16xf32>
    %637 = vector.shape_cast %634 : vector<1x16xf32> to vector<1x1x16xf32>
    tpu.vector_store %arg4[%c0_311, %c0_312, %c176], %637 {strides = array<i32>} : memref<1x1x256xf32, #tpu.memory_space<vmem>>, vector<1x1x16xf32>,
    %638 = vector.extract_strided_slice %589 {offsets = [0, 264], sizes = [1, 16], strides = [1, 1]} : vector<1x352xf32> to vector<1x16xf32>
    %c0_313 = arith.constant 0 : index
    %c0_314 = arith.constant 0 : index
    %c192 = arith.constant 192 : index
    %639 = vector.load %arg4[%c0_313, %c0_314, %c192] : memref<1x1x256xf32, #tpu.memory_space<vmem>>, vector<1x1x16xf32>
    %640 = vector.shape_cast %639 : vector<1x1x16xf32> to vector<1x16xf32>
    %641 = vector.shape_cast %638 : vector<1x16xf32> to vector<1x1x16xf32>
    tpu.vector_store %arg4[%c0_313, %c0_314, %c192], %641 {strides = array<i32>} : memref<1x1x256xf32, #tpu.memory_space<vmem>>, vector<1x1x16xf32>,
    %642 = vector.extract_strided_slice %589 {offsets = [0, 286], sizes = [1, 16], strides = [1, 1]} : vector<1x352xf32> to vector<1x16xf32>
    %c0_315 = arith.constant 0 : index
    %c0_316 = arith.constant 0 : index
    %c208 = arith.constant 208 : index
    %643 = vector.load %arg4[%c0_315, %c0_316, %c208] : memref<1x1x256xf32, #tpu.memory_space<vmem>>, vector<1x1x16xf32>
    %644 = vector.shape_cast %643 : vector<1x1x16xf32> to vector<1x16xf32>
    %645 = vector.shape_cast %642 : vector<1x16xf32> to vector<1x1x16xf32>
    tpu.vector_store %arg4[%c0_315, %c0_316, %c208], %645 {strides = array<i32>} : memref<1x1x256xf32, #tpu.memory_space<vmem>>, vector<1x1x16xf32>,
    %646 = vector.extract_strided_slice %589 {offsets = [0, 308], sizes = [1, 16], strides = [1, 1]} : vector<1x352xf32> to vector<1x16xf32>
    %c0_317 = arith.constant 0 : index
    %c0_318 = arith.constant 0 : index
    %c224 = arith.constant 224 : index
    %647 = vector.load %arg4[%c0_317, %c0_318, %c224] : memref<1x1x256xf32, #tpu.memory_space<vmem>>, vector<1x1x16xf32>
    %648 = vector.shape_cast %647 : vector<1x1x16xf32> to vector<1x16xf32>
    %649 = vector.shape_cast %646 : vector<1x16xf32> to vector<1x1x16xf32>
    tpu.vector_store %arg4[%c0_317, %c0_318, %c224], %649 {strides = array<i32>} : memref<1x1x256xf32, #tpu.memory_space<vmem>>, vector<1x1x16xf32>,
    %650 = vector.extract_strided_slice %589 {offsets = [0, 330], sizes = [1, 16], strides = [1, 1]} : vector<1x352xf32> to vector<1x16xf32>
    %c0_319 = arith.constant 0 : index
    %c0_320 = arith.constant 0 : index
    %c240 = arith.constant 240 : index
    %651 = vector.load %arg4[%c0_319, %c0_320, %c240] : memref<1x1x256xf32, #tpu.memory_space<vmem>>, vector<1x1x16xf32>
    %652 = vector.shape_cast %651 : vector<1x1x16xf32> to vector<1x16xf32>
    %653 = vector.shape_cast %650 : vector<1x16xf32> to vector<1x1x16xf32>
    tpu.vector_store %arg4[%c0_319, %c0_320, %c240], %653 {strides = array<i32>} : memref<1x1x256xf32, #tpu.memory_space<vmem>>, vector<1x1x16xf32>,
    return
  }
  func.func @transform_0(%arg0: i32) -> i32 {
    %c0_i32 = arith.constant 0 : i32
    %c0_i32_0 = arith.constant 0 : i32
    return %c0_i32 : i32
  }
  func.func @transform_1(%arg0: i32) -> i32 {
    %c0_i32 = arith.constant 0 : i32
    %c0_i32_0 = arith.constant 0 : i32
    return %c0_i32 : i32
  }
  func.func @transform_2(%arg0: i32) -> (i32, i32, i32) {
    %c0_i32 = arith.constant 0 : i32
    %c0_i32_0 = arith.constant 0 : i32
    %c0_i32_1 = arith.constant 0 : i32
    return %arg0, %c0_i32, %c0_i32_0 : i32, i32, i32
  }
  func.func @transform_3(%arg0: i32) -> (i32, i32, i32) {
    %c0_i32 = arith.constant 0 : i32
    %c0_i32_0 = arith.constant 0 : i32
    %c0_i32_1 = arith.constant 0 : i32
    return %arg0, %c0_i32, %c0_i32_0 : i32, i32, i32
  }
}

module attributes {stable_mosaic.version = 11 : i64} {
  func.func @kernel(%arg0: i32, %arg1: memref<2x32xf32, #tpu.memory_space<vmem>>, %arg2: memref<32x4xf32, #tpu.memory_space<vmem>>, %arg3: memref<1x4xf32, #tpu.memory_space<vmem>>, %arg4: memref<4x32xf32, #tpu.memory_space<vmem>>, %arg5: memref<1x32xf32, #tpu.memory_space<vmem>>, %arg6: memref<1x32xf32, #tpu.memory_space<vmem>>, %arg7: memref<1x32xf32, #tpu.memory_space<vmem>>, %arg8: memref<2x32xf32, #tpu.memory_space<vmem>>) attributes {dimension_semantics = [#tpu.dimension_semantics<arbitrary>], iteration_bounds = array<i64: 1>, scalar_prefetch = 0 : i64, scratch_operands = 0 : i64, tpu.core_type = #tpu.core_type<tc>, window_params = [{pipeline_mode = #tpu.pipeline_mode<synchronous>, transform_indices = @transform_0, window_bounds = array<i64: 2, 32>}, {pipeline_mode = #tpu.pipeline_mode<synchronous>, transform_indices = @transform_1, window_bounds = array<i64: 32, 4>}, {pipeline_mode = #tpu.pipeline_mode<synchronous>, transform_indices = @transform_2, window_bounds = array<i64: 1, 4>}, {pipeline_mode = #tpu.pipeline_mode<synchronous>, transform_indices = @transform_3, window_bounds = array<i64: 4, 32>}, {pipeline_mode = #tpu.pipeline_mode<synchronous>, transform_indices = @transform_4, window_bounds = array<i64: 1, 32>}, {pipeline_mode = #tpu.pipeline_mode<synchronous>, transform_indices = @transform_5, window_bounds = array<i64: 1, 32>}, {pipeline_mode = #tpu.pipeline_mode<synchronous>, transform_indices = @transform_6, window_bounds = array<i64: 1, 32>}, {pipeline_mode = #tpu.pipeline_mode<synchronous>, transform_indices = @transform_7, window_bounds = array<i64: 2, 32>}]} {
    %c0 = arith.constant 0 : index
    %c0_0 = arith.constant 0 : index
    %0 = vector.load %arg1[%c0, %c0_0] : memref<2x32xf32, #tpu.memory_space<vmem>>, vector<2x32xf32>
    %c0_1 = arith.constant 0 : index
    %c0_2 = arith.constant 0 : index
    %1 = vector.load %arg2[%c0_1, %c0_2] : memref<32x4xf32, #tpu.memory_space<vmem>>, vector<32x4xf32>
    %cst = arith.constant dense<0.000000e+00> : vector<2x4xf32>
    %2 = tpu.matmul %0, %1, %cst {dimension_numbers = #tpu.dot_dimension_numbers<[1], [0], [0], [1], [0, 0, 1, 1], [], []>} : vector<2x32xf32>, vector<32x4xf32>, vector<2x4xf32> -> vector<2x4xf32>
    %c0_3 = arith.constant 0 : index
    %c0_4 = arith.constant 0 : index
    %3 = vector.load %arg3[%c0_3, %c0_4] : memref<1x4xf32, #tpu.memory_space<vmem>>, vector<1x4xf32>
    %4 = vector.broadcast %3 : vector<1x4xf32> to vector<2x4xf32>
    %5 = arith.addf %2, %4 : vector<2x4xf32>
    %cst_5 = arith.constant 0.000000e+00 : f32
    %6 = vector.broadcast %cst_5 : f32 to vector<2x4xf32>
    %7 = arith.maximumf %5, %6 : vector<2x4xf32>
    %c0_6 = arith.constant 0 : index
    %c0_7 = arith.constant 0 : index
    %8 = vector.load %arg4[%c0_6, %c0_7] : memref<4x32xf32, #tpu.memory_space<vmem>>, vector<4x32xf32>
    %cst_8 = arith.constant dense<0.000000e+00> : vector<2x32xf32>
    %9 = tpu.matmul %7, %8, %cst_8 {dimension_numbers = #tpu.dot_dimension_numbers<[1], [0], [0], [1], [0, 0, 1, 1], [], []>} : vector<2x4xf32>, vector<4x32xf32>, vector<2x32xf32> -> vector<2x32xf32>
    %c0_9 = arith.constant 0 : index
    %c0_10 = arith.constant 0 : index
    %10 = vector.load %arg5[%c0_9, %c0_10] : memref<1x32xf32, #tpu.memory_space<vmem>>, vector<1x32xf32>
    %11 = vector.broadcast %10 : vector<1x32xf32> to vector<2x32xf32>
    %12 = arith.addf %9, %11 : vector<2x32xf32>
    %c0_11 = arith.constant 0 : index
    %c0_12 = arith.constant 0 : index
    %13 = vector.load %arg7[%c0_11, %c0_12] : memref<1x32xf32, #tpu.memory_space<vmem>>, vector<1x32xf32>
    %c0_13 = arith.constant 0 : index
    %c0_14 = arith.constant 0 : index
    %14 = vector.load %arg6[%c0_13, %c0_14] : memref<1x32xf32, #tpu.memory_space<vmem>>, vector<1x32xf32>
    %15 = vector.broadcast %14 : vector<1x32xf32> to vector<2x32xf32>
    %16 = arith.mulf %12, %15 : vector<2x32xf32>
    %17 = vector.broadcast %13 : vector<1x32xf32> to vector<2x32xf32>
    %18 = arith.addf %17, %16 : vector<2x32xf32>
    %c0_15 = arith.constant 0 : index
    %c0_16 = arith.constant 0 : index
    %19 = vector.load %arg8[%c0_15, %c0_16] : memref<2x32xf32, #tpu.memory_space<vmem>>, vector<2x32xf32>
    tpu.vector_store %arg8[%c0_15, %c0_16], %18 {strides = array<i32>} : memref<2x32xf32, #tpu.memory_space<vmem>>, vector<2x32xf32>,
    return
  }
  func.func @transform_0(%arg0: i32) -> (i32, i32) {
    %c0_i32 = arith.constant 0 : i32
    %c0_i32_0 = arith.constant 0 : i32
    %c0_i32_1 = arith.constant 0 : i32
    return %c0_i32, %c0_i32_0 : i32, i32
  }
  func.func @transform_1(%arg0: i32) -> (i32, i32) {
    %c0_i32 = arith.constant 0 : i32
    %c0_i32_0 = arith.constant 0 : i32
    %c0_i32_1 = arith.constant 0 : i32
    return %c0_i32, %c0_i32_0 : i32, i32
  }
  func.func @transform_2(%arg0: i32) -> (i32, i32) {
    %c0_i32 = arith.constant 0 : i32
    %c0_i32_0 = arith.constant 0 : i32
    %c0_i32_1 = arith.constant 0 : i32
    return %c0_i32, %c0_i32_0 : i32, i32
  }
  func.func @transform_3(%arg0: i32) -> (i32, i32) {
    %c0_i32 = arith.constant 0 : i32
    %c0_i32_0 = arith.constant 0 : i32
    %c0_i32_1 = arith.constant 0 : i32
    return %c0_i32, %c0_i32_0 : i32, i32
  }
  func.func @transform_4(%arg0: i32) -> (i32, i32) {
    %c0_i32 = arith.constant 0 : i32
    %c0_i32_0 = arith.constant 0 : i32
    %c0_i32_1 = arith.constant 0 : i32
    return %c0_i32, %c0_i32_0 : i32, i32
  }
  func.func @transform_5(%arg0: i32) -> (i32, i32) {
    %c0_i32 = arith.constant 0 : i32
    %c0_i32_0 = arith.constant 0 : i32
    %c0_i32_1 = arith.constant 0 : i32
    return %c0_i32, %c0_i32_0 : i32, i32
  }
  func.func @transform_6(%arg0: i32) -> (i32, i32) {
    %c0_i32 = arith.constant 0 : i32
    %c0_i32_0 = arith.constant 0 : i32
    %c0_i32_1 = arith.constant 0 : i32
    return %c0_i32, %c0_i32_0 : i32, i32
  }
  func.func @transform_7(%arg0: i32) -> (i32, i32) {
    %c0_i32 = arith.constant 0 : i32
    %c0_i32_0 = arith.constant 0 : i32
    %c0_i32_1 = arith.constant 0 : i32
    return %c0_i32, %c0_i32_0 : i32, i32
  }
}

module attributes {stable_mosaic.version = 11 : i64} {
  func.func @kernel(%arg0: i32, %arg1: memref<1x32x1xf32, #tpu.memory_space<vmem>>, %arg2: memref<32x49xf32, #tpu.memory_space<vmem>>, %arg3: memref<32x49xf32, #tpu.memory_space<vmem>>, %arg4: memref<32x32xf32, #tpu.memory_space<vmem>>, %arg5: memref<32x1xf32, #tpu.memory_space<vmem>>, %arg6: memref<1x32x506xf32, #tpu.memory_space<vmem>>, %arg7: memref<1x1x506xf32, #tpu.memory_space<vmem>>, %arg8: memref<1x32x256xf32, #tpu.memory_space<vmem>>, %arg9: memref<1x32x256xf32, #tpu.memory_space<vmem>>, %arg10: memref<1x32x256xf32, #tpu.memory_space<vmem>>, %arg11: memref<32x256xf32, #tpu.memory_space<vmem>>) attributes {dimension_semantics = [#tpu.dimension_semantics<parallel>], iteration_bounds = array<i64: 2>, scalar_prefetch = 0 : i64, scratch_operands = 1 : i64, tpu.core_type = #tpu.core_type<tc>, window_params = [{transform_indices = @transform_0, window_bounds = array<i64: 1, 32, 1>}, {pipeline_mode = #tpu.pipeline_mode<synchronous>, transform_indices = @transform_1, window_bounds = array<i64: 32, 49>}, {pipeline_mode = #tpu.pipeline_mode<synchronous>, transform_indices = @transform_2, window_bounds = array<i64: 32, 49>}, {pipeline_mode = #tpu.pipeline_mode<synchronous>, transform_indices = @transform_3, window_bounds = array<i64: 32, 32>}, {pipeline_mode = #tpu.pipeline_mode<synchronous>, transform_indices = @transform_4, window_bounds = array<i64: 32, 1>}, {transform_indices = @transform_5, window_bounds = array<i64: 1, 32, 506>}, {transform_indices = @transform_6, window_bounds = array<i64: 1, 1, 506>}, {transform_indices = @transform_7, window_bounds = array<i64: 1, 32, 256>}, {transform_indices = @transform_8, window_bounds = array<i64: 1, 32, 256>}, {transform_indices = @transform_9, window_bounds = array<i64: 1, 32, 256>}]} {
    %cst = arith.constant 0.000000e+00 : f32
    %0 = vector.broadcast %cst : f32 to vector<32x352xf32>
    %c0 = arith.constant 0 : index
    %c0_0 = arith.constant 0 : index
    %1 = vector.load %arg2[%c0, %c0_0] : memref<32x49xf32, #tpu.memory_space<vmem>>, vector<32x1xf32>
    %c0_1 = arith.constant 0 : index
    %c0_2 = arith.constant 0 : index
    %c0_3 = arith.constant 0 : index
    %2 = vector.load %arg6[%c0_1, %c0_2, %c0_3] : memref<1x32x506xf32, #tpu.memory_space<vmem>>, vector<1x32x352xf32>
    %3 = vector.shape_cast %2 : vector<1x32x352xf32> to vector<32x352xf32>
    %4 = vector.broadcast %1 : vector<32x1xf32> to vector<32x352xf32>
    %5 = arith.mulf %4, %3 : vector<32x352xf32>
    %6 = arith.addf %0, %5 : vector<32x352xf32>
    %c0_4 = arith.constant 0 : index
    %c0_5 = arith.constant 0 : index
    %7 = vector.load %arg3[%c0_4, %c0_5] : memref<32x49xf32, #tpu.memory_space<vmem>>, vector<32x1xf32>
    %c0_6 = arith.constant 0 : index
    %c0_7 = arith.constant 0 : index
    %c0_8 = arith.constant 0 : index
    %8 = vector.load %arg7[%c0_6, %c0_7, %c0_8] : memref<1x1x506xf32, #tpu.memory_space<vmem>>, vector<1x1x352xf32>
    %9 = vector.shape_cast %8 : vector<1x1x352xf32> to vector<1x352xf32>
    %10 = vector.broadcast %7 : vector<32x1xf32> to vector<32x352xf32>
    %11 = vector.broadcast %9 : vector<1x352xf32> to vector<32x352xf32>
    %12 = arith.mulf %10, %11 : vector<32x352xf32>
    %13 = arith.addf %6, %12 : vector<32x352xf32>
    %c0_9 = arith.constant 0 : index
    %c1 = arith.constant 1 : index
    %14 = vector.load %arg2[%c0_9, %c1] : memref<32x49xf32, #tpu.memory_space<vmem>>, vector<32x1xf32>
    %c0_10 = arith.constant 0 : index
    %c0_11 = arith.constant 0 : index
    %c1_12 = arith.constant 1 : index
    %15 = vector.load %arg6[%c0_10, %c0_11, %c1_12] : memref<1x32x506xf32, #tpu.memory_space<vmem>>, vector<1x32x352xf32>
    %16 = vector.shape_cast %15 : vector<1x32x352xf32> to vector<32x352xf32>
    %17 = vector.broadcast %14 : vector<32x1xf32> to vector<32x352xf32>
    %18 = arith.mulf %17, %16 : vector<32x352xf32>
    %19 = arith.addf %13, %18 : vector<32x352xf32>
    %c0_13 = arith.constant 0 : index
    %c1_14 = arith.constant 1 : index
    %20 = vector.load %arg3[%c0_13, %c1_14] : memref<32x49xf32, #tpu.memory_space<vmem>>, vector<32x1xf32>
    %c0_15 = arith.constant 0 : index
    %c0_16 = arith.constant 0 : index
    %c1_17 = arith.constant 1 : index
    %21 = vector.load %arg7[%c0_15, %c0_16, %c1_17] : memref<1x1x506xf32, #tpu.memory_space<vmem>>, vector<1x1x352xf32>
    %22 = vector.shape_cast %21 : vector<1x1x352xf32> to vector<1x352xf32>
    %23 = vector.broadcast %20 : vector<32x1xf32> to vector<32x352xf32>
    %24 = vector.broadcast %22 : vector<1x352xf32> to vector<32x352xf32>
    %25 = arith.mulf %23, %24 : vector<32x352xf32>
    %26 = arith.addf %19, %25 : vector<32x352xf32>
    %c0_18 = arith.constant 0 : index
    %c2 = arith.constant 2 : index
    %27 = vector.load %arg2[%c0_18, %c2] : memref<32x49xf32, #tpu.memory_space<vmem>>, vector<32x1xf32>
    %c0_19 = arith.constant 0 : index
    %c0_20 = arith.constant 0 : index
    %c2_21 = arith.constant 2 : index
    %28 = vector.load %arg6[%c0_19, %c0_20, %c2_21] : memref<1x32x506xf32, #tpu.memory_space<vmem>>, vector<1x32x352xf32>
    %29 = vector.shape_cast %28 : vector<1x32x352xf32> to vector<32x352xf32>
    %30 = vector.broadcast %27 : vector<32x1xf32> to vector<32x352xf32>
    %31 = arith.mulf %30, %29 : vector<32x352xf32>
    %32 = arith.addf %26, %31 : vector<32x352xf32>
    %c0_22 = arith.constant 0 : index
    %c2_23 = arith.constant 2 : index
    %33 = vector.load %arg3[%c0_22, %c2_23] : memref<32x49xf32, #tpu.memory_space<vmem>>, vector<32x1xf32>
    %c0_24 = arith.constant 0 : index
    %c0_25 = arith.constant 0 : index
    %c2_26 = arith.constant 2 : index
    %34 = vector.load %arg7[%c0_24, %c0_25, %c2_26] : memref<1x1x506xf32, #tpu.memory_space<vmem>>, vector<1x1x352xf32>
    %35 = vector.shape_cast %34 : vector<1x1x352xf32> to vector<1x352xf32>
    %36 = vector.broadcast %33 : vector<32x1xf32> to vector<32x352xf32>
    %37 = vector.broadcast %35 : vector<1x352xf32> to vector<32x352xf32>
    %38 = arith.mulf %36, %37 : vector<32x352xf32>
    %39 = arith.addf %32, %38 : vector<32x352xf32>
    %c0_27 = arith.constant 0 : index
    %c3 = arith.constant 3 : index
    %40 = vector.load %arg2[%c0_27, %c3] : memref<32x49xf32, #tpu.memory_space<vmem>>, vector<32x1xf32>
    %c0_28 = arith.constant 0 : index
    %c0_29 = arith.constant 0 : index
    %c3_30 = arith.constant 3 : index
    %41 = vector.load %arg6[%c0_28, %c0_29, %c3_30] : memref<1x32x506xf32, #tpu.memory_space<vmem>>, vector<1x32x352xf32>
    %42 = vector.shape_cast %41 : vector<1x32x352xf32> to vector<32x352xf32>
    %43 = vector.broadcast %40 : vector<32x1xf32> to vector<32x352xf32>
    %44 = arith.mulf %43, %42 : vector<32x352xf32>
    %45 = arith.addf %39, %44 : vector<32x352xf32>
    %c0_31 = arith.constant 0 : index
    %c3_32 = arith.constant 3 : index
    %46 = vector.load %arg3[%c0_31, %c3_32] : memref<32x49xf32, #tpu.memory_space<vmem>>, vector<32x1xf32>
    %c0_33 = arith.constant 0 : index
    %c0_34 = arith.constant 0 : index
    %c3_35 = arith.constant 3 : index
    %47 = vector.load %arg7[%c0_33, %c0_34, %c3_35] : memref<1x1x506xf32, #tpu.memory_space<vmem>>, vector<1x1x352xf32>
    %48 = vector.shape_cast %47 : vector<1x1x352xf32> to vector<1x352xf32>
    %49 = vector.broadcast %46 : vector<32x1xf32> to vector<32x352xf32>
    %50 = vector.broadcast %48 : vector<1x352xf32> to vector<32x352xf32>
    %51 = arith.mulf %49, %50 : vector<32x352xf32>
    %52 = arith.addf %45, %51 : vector<32x352xf32>
    %c0_36 = arith.constant 0 : index
    %c4 = arith.constant 4 : index
    %53 = vector.load %arg2[%c0_36, %c4] : memref<32x49xf32, #tpu.memory_space<vmem>>, vector<32x1xf32>
    %c0_37 = arith.constant 0 : index
    %c0_38 = arith.constant 0 : index
    %c4_39 = arith.constant 4 : index
    %54 = vector.load %arg6[%c0_37, %c0_38, %c4_39] : memref<1x32x506xf32, #tpu.memory_space<vmem>>, vector<1x32x352xf32>
    %55 = vector.shape_cast %54 : vector<1x32x352xf32> to vector<32x352xf32>
    %56 = vector.broadcast %53 : vector<32x1xf32> to vector<32x352xf32>
    %57 = arith.mulf %56, %55 : vector<32x352xf32>
    %58 = arith.addf %52, %57 : vector<32x352xf32>
    %c0_40 = arith.constant 0 : index
    %c4_41 = arith.constant 4 : index
    %59 = vector.load %arg3[%c0_40, %c4_41] : memref<32x49xf32, #tpu.memory_space<vmem>>, vector<32x1xf32>
    %c0_42 = arith.constant 0 : index
    %c0_43 = arith.constant 0 : index
    %c4_44 = arith.constant 4 : index
    %60 = vector.load %arg7[%c0_42, %c0_43, %c4_44] : memref<1x1x506xf32, #tpu.memory_space<vmem>>, vector<1x1x352xf32>
    %61 = vector.shape_cast %60 : vector<1x1x352xf32> to vector<1x352xf32>
    %62 = vector.broadcast %59 : vector<32x1xf32> to vector<32x352xf32>
    %63 = vector.broadcast %61 : vector<1x352xf32> to vector<32x352xf32>
    %64 = arith.mulf %62, %63 : vector<32x352xf32>
    %65 = arith.addf %58, %64 : vector<32x352xf32>
    %c0_45 = arith.constant 0 : index
    %c5 = arith.constant 5 : index
    %66 = vector.load %arg2[%c0_45, %c5] : memref<32x49xf32, #tpu.memory_space<vmem>>, vector<32x1xf32>
    %c0_46 = arith.constant 0 : index
    %c0_47 = arith.constant 0 : index
    %c5_48 = arith.constant 5 : index
    %67 = vector.load %arg6[%c0_46, %c0_47, %c5_48] : memref<1x32x506xf32, #tpu.memory_space<vmem>>, vector<1x32x352xf32>
    %68 = vector.shape_cast %67 : vector<1x32x352xf32> to vector<32x352xf32>
    %69 = vector.broadcast %66 : vector<32x1xf32> to vector<32x352xf32>
    %70 = arith.mulf %69, %68 : vector<32x352xf32>
    %71 = arith.addf %65, %70 : vector<32x352xf32>
    %c0_49 = arith.constant 0 : index
    %c5_50 = arith.constant 5 : index
    %72 = vector.load %arg3[%c0_49, %c5_50] : memref<32x49xf32, #tpu.memory_space<vmem>>, vector<32x1xf32>
    %c0_51 = arith.constant 0 : index
    %c0_52 = arith.constant 0 : index
    %c5_53 = arith.constant 5 : index
    %73 = vector.load %arg7[%c0_51, %c0_52, %c5_53] : memref<1x1x506xf32, #tpu.memory_space<vmem>>, vector<1x1x352xf32>
    %74 = vector.shape_cast %73 : vector<1x1x352xf32> to vector<1x352xf32>
    %75 = vector.broadcast %72 : vector<32x1xf32> to vector<32x352xf32>
    %76 = vector.broadcast %74 : vector<1x352xf32> to vector<32x352xf32>
    %77 = arith.mulf %75, %76 : vector<32x352xf32>
    %78 = arith.addf %71, %77 : vector<32x352xf32>
    %c0_54 = arith.constant 0 : index
    %c6 = arith.constant 6 : index
    %79 = vector.load %arg2[%c0_54, %c6] : memref<32x49xf32, #tpu.memory_space<vmem>>, vector<32x1xf32>
    %c0_55 = arith.constant 0 : index
    %c0_56 = arith.constant 0 : index
    %c6_57 = arith.constant 6 : index
    %80 = vector.load %arg6[%c0_55, %c0_56, %c6_57] : memref<1x32x506xf32, #tpu.memory_space<vmem>>, vector<1x32x352xf32>
    %81 = vector.shape_cast %80 : vector<1x32x352xf32> to vector<32x352xf32>
    %82 = vector.broadcast %79 : vector<32x1xf32> to vector<32x352xf32>
    %83 = arith.mulf %82, %81 : vector<32x352xf32>
    %84 = arith.addf %78, %83 : vector<32x352xf32>
    %c0_58 = arith.constant 0 : index
    %c6_59 = arith.constant 6 : index
    %85 = vector.load %arg3[%c0_58, %c6_59] : memref<32x49xf32, #tpu.memory_space<vmem>>, vector<32x1xf32>
    %c0_60 = arith.constant 0 : index
    %c0_61 = arith.constant 0 : index
    %c6_62 = arith.constant 6 : index
    %86 = vector.load %arg7[%c0_60, %c0_61, %c6_62] : memref<1x1x506xf32, #tpu.memory_space<vmem>>, vector<1x1x352xf32>
    %87 = vector.shape_cast %86 : vector<1x1x352xf32> to vector<1x352xf32>
    %88 = vector.broadcast %85 : vector<32x1xf32> to vector<32x352xf32>
    %89 = vector.broadcast %87 : vector<1x352xf32> to vector<32x352xf32>
    %90 = arith.mulf %88, %89 : vector<32x352xf32>
    %91 = arith.addf %84, %90 : vector<32x352xf32>
    %c0_63 = arith.constant 0 : index
    %c7 = arith.constant 7 : index
    %92 = vector.load %arg2[%c0_63, %c7] : memref<32x49xf32, #tpu.memory_space<vmem>>, vector<32x1xf32>
    %c0_64 = arith.constant 0 : index
    %c0_65 = arith.constant 0 : index
    %c22 = arith.constant 22 : index
    %93 = vector.load %arg6[%c0_64, %c0_65, %c22] : memref<1x32x506xf32, #tpu.memory_space<vmem>>, vector<1x32x352xf32>
    %94 = vector.shape_cast %93 : vector<1x32x352xf32> to vector<32x352xf32>
    %95 = vector.broadcast %92 : vector<32x1xf32> to vector<32x352xf32>
    %96 = arith.mulf %95, %94 : vector<32x352xf32>
    %97 = arith.addf %91, %96 : vector<32x352xf32>
    %c0_66 = arith.constant 0 : index
    %c7_67 = arith.constant 7 : index
    %98 = vector.load %arg3[%c0_66, %c7_67] : memref<32x49xf32, #tpu.memory_space<vmem>>, vector<32x1xf32>
    %c0_68 = arith.constant 0 : index
    %c0_69 = arith.constant 0 : index
    %c22_70 = arith.constant 22 : index
    %99 = vector.load %arg7[%c0_68, %c0_69, %c22_70] : memref<1x1x506xf32, #tpu.memory_space<vmem>>, vector<1x1x352xf32>
    %100 = vector.shape_cast %99 : vector<1x1x352xf32> to vector<1x352xf32>
    %101 = vector.broadcast %98 : vector<32x1xf32> to vector<32x352xf32>
    %102 = vector.broadcast %100 : vector<1x352xf32> to vector<32x352xf32>
    %103 = arith.mulf %101, %102 : vector<32x352xf32>
    %104 = arith.addf %97, %103 : vector<32x352xf32>
    %c0_71 = arith.constant 0 : index
    %c8 = arith.constant 8 : index
    %105 = vector.load %arg2[%c0_71, %c8] : memref<32x49xf32, #tpu.memory_space<vmem>>, vector<32x1xf32>
    %c0_72 = arith.constant 0 : index
    %c0_73 = arith.constant 0 : index
    %c23 = arith.constant 23 : index
    %106 = vector.load %arg6[%c0_72, %c0_73, %c23] : memref<1x32x506xf32, #tpu.memory_space<vmem>>, vector<1x32x352xf32>
    %107 = vector.shape_cast %106 : vector<1x32x352xf32> to vector<32x352xf32>
    %108 = vector.broadcast %105 : vector<32x1xf32> to vector<32x352xf32>
    %109 = arith.mulf %108, %107 : vector<32x352xf32>
    %110 = arith.addf %104, %109 : vector<32x352xf32>
    %c0_74 = arith.constant 0 : index
    %c8_75 = arith.constant 8 : index
    %111 = vector.load %arg3[%c0_74, %c8_75] : memref<32x49xf32, #tpu.memory_space<vmem>>, vector<32x1xf32>
    %c0_76 = arith.constant 0 : index
    %c0_77 = arith.constant 0 : index
    %c23_78 = arith.constant 23 : index
    %112 = vector.load %arg7[%c0_76, %c0_77, %c23_78] : memref<1x1x506xf32, #tpu.memory_space<vmem>>, vector<1x1x352xf32>
    %113 = vector.shape_cast %112 : vector<1x1x352xf32> to vector<1x352xf32>
    %114 = vector.broadcast %111 : vector<32x1xf32> to vector<32x352xf32>
    %115 = vector.broadcast %113 : vector<1x352xf32> to vector<32x352xf32>
    %116 = arith.mulf %114, %115 : vector<32x352xf32>
    %117 = arith.addf %110, %116 : vector<32x352xf32>
    %c0_79 = arith.constant 0 : index
    %c9 = arith.constant 9 : index
    %118 = vector.load %arg2[%c0_79, %c9] : memref<32x49xf32, #tpu.memory_space<vmem>>, vector<32x1xf32>
    %c0_80 = arith.constant 0 : index
    %c0_81 = arith.constant 0 : index
    %c24 = arith.constant 24 : index
    %119 = vector.load %arg6[%c0_80, %c0_81, %c24] : memref<1x32x506xf32, #tpu.memory_space<vmem>>, vector<1x32x352xf32>
    %120 = vector.shape_cast %119 : vector<1x32x352xf32> to vector<32x352xf32>
    %121 = vector.broadcast %118 : vector<32x1xf32> to vector<32x352xf32>
    %122 = arith.mulf %121, %120 : vector<32x352xf32>
    %123 = arith.addf %117, %122 : vector<32x352xf32>
    %c0_82 = arith.constant 0 : index
    %c9_83 = arith.constant 9 : index
    %124 = vector.load %arg3[%c0_82, %c9_83] : memref<32x49xf32, #tpu.memory_space<vmem>>, vector<32x1xf32>
    %c0_84 = arith.constant 0 : index
    %c0_85 = arith.constant 0 : index
    %c24_86 = arith.constant 24 : index
    %125 = vector.load %arg7[%c0_84, %c0_85, %c24_86] : memref<1x1x506xf32, #tpu.memory_space<vmem>>, vector<1x1x352xf32>
    %126 = vector.shape_cast %125 : vector<1x1x352xf32> to vector<1x352xf32>
    %127 = vector.broadcast %124 : vector<32x1xf32> to vector<32x352xf32>
    %128 = vector.broadcast %126 : vector<1x352xf32> to vector<32x352xf32>
    %129 = arith.mulf %127, %128 : vector<32x352xf32>
    %130 = arith.addf %123, %129 : vector<32x352xf32>
    %c0_87 = arith.constant 0 : index
    %c10 = arith.constant 10 : index
    %131 = vector.load %arg2[%c0_87, %c10] : memref<32x49xf32, #tpu.memory_space<vmem>>, vector<32x1xf32>
    %c0_88 = arith.constant 0 : index
    %c0_89 = arith.constant 0 : index
    %c25 = arith.constant 25 : index
    %132 = vector.load %arg6[%c0_88, %c0_89, %c25] : memref<1x32x506xf32, #tpu.memory_space<vmem>>, vector<1x32x352xf32>
    %133 = vector.shape_cast %132 : vector<1x32x352xf32> to vector<32x352xf32>
    %134 = vector.broadcast %131 : vector<32x1xf32> to vector<32x352xf32>
    %135 = arith.mulf %134, %133 : vector<32x352xf32>
    %136 = arith.addf %130, %135 : vector<32x352xf32>
    %c0_90 = arith.constant 0 : index
    %c10_91 = arith.constant 10 : index
    %137 = vector.load %arg3[%c0_90, %c10_91] : memref<32x49xf32, #tpu.memory_space<vmem>>, vector<32x1xf32>
    %c0_92 = arith.constant 0 : index
    %c0_93 = arith.constant 0 : index
    %c25_94 = arith.constant 25 : index
    %138 = vector.load %arg7[%c0_92, %c0_93, %c25_94] : memref<1x1x506xf32, #tpu.memory_space<vmem>>, vector<1x1x352xf32>
    %139 = vector.shape_cast %138 : vector<1x1x352xf32> to vector<1x352xf32>
    %140 = vector.broadcast %137 : vector<32x1xf32> to vector<32x352xf32>
    %141 = vector.broadcast %139 : vector<1x352xf32> to vector<32x352xf32>
    %142 = arith.mulf %140, %141 : vector<32x352xf32>
    %143 = arith.addf %136, %142 : vector<32x352xf32>
    %c0_95 = arith.constant 0 : index
    %c11 = arith.constant 11 : index
    %144 = vector.load %arg2[%c0_95, %c11] : memref<32x49xf32, #tpu.memory_space<vmem>>, vector<32x1xf32>
    %c0_96 = arith.constant 0 : index
    %c0_97 = arith.constant 0 : index
    %c26 = arith.constant 26 : index
    %145 = vector.load %arg6[%c0_96, %c0_97, %c26] : memref<1x32x506xf32, #tpu.memory_space<vmem>>, vector<1x32x352xf32>
    %146 = vector.shape_cast %145 : vector<1x32x352xf32> to vector<32x352xf32>
    %147 = vector.broadcast %144 : vector<32x1xf32> to vector<32x352xf32>
    %148 = arith.mulf %147, %146 : vector<32x352xf32>
    %149 = arith.addf %143, %148 : vector<32x352xf32>
    %c0_98 = arith.constant 0 : index
    %c11_99 = arith.constant 11 : index
    %150 = vector.load %arg3[%c0_98, %c11_99] : memref<32x49xf32, #tpu.memory_space<vmem>>, vector<32x1xf32>
    %c0_100 = arith.constant 0 : index
    %c0_101 = arith.constant 0 : index
    %c26_102 = arith.constant 26 : index
    %151 = vector.load %arg7[%c0_100, %c0_101, %c26_102] : memref<1x1x506xf32, #tpu.memory_space<vmem>>, vector<1x1x352xf32>
    %152 = vector.shape_cast %151 : vector<1x1x352xf32> to vector<1x352xf32>
    %153 = vector.broadcast %150 : vector<32x1xf32> to vector<32x352xf32>
    %154 = vector.broadcast %152 : vector<1x352xf32> to vector<32x352xf32>
    %155 = arith.mulf %153, %154 : vector<32x352xf32>
    %156 = arith.addf %149, %155 : vector<32x352xf32>
    %c0_103 = arith.constant 0 : index
    %c12 = arith.constant 12 : index
    %157 = vector.load %arg2[%c0_103, %c12] : memref<32x49xf32, #tpu.memory_space<vmem>>, vector<32x1xf32>
    %c0_104 = arith.constant 0 : index
    %c0_105 = arith.constant 0 : index
    %c27 = arith.constant 27 : index
    %158 = vector.load %arg6[%c0_104, %c0_105, %c27] : memref<1x32x506xf32, #tpu.memory_space<vmem>>, vector<1x32x352xf32>
    %159 = vector.shape_cast %158 : vector<1x32x352xf32> to vector<32x352xf32>
    %160 = vector.broadcast %157 : vector<32x1xf32> to vector<32x352xf32>
    %161 = arith.mulf %160, %159 : vector<32x352xf32>
    %162 = arith.addf %156, %161 : vector<32x352xf32>
    %c0_106 = arith.constant 0 : index
    %c12_107 = arith.constant 12 : index
    %163 = vector.load %arg3[%c0_106, %c12_107] : memref<32x49xf32, #tpu.memory_space<vmem>>, vector<32x1xf32>
    %c0_108 = arith.constant 0 : index
    %c0_109 = arith.constant 0 : index
    %c27_110 = arith.constant 27 : index
    %164 = vector.load %arg7[%c0_108, %c0_109, %c27_110] : memref<1x1x506xf32, #tpu.memory_space<vmem>>, vector<1x1x352xf32>
    %165 = vector.shape_cast %164 : vector<1x1x352xf32> to vector<1x352xf32>
    %166 = vector.broadcast %163 : vector<32x1xf32> to vector<32x352xf32>
    %167 = vector.broadcast %165 : vector<1x352xf32> to vector<32x352xf32>
    %168 = arith.mulf %166, %167 : vector<32x352xf32>
    %169 = arith.addf %162, %168 : vector<32x352xf32>
    %c0_111 = arith.constant 0 : index
    %c13 = arith.constant 13 : index
    %170 = vector.load %arg2[%c0_111, %c13] : memref<32x49xf32, #tpu.memory_space<vmem>>, vector<32x1xf32>
    %c0_112 = arith.constant 0 : index
    %c0_113 = arith.constant 0 : index
    %c28 = arith.constant 28 : index
    %171 = vector.load %arg6[%c0_112, %c0_113, %c28] : memref<1x32x506xf32, #tpu.memory_space<vmem>>, vector<1x32x352xf32>
    %172 = vector.shape_cast %171 : vector<1x32x352xf32> to vector<32x352xf32>
    %173 = vector.broadcast %170 : vector<32x1xf32> to vector<32x352xf32>
    %174 = arith.mulf %173, %172 : vector<32x352xf32>
    %175 = arith.addf %169, %174 : vector<32x352xf32>
    %c0_114 = arith.constant 0 : index
    %c13_115 = arith.constant 13 : index
    %176 = vector.load %arg3[%c0_114, %c13_115] : memref<32x49xf32, #tpu.memory_space<vmem>>, vector<32x1xf32>
    %c0_116 = arith.constant 0 : index
    %c0_117 = arith.constant 0 : index
    %c28_118 = arith.constant 28 : index
    %177 = vector.load %arg7[%c0_116, %c0_117, %c28_118] : memref<1x1x506xf32, #tpu.memory_space<vmem>>, vector<1x1x352xf32>
    %178 = vector.shape_cast %177 : vector<1x1x352xf32> to vector<1x352xf32>
    %179 = vector.broadcast %176 : vector<32x1xf32> to vector<32x352xf32>
    %180 = vector.broadcast %178 : vector<1x352xf32> to vector<32x352xf32>
    %181 = arith.mulf %179, %180 : vector<32x352xf32>
    %182 = arith.addf %175, %181 : vector<32x352xf32>
    %c0_119 = arith.constant 0 : index
    %c14 = arith.constant 14 : index
    %183 = vector.load %arg2[%c0_119, %c14] : memref<32x49xf32, #tpu.memory_space<vmem>>, vector<32x1xf32>
    %c0_120 = arith.constant 0 : index
    %c0_121 = arith.constant 0 : index
    %c44 = arith.constant 44 : index
    %184 = vector.load %arg6[%c0_120, %c0_121, %c44] : memref<1x32x506xf32, #tpu.memory_space<vmem>>, vector<1x32x352xf32>
    %185 = vector.shape_cast %184 : vector<1x32x352xf32> to vector<32x352xf32>
    %186 = vector.broadcast %183 : vector<32x1xf32> to vector<32x352xf32>
    %187 = arith.mulf %186, %185 : vector<32x352xf32>
    %188 = arith.addf %182, %187 : vector<32x352xf32>
    %c0_122 = arith.constant 0 : index
    %c14_123 = arith.constant 14 : index
    %189 = vector.load %arg3[%c0_122, %c14_123] : memref<32x49xf32, #tpu.memory_space<vmem>>, vector<32x1xf32>
    %c0_124 = arith.constant 0 : index
    %c0_125 = arith.constant 0 : index
    %c44_126 = arith.constant 44 : index
    %190 = vector.load %arg7[%c0_124, %c0_125, %c44_126] : memref<1x1x506xf32, #tpu.memory_space<vmem>>, vector<1x1x352xf32>
    %191 = vector.shape_cast %190 : vector<1x1x352xf32> to vector<1x352xf32>
    %192 = vector.broadcast %189 : vector<32x1xf32> to vector<32x352xf32>
    %193 = vector.broadcast %191 : vector<1x352xf32> to vector<32x352xf32>
    %194 = arith.mulf %192, %193 : vector<32x352xf32>
    %195 = arith.addf %188, %194 : vector<32x352xf32>
    %c0_127 = arith.constant 0 : index
    %c15 = arith.constant 15 : index
    %196 = vector.load %arg2[%c0_127, %c15] : memref<32x49xf32, #tpu.memory_space<vmem>>, vector<32x1xf32>
    %c0_128 = arith.constant 0 : index
    %c0_129 = arith.constant 0 : index
    %c45 = arith.constant 45 : index
    %197 = vector.load %arg6[%c0_128, %c0_129, %c45] : memref<1x32x506xf32, #tpu.memory_space<vmem>>, vector<1x32x352xf32>
    %198 = vector.shape_cast %197 : vector<1x32x352xf32> to vector<32x352xf32>
    %199 = vector.broadcast %196 : vector<32x1xf32> to vector<32x352xf32>
    %200 = arith.mulf %199, %198 : vector<32x352xf32>
    %201 = arith.addf %195, %200 : vector<32x352xf32>
    %c0_130 = arith.constant 0 : index
    %c15_131 = arith.constant 15 : index
    %202 = vector.load %arg3[%c0_130, %c15_131] : memref<32x49xf32, #tpu.memory_space<vmem>>, vector<32x1xf32>
    %c0_132 = arith.constant 0 : index
    %c0_133 = arith.constant 0 : index
    %c45_134 = arith.constant 45 : index
    %203 = vector.load %arg7[%c0_132, %c0_133, %c45_134] : memref<1x1x506xf32, #tpu.memory_space<vmem>>, vector<1x1x352xf32>
    %204 = vector.shape_cast %203 : vector<1x1x352xf32> to vector<1x352xf32>
    %205 = vector.broadcast %202 : vector<32x1xf32> to vector<32x352xf32>
    %206 = vector.broadcast %204 : vector<1x352xf32> to vector<32x352xf32>
    %207 = arith.mulf %205, %206 : vector<32x352xf32>
    %208 = arith.addf %201, %207 : vector<32x352xf32>
    %c0_135 = arith.constant 0 : index
    %c16 = arith.constant 16 : index
    %209 = vector.load %arg2[%c0_135, %c16] : memref<32x49xf32, #tpu.memory_space<vmem>>, vector<32x1xf32>
    %c0_136 = arith.constant 0 : index
    %c0_137 = arith.constant 0 : index
    %c46 = arith.constant 46 : index
    %210 = vector.load %arg6[%c0_136, %c0_137, %c46] : memref<1x32x506xf32, #tpu.memory_space<vmem>>, vector<1x32x352xf32>
    %211 = vector.shape_cast %210 : vector<1x32x352xf32> to vector<32x352xf32>
    %212 = vector.broadcast %209 : vector<32x1xf32> to vector<32x352xf32>
    %213 = arith.mulf %212, %211 : vector<32x352xf32>
    %214 = arith.addf %208, %213 : vector<32x352xf32>
    %c0_138 = arith.constant 0 : index
    %c16_139 = arith.constant 16 : index
    %215 = vector.load %arg3[%c0_138, %c16_139] : memref<32x49xf32, #tpu.memory_space<vmem>>, vector<32x1xf32>
    %c0_140 = arith.constant 0 : index
    %c0_141 = arith.constant 0 : index
    %c46_142 = arith.constant 46 : index
    %216 = vector.load %arg7[%c0_140, %c0_141, %c46_142] : memref<1x1x506xf32, #tpu.memory_space<vmem>>, vector<1x1x352xf32>
    %217 = vector.shape_cast %216 : vector<1x1x352xf32> to vector<1x352xf32>
    %218 = vector.broadcast %215 : vector<32x1xf32> to vector<32x352xf32>
    %219 = vector.broadcast %217 : vector<1x352xf32> to vector<32x352xf32>
    %220 = arith.mulf %218, %219 : vector<32x352xf32>
    %221 = arith.addf %214, %220 : vector<32x352xf32>
    %c0_143 = arith.constant 0 : index
    %c17 = arith.constant 17 : index
    %222 = vector.load %arg2[%c0_143, %c17] : memref<32x49xf32, #tpu.memory_space<vmem>>, vector<32x1xf32>
    %c0_144 = arith.constant 0 : index
    %c0_145 = arith.constant 0 : index
    %c47 = arith.constant 47 : index
    %223 = vector.load %arg6[%c0_144, %c0_145, %c47] : memref<1x32x506xf32, #tpu.memory_space<vmem>>, vector<1x32x352xf32>
    %224 = vector.shape_cast %223 : vector<1x32x352xf32> to vector<32x352xf32>
    %225 = vector.broadcast %222 : vector<32x1xf32> to vector<32x352xf32>
    %226 = arith.mulf %225, %224 : vector<32x352xf32>
    %227 = arith.addf %221, %226 : vector<32x352xf32>
    %c0_146 = arith.constant 0 : index
    %c17_147 = arith.constant 17 : index
    %228 = vector.load %arg3[%c0_146, %c17_147] : memref<32x49xf32, #tpu.memory_space<vmem>>, vector<32x1xf32>
    %c0_148 = arith.constant 0 : index
    %c0_149 = arith.constant 0 : index
    %c47_150 = arith.constant 47 : index
    %229 = vector.load %arg7[%c0_148, %c0_149, %c47_150] : memref<1x1x506xf32, #tpu.memory_space<vmem>>, vector<1x1x352xf32>
    %230 = vector.shape_cast %229 : vector<1x1x352xf32> to vector<1x352xf32>
    %231 = vector.broadcast %228 : vector<32x1xf32> to vector<32x352xf32>
    %232 = vector.broadcast %230 : vector<1x352xf32> to vector<32x352xf32>
    %233 = arith.mulf %231, %232 : vector<32x352xf32>
    %234 = arith.addf %227, %233 : vector<32x352xf32>
    %c0_151 = arith.constant 0 : index
    %c18 = arith.constant 18 : index
    %235 = vector.load %arg2[%c0_151, %c18] : memref<32x49xf32, #tpu.memory_space<vmem>>, vector<32x1xf32>
    %c0_152 = arith.constant 0 : index
    %c0_153 = arith.constant 0 : index
    %c48 = arith.constant 48 : index
    %236 = vector.load %arg6[%c0_152, %c0_153, %c48] : memref<1x32x506xf32, #tpu.memory_space<vmem>>, vector<1x32x352xf32>
    %237 = vector.shape_cast %236 : vector<1x32x352xf32> to vector<32x352xf32>
    %238 = vector.broadcast %235 : vector<32x1xf32> to vector<32x352xf32>
    %239 = arith.mulf %238, %237 : vector<32x352xf32>
    %240 = arith.addf %234, %239 : vector<32x352xf32>
    %c0_154 = arith.constant 0 : index
    %c18_155 = arith.constant 18 : index
    %241 = vector.load %arg3[%c0_154, %c18_155] : memref<32x49xf32, #tpu.memory_space<vmem>>, vector<32x1xf32>
    %c0_156 = arith.constant 0 : index
    %c0_157 = arith.constant 0 : index
    %c48_158 = arith.constant 48 : index
    %242 = vector.load %arg7[%c0_156, %c0_157, %c48_158] : memref<1x1x506xf32, #tpu.memory_space<vmem>>, vector<1x1x352xf32>
    %243 = vector.shape_cast %242 : vector<1x1x352xf32> to vector<1x352xf32>
    %244 = vector.broadcast %241 : vector<32x1xf32> to vector<32x352xf32>
    %245 = vector.broadcast %243 : vector<1x352xf32> to vector<32x352xf32>
    %246 = arith.mulf %244, %245 : vector<32x352xf32>
    %247 = arith.addf %240, %246 : vector<32x352xf32>
    %c0_159 = arith.constant 0 : index
    %c19 = arith.constant 19 : index
    %248 = vector.load %arg2[%c0_159, %c19] : memref<32x49xf32, #tpu.memory_space<vmem>>, vector<32x1xf32>
    %c0_160 = arith.constant 0 : index
    %c0_161 = arith.constant 0 : index
    %c49 = arith.constant 49 : index
    %249 = vector.load %arg6[%c0_160, %c0_161, %c49] : memref<1x32x506xf32, #tpu.memory_space<vmem>>, vector<1x32x352xf32>
    %250 = vector.shape_cast %249 : vector<1x32x352xf32> to vector<32x352xf32>
    %251 = vector.broadcast %248 : vector<32x1xf32> to vector<32x352xf32>
    %252 = arith.mulf %251, %250 : vector<32x352xf32>
    %253 = arith.addf %247, %252 : vector<32x352xf32>
    %c0_162 = arith.constant 0 : index
    %c19_163 = arith.constant 19 : index
    %254 = vector.load %arg3[%c0_162, %c19_163] : memref<32x49xf32, #tpu.memory_space<vmem>>, vector<32x1xf32>
    %c0_164 = arith.constant 0 : index
    %c0_165 = arith.constant 0 : index
    %c49_166 = arith.constant 49 : index
    %255 = vector.load %arg7[%c0_164, %c0_165, %c49_166] : memref<1x1x506xf32, #tpu.memory_space<vmem>>, vector<1x1x352xf32>
    %256 = vector.shape_cast %255 : vector<1x1x352xf32> to vector<1x352xf32>
    %257 = vector.broadcast %254 : vector<32x1xf32> to vector<32x352xf32>
    %258 = vector.broadcast %256 : vector<1x352xf32> to vector<32x352xf32>
    %259 = arith.mulf %257, %258 : vector<32x352xf32>
    %260 = arith.addf %253, %259 : vector<32x352xf32>
    %c0_167 = arith.constant 0 : index
    %c20 = arith.constant 20 : index
    %261 = vector.load %arg2[%c0_167, %c20] : memref<32x49xf32, #tpu.memory_space<vmem>>, vector<32x1xf32>
    %c0_168 = arith.constant 0 : index
    %c0_169 = arith.constant 0 : index
    %c50 = arith.constant 50 : index
    %262 = vector.load %arg6[%c0_168, %c0_169, %c50] : memref<1x32x506xf32, #tpu.memory_space<vmem>>, vector<1x32x352xf32>
    %263 = vector.shape_cast %262 : vector<1x32x352xf32> to vector<32x352xf32>
    %264 = vector.broadcast %261 : vector<32x1xf32> to vector<32x352xf32>
    %265 = arith.mulf %264, %263 : vector<32x352xf32>
    %266 = arith.addf %260, %265 : vector<32x352xf32>
    %c0_170 = arith.constant 0 : index
    %c20_171 = arith.constant 20 : index
    %267 = vector.load %arg3[%c0_170, %c20_171] : memref<32x49xf32, #tpu.memory_space<vmem>>, vector<32x1xf32>
    %c0_172 = arith.constant 0 : index
    %c0_173 = arith.constant 0 : index
    %c50_174 = arith.constant 50 : index
    %268 = vector.load %arg7[%c0_172, %c0_173, %c50_174] : memref<1x1x506xf32, #tpu.memory_space<vmem>>, vector<1x1x352xf32>
    %269 = vector.shape_cast %268 : vector<1x1x352xf32> to vector<1x352xf32>
    %270 = vector.broadcast %267 : vector<32x1xf32> to vector<32x352xf32>
    %271 = vector.broadcast %269 : vector<1x352xf32> to vector<32x352xf32>
    %272 = arith.mulf %270, %271 : vector<32x352xf32>
    %273 = arith.addf %266, %272 : vector<32x352xf32>
    %c0_175 = arith.constant 0 : index
    %c21 = arith.constant 21 : index
    %274 = vector.load %arg2[%c0_175, %c21] : memref<32x49xf32, #tpu.memory_space<vmem>>, vector<32x1xf32>
    %c0_176 = arith.constant 0 : index
    %c0_177 = arith.constant 0 : index
    %c66 = arith.constant 66 : index
    %275 = vector.load %arg6[%c0_176, %c0_177, %c66] : memref<1x32x506xf32, #tpu.memory_space<vmem>>, vector<1x32x352xf32>
    %276 = vector.shape_cast %275 : vector<1x32x352xf32> to vector<32x352xf32>
    %277 = vector.broadcast %274 : vector<32x1xf32> to vector<32x352xf32>
    %278 = arith.mulf %277, %276 : vector<32x352xf32>
    %279 = arith.addf %273, %278 : vector<32x352xf32>
    %c0_178 = arith.constant 0 : index
    %c21_179 = arith.constant 21 : index
    %280 = vector.load %arg3[%c0_178, %c21_179] : memref<32x49xf32, #tpu.memory_space<vmem>>, vector<32x1xf32>
    %c0_180 = arith.constant 0 : index
    %c0_181 = arith.constant 0 : index
    %c66_182 = arith.constant 66 : index
    %281 = vector.load %arg7[%c0_180, %c0_181, %c66_182] : memref<1x1x506xf32, #tpu.memory_space<vmem>>, vector<1x1x352xf32>
    %282 = vector.shape_cast %281 : vector<1x1x352xf32> to vector<1x352xf32>
    %283 = vector.broadcast %280 : vector<32x1xf32> to vector<32x352xf32>
    %284 = vector.broadcast %282 : vector<1x352xf32> to vector<32x352xf32>
    %285 = arith.mulf %283, %284 : vector<32x352xf32>
    %286 = arith.addf %279, %285 : vector<32x352xf32>
    %c0_183 = arith.constant 0 : index
    %c22_184 = arith.constant 22 : index
    %287 = vector.load %arg2[%c0_183, %c22_184] : memref<32x49xf32, #tpu.memory_space<vmem>>, vector<32x1xf32>
    %c0_185 = arith.constant 0 : index
    %c0_186 = arith.constant 0 : index
    %c67 = arith.constant 67 : index
    %288 = vector.load %arg6[%c0_185, %c0_186, %c67] : memref<1x32x506xf32, #tpu.memory_space<vmem>>, vector<1x32x352xf32>
    %289 = vector.shape_cast %288 : vector<1x32x352xf32> to vector<32x352xf32>
    %290 = vector.broadcast %287 : vector<32x1xf32> to vector<32x352xf32>
    %291 = arith.mulf %290, %289 : vector<32x352xf32>
    %292 = arith.addf %286, %291 : vector<32x352xf32>
    %c0_187 = arith.constant 0 : index
    %c22_188 = arith.constant 22 : index
    %293 = vector.load %arg3[%c0_187, %c22_188] : memref<32x49xf32, #tpu.memory_space<vmem>>, vector<32x1xf32>
    %c0_189 = arith.constant 0 : index
    %c0_190 = arith.constant 0 : index
    %c67_191 = arith.constant 67 : index
    %294 = vector.load %arg7[%c0_189, %c0_190, %c67_191] : memref<1x1x506xf32, #tpu.memory_space<vmem>>, vector<1x1x352xf32>
    %295 = vector.shape_cast %294 : vector<1x1x352xf32> to vector<1x352xf32>
    %296 = vector.broadcast %293 : vector<32x1xf32> to vector<32x352xf32>
    %297 = vector.broadcast %295 : vector<1x352xf32> to vector<32x352xf32>
    %298 = arith.mulf %296, %297 : vector<32x352xf32>
    %299 = arith.addf %292, %298 : vector<32x352xf32>
    %c0_192 = arith.constant 0 : index
    %c23_193 = arith.constant 23 : index
    %300 = vector.load %arg2[%c0_192, %c23_193] : memref<32x49xf32, #tpu.memory_space<vmem>>, vector<32x1xf32>
    %c0_194 = arith.constant 0 : index
    %c0_195 = arith.constant 0 : index
    %c68 = arith.constant 68 : index
    %301 = vector.load %arg6[%c0_194, %c0_195, %c68] : memref<1x32x506xf32, #tpu.memory_space<vmem>>, vector<1x32x352xf32>
    %302 = vector.shape_cast %301 : vector<1x32x352xf32> to vector<32x352xf32>
    %303 = vector.broadcast %300 : vector<32x1xf32> to vector<32x352xf32>
    %304 = arith.mulf %303, %302 : vector<32x352xf32>
    %305 = arith.addf %299, %304 : vector<32x352xf32>
    %c0_196 = arith.constant 0 : index
    %c23_197 = arith.constant 23 : index
    %306 = vector.load %arg3[%c0_196, %c23_197] : memref<32x49xf32, #tpu.memory_space<vmem>>, vector<32x1xf32>
    %c0_198 = arith.constant 0 : index
    %c0_199 = arith.constant 0 : index
    %c68_200 = arith.constant 68 : index
    %307 = vector.load %arg7[%c0_198, %c0_199, %c68_200] : memref<1x1x506xf32, #tpu.memory_space<vmem>>, vector<1x1x352xf32>
    %308 = vector.shape_cast %307 : vector<1x1x352xf32> to vector<1x352xf32>
    %309 = vector.broadcast %306 : vector<32x1xf32> to vector<32x352xf32>
    %310 = vector.broadcast %308 : vector<1x352xf32> to vector<32x352xf32>
    %311 = arith.mulf %309, %310 : vector<32x352xf32>
    %312 = arith.addf %305, %311 : vector<32x352xf32>
    %c0_201 = arith.constant 0 : index
    %c24_202 = arith.constant 24 : index
    %313 = vector.load %arg2[%c0_201, %c24_202] : memref<32x49xf32, #tpu.memory_space<vmem>>, vector<32x1xf32>
    %c0_203 = arith.constant 0 : index
    %c0_204 = arith.constant 0 : index
    %c69 = arith.constant 69 : index
    %314 = vector.load %arg6[%c0_203, %c0_204, %c69] : memref<1x32x506xf32, #tpu.memory_space<vmem>>, vector<1x32x352xf32>
    %315 = vector.shape_cast %314 : vector<1x32x352xf32> to vector<32x352xf32>
    %316 = vector.broadcast %313 : vector<32x1xf32> to vector<32x352xf32>
    %317 = arith.mulf %316, %315 : vector<32x352xf32>
    %318 = arith.addf %312, %317 : vector<32x352xf32>
    %c0_205 = arith.constant 0 : index
    %c24_206 = arith.constant 24 : index
    %319 = vector.load %arg3[%c0_205, %c24_206] : memref<32x49xf32, #tpu.memory_space<vmem>>, vector<32x1xf32>
    %c0_207 = arith.constant 0 : index
    %c0_208 = arith.constant 0 : index
    %c69_209 = arith.constant 69 : index
    %320 = vector.load %arg7[%c0_207, %c0_208, %c69_209] : memref<1x1x506xf32, #tpu.memory_space<vmem>>, vector<1x1x352xf32>
    %321 = vector.shape_cast %320 : vector<1x1x352xf32> to vector<1x352xf32>
    %322 = vector.broadcast %319 : vector<32x1xf32> to vector<32x352xf32>
    %323 = vector.broadcast %321 : vector<1x352xf32> to vector<32x352xf32>
    %324 = arith.mulf %322, %323 : vector<32x352xf32>
    %325 = arith.addf %318, %324 : vector<32x352xf32>
    %c0_210 = arith.constant 0 : index
    %c25_211 = arith.constant 25 : index
    %326 = vector.load %arg2[%c0_210, %c25_211] : memref<32x49xf32, #tpu.memory_space<vmem>>, vector<32x1xf32>
    %c0_212 = arith.constant 0 : index
    %c0_213 = arith.constant 0 : index
    %c70 = arith.constant 70 : index
    %327 = vector.load %arg6[%c0_212, %c0_213, %c70] : memref<1x32x506xf32, #tpu.memory_space<vmem>>, vector<1x32x352xf32>
    %328 = vector.shape_cast %327 : vector<1x32x352xf32> to vector<32x352xf32>
    %329 = vector.broadcast %326 : vector<32x1xf32> to vector<32x352xf32>
    %330 = arith.mulf %329, %328 : vector<32x352xf32>
    %331 = arith.addf %325, %330 : vector<32x352xf32>
    %c0_214 = arith.constant 0 : index
    %c25_215 = arith.constant 25 : index
    %332 = vector.load %arg3[%c0_214, %c25_215] : memref<32x49xf32, #tpu.memory_space<vmem>>, vector<32x1xf32>
    %c0_216 = arith.constant 0 : index
    %c0_217 = arith.constant 0 : index
    %c70_218 = arith.constant 70 : index
    %333 = vector.load %arg7[%c0_216, %c0_217, %c70_218] : memref<1x1x506xf32, #tpu.memory_space<vmem>>, vector<1x1x352xf32>
    %334 = vector.shape_cast %333 : vector<1x1x352xf32> to vector<1x352xf32>
    %335 = vector.broadcast %332 : vector<32x1xf32> to vector<32x352xf32>
    %336 = vector.broadcast %334 : vector<1x352xf32> to vector<32x352xf32>
    %337 = arith.mulf %335, %336 : vector<32x352xf32>
    %338 = arith.addf %331, %337 : vector<32x352xf32>
    %c0_219 = arith.constant 0 : index
    %c26_220 = arith.constant 26 : index
    %339 = vector.load %arg2[%c0_219, %c26_220] : memref<32x49xf32, #tpu.memory_space<vmem>>, vector<32x1xf32>
    %c0_221 = arith.constant 0 : index
    %c0_222 = arith.constant 0 : index
    %c71 = arith.constant 71 : index
    %340 = vector.load %arg6[%c0_221, %c0_222, %c71] : memref<1x32x506xf32, #tpu.memory_space<vmem>>, vector<1x32x352xf32>
    %341 = vector.shape_cast %340 : vector<1x32x352xf32> to vector<32x352xf32>
    %342 = vector.broadcast %339 : vector<32x1xf32> to vector<32x352xf32>
    %343 = arith.mulf %342, %341 : vector<32x352xf32>
    %344 = arith.addf %338, %343 : vector<32x352xf32>
    %c0_223 = arith.constant 0 : index
    %c26_224 = arith.constant 26 : index
    %345 = vector.load %arg3[%c0_223, %c26_224] : memref<32x49xf32, #tpu.memory_space<vmem>>, vector<32x1xf32>
    %c0_225 = arith.constant 0 : index
    %c0_226 = arith.constant 0 : index
    %c71_227 = arith.constant 71 : index
    %346 = vector.load %arg7[%c0_225, %c0_226, %c71_227] : memref<1x1x506xf32, #tpu.memory_space<vmem>>, vector<1x1x352xf32>
    %347 = vector.shape_cast %346 : vector<1x1x352xf32> to vector<1x352xf32>
    %348 = vector.broadcast %345 : vector<32x1xf32> to vector<32x352xf32>
    %349 = vector.broadcast %347 : vector<1x352xf32> to vector<32x352xf32>
    %350 = arith.mulf %348, %349 : vector<32x352xf32>
    %351 = arith.addf %344, %350 : vector<32x352xf32>
    %c0_228 = arith.constant 0 : index
    %c27_229 = arith.constant 27 : index
    %352 = vector.load %arg2[%c0_228, %c27_229] : memref<32x49xf32, #tpu.memory_space<vmem>>, vector<32x1xf32>
    %c0_230 = arith.constant 0 : index
    %c0_231 = arith.constant 0 : index
    %c72 = arith.constant 72 : index
    %353 = vector.load %arg6[%c0_230, %c0_231, %c72] : memref<1x32x506xf32, #tpu.memory_space<vmem>>, vector<1x32x352xf32>
    %354 = vector.shape_cast %353 : vector<1x32x352xf32> to vector<32x352xf32>
    %355 = vector.broadcast %352 : vector<32x1xf32> to vector<32x352xf32>
    %356 = arith.mulf %355, %354 : vector<32x352xf32>
    %357 = arith.addf %351, %356 : vector<32x352xf32>
    %c0_232 = arith.constant 0 : index
    %c27_233 = arith.constant 27 : index
    %358 = vector.load %arg3[%c0_232, %c27_233] : memref<32x49xf32, #tpu.memory_space<vmem>>, vector<32x1xf32>
    %c0_234 = arith.constant 0 : index
    %c0_235 = arith.constant 0 : index
    %c72_236 = arith.constant 72 : index
    %359 = vector.load %arg7[%c0_234, %c0_235, %c72_236] : memref<1x1x506xf32, #tpu.memory_space<vmem>>, vector<1x1x352xf32>
    %360 = vector.shape_cast %359 : vector<1x1x352xf32> to vector<1x352xf32>
    %361 = vector.broadcast %358 : vector<32x1xf32> to vector<32x352xf32>
    %362 = vector.broadcast %360 : vector<1x352xf32> to vector<32x352xf32>
    %363 = arith.mulf %361, %362 : vector<32x352xf32>
    %364 = arith.addf %357, %363 : vector<32x352xf32>
    %c0_237 = arith.constant 0 : index
    %c28_238 = arith.constant 28 : index
    %365 = vector.load %arg2[%c0_237, %c28_238] : memref<32x49xf32, #tpu.memory_space<vmem>>, vector<32x1xf32>
    %c0_239 = arith.constant 0 : index
    %c0_240 = arith.constant 0 : index
    %c88 = arith.constant 88 : index
    %366 = vector.load %arg6[%c0_239, %c0_240, %c88] : memref<1x32x506xf32, #tpu.memory_space<vmem>>, vector<1x32x352xf32>
    %367 = vector.shape_cast %366 : vector<1x32x352xf32> to vector<32x352xf32>
    %368 = vector.broadcast %365 : vector<32x1xf32> to vector<32x352xf32>
    %369 = arith.mulf %368, %367 : vector<32x352xf32>
    %370 = arith.addf %364, %369 : vector<32x352xf32>
    %c0_241 = arith.constant 0 : index
    %c28_242 = arith.constant 28 : index
    %371 = vector.load %arg3[%c0_241, %c28_242] : memref<32x49xf32, #tpu.memory_space<vmem>>, vector<32x1xf32>
    %c0_243 = arith.constant 0 : index
    %c0_244 = arith.constant 0 : index
    %c88_245 = arith.constant 88 : index
    %372 = vector.load %arg7[%c0_243, %c0_244, %c88_245] : memref<1x1x506xf32, #tpu.memory_space<vmem>>, vector<1x1x352xf32>
    %373 = vector.shape_cast %372 : vector<1x1x352xf32> to vector<1x352xf32>
    %374 = vector.broadcast %371 : vector<32x1xf32> to vector<32x352xf32>
    %375 = vector.broadcast %373 : vector<1x352xf32> to vector<32x352xf32>
    %376 = arith.mulf %374, %375 : vector<32x352xf32>
    %377 = arith.addf %370, %376 : vector<32x352xf32>
    %c0_246 = arith.constant 0 : index
    %c29 = arith.constant 29 : index
    %378 = vector.load %arg2[%c0_246, %c29] : memref<32x49xf32, #tpu.memory_space<vmem>>, vector<32x1xf32>
    %c0_247 = arith.constant 0 : index
    %c0_248 = arith.constant 0 : index
    %c89 = arith.constant 89 : index
    %379 = vector.load %arg6[%c0_247, %c0_248, %c89] : memref<1x32x506xf32, #tpu.memory_space<vmem>>, vector<1x32x352xf32>
    %380 = vector.shape_cast %379 : vector<1x32x352xf32> to vector<32x352xf32>
    %381 = vector.broadcast %378 : vector<32x1xf32> to vector<32x352xf32>
    %382 = arith.mulf %381, %380 : vector<32x352xf32>
    %383 = arith.addf %377, %382 : vector<32x352xf32>
    %c0_249 = arith.constant 0 : index
    %c29_250 = arith.constant 29 : index
    %384 = vector.load %arg3[%c0_249, %c29_250] : memref<32x49xf32, #tpu.memory_space<vmem>>, vector<32x1xf32>
    %c0_251 = arith.constant 0 : index
    %c0_252 = arith.constant 0 : index
    %c89_253 = arith.constant 89 : index
    %385 = vector.load %arg7[%c0_251, %c0_252, %c89_253] : memref<1x1x506xf32, #tpu.memory_space<vmem>>, vector<1x1x352xf32>
    %386 = vector.shape_cast %385 : vector<1x1x352xf32> to vector<1x352xf32>
    %387 = vector.broadcast %384 : vector<32x1xf32> to vector<32x352xf32>
    %388 = vector.broadcast %386 : vector<1x352xf32> to vector<32x352xf32>
    %389 = arith.mulf %387, %388 : vector<32x352xf32>
    %390 = arith.addf %383, %389 : vector<32x352xf32>
    %c0_254 = arith.constant 0 : index
    %c30 = arith.constant 30 : index
    %391 = vector.load %arg2[%c0_254, %c30] : memref<32x49xf32, #tpu.memory_space<vmem>>, vector<32x1xf32>
    %c0_255 = arith.constant 0 : index
    %c0_256 = arith.constant 0 : index
    %c90 = arith.constant 90 : index
    %392 = vector.load %arg6[%c0_255, %c0_256, %c90] : memref<1x32x506xf32, #tpu.memory_space<vmem>>, vector<1x32x352xf32>
    %393 = vector.shape_cast %392 : vector<1x32x352xf32> to vector<32x352xf32>
    %394 = vector.broadcast %391 : vector<32x1xf32> to vector<32x352xf32>
    %395 = arith.mulf %394, %393 : vector<32x352xf32>
    %396 = arith.addf %390, %395 : vector<32x352xf32>
    %c0_257 = arith.constant 0 : index
    %c30_258 = arith.constant 30 : index
    %397 = vector.load %arg3[%c0_257, %c30_258] : memref<32x49xf32, #tpu.memory_space<vmem>>, vector<32x1xf32>
    %c0_259 = arith.constant 0 : index
    %c0_260 = arith.constant 0 : index
    %c90_261 = arith.constant 90 : index
    %398 = vector.load %arg7[%c0_259, %c0_260, %c90_261] : memref<1x1x506xf32, #tpu.memory_space<vmem>>, vector<1x1x352xf32>
    %399 = vector.shape_cast %398 : vector<1x1x352xf32> to vector<1x352xf32>
    %400 = vector.broadcast %397 : vector<32x1xf32> to vector<32x352xf32>
    %401 = vector.broadcast %399 : vector<1x352xf32> to vector<32x352xf32>
    %402 = arith.mulf %400, %401 : vector<32x352xf32>
    %403 = arith.addf %396, %402 : vector<32x352xf32>
    %c0_262 = arith.constant 0 : index
    %c31 = arith.constant 31 : index
    %404 = vector.load %arg2[%c0_262, %c31] : memref<32x49xf32, #tpu.memory_space<vmem>>, vector<32x1xf32>
    %c0_263 = arith.constant 0 : index
    %c0_264 = arith.constant 0 : index
    %c91 = arith.constant 91 : index
    %405 = vector.load %arg6[%c0_263, %c0_264, %c91] : memref<1x32x506xf32, #tpu.memory_space<vmem>>, vector<1x32x352xf32>
    %406 = vector.shape_cast %405 : vector<1x32x352xf32> to vector<32x352xf32>
    %407 = vector.broadcast %404 : vector<32x1xf32> to vector<32x352xf32>
    %408 = arith.mulf %407, %406 : vector<32x352xf32>
    %409 = arith.addf %403, %408 : vector<32x352xf32>
    %c0_265 = arith.constant 0 : index
    %c31_266 = arith.constant 31 : index
    %410 = vector.load %arg3[%c0_265, %c31_266] : memref<32x49xf32, #tpu.memory_space<vmem>>, vector<32x1xf32>
    %c0_267 = arith.constant 0 : index
    %c0_268 = arith.constant 0 : index
    %c91_269 = arith.constant 91 : index
    %411 = vector.load %arg7[%c0_267, %c0_268, %c91_269] : memref<1x1x506xf32, #tpu.memory_space<vmem>>, vector<1x1x352xf32>
    %412 = vector.shape_cast %411 : vector<1x1x352xf32> to vector<1x352xf32>
    %413 = vector.broadcast %410 : vector<32x1xf32> to vector<32x352xf32>
    %414 = vector.broadcast %412 : vector<1x352xf32> to vector<32x352xf32>
    %415 = arith.mulf %413, %414 : vector<32x352xf32>
    %416 = arith.addf %409, %415 : vector<32x352xf32>
    %c0_270 = arith.constant 0 : index
    %c32 = arith.constant 32 : index
    %417 = vector.load %arg2[%c0_270, %c32] : memref<32x49xf32, #tpu.memory_space<vmem>>, vector<32x1xf32>
    %c0_271 = arith.constant 0 : index
    %c0_272 = arith.constant 0 : index
    %c92 = arith.constant 92 : index
    %418 = vector.load %arg6[%c0_271, %c0_272, %c92] : memref<1x32x506xf32, #tpu.memory_space<vmem>>, vector<1x32x352xf32>
    %419 = vector.shape_cast %418 : vector<1x32x352xf32> to vector<32x352xf32>
    %420 = vector.broadcast %417 : vector<32x1xf32> to vector<32x352xf32>
    %421 = arith.mulf %420, %419 : vector<32x352xf32>
    %422 = arith.addf %416, %421 : vector<32x352xf32>
    %c0_273 = arith.constant 0 : index
    %c32_274 = arith.constant 32 : index
    %423 = vector.load %arg3[%c0_273, %c32_274] : memref<32x49xf32, #tpu.memory_space<vmem>>, vector<32x1xf32>
    %c0_275 = arith.constant 0 : index
    %c0_276 = arith.constant 0 : index
    %c92_277 = arith.constant 92 : index
    %424 = vector.load %arg7[%c0_275, %c0_276, %c92_277] : memref<1x1x506xf32, #tpu.memory_space<vmem>>, vector<1x1x352xf32>
    %425 = vector.shape_cast %424 : vector<1x1x352xf32> to vector<1x352xf32>
    %426 = vector.broadcast %423 : vector<32x1xf32> to vector<32x352xf32>
    %427 = vector.broadcast %425 : vector<1x352xf32> to vector<32x352xf32>
    %428 = arith.mulf %426, %427 : vector<32x352xf32>
    %429 = arith.addf %422, %428 : vector<32x352xf32>
    %c0_278 = arith.constant 0 : index
    %c33 = arith.constant 33 : index
    %430 = vector.load %arg2[%c0_278, %c33] : memref<32x49xf32, #tpu.memory_space<vmem>>, vector<32x1xf32>
    %c0_279 = arith.constant 0 : index
    %c0_280 = arith.constant 0 : index
    %c93 = arith.constant 93 : index
    %431 = vector.load %arg6[%c0_279, %c0_280, %c93] : memref<1x32x506xf32, #tpu.memory_space<vmem>>, vector<1x32x352xf32>
    %432 = vector.shape_cast %431 : vector<1x32x352xf32> to vector<32x352xf32>
    %433 = vector.broadcast %430 : vector<32x1xf32> to vector<32x352xf32>
    %434 = arith.mulf %433, %432 : vector<32x352xf32>
    %435 = arith.addf %429, %434 : vector<32x352xf32>
    %c0_281 = arith.constant 0 : index
    %c33_282 = arith.constant 33 : index
    %436 = vector.load %arg3[%c0_281, %c33_282] : memref<32x49xf32, #tpu.memory_space<vmem>>, vector<32x1xf32>
    %c0_283 = arith.constant 0 : index
    %c0_284 = arith.constant 0 : index
    %c93_285 = arith.constant 93 : index
    %437 = vector.load %arg7[%c0_283, %c0_284, %c93_285] : memref<1x1x506xf32, #tpu.memory_space<vmem>>, vector<1x1x352xf32>
    %438 = vector.shape_cast %437 : vector<1x1x352xf32> to vector<1x352xf32>
    %439 = vector.broadcast %436 : vector<32x1xf32> to vector<32x352xf32>
    %440 = vector.broadcast %438 : vector<1x352xf32> to vector<32x352xf32>
    %441 = arith.mulf %439, %440 : vector<32x352xf32>
    %442 = arith.addf %435, %441 : vector<32x352xf32>
    %c0_286 = arith.constant 0 : index
    %c34 = arith.constant 34 : index
    %443 = vector.load %arg2[%c0_286, %c34] : memref<32x49xf32, #tpu.memory_space<vmem>>, vector<32x1xf32>
    %c0_287 = arith.constant 0 : index
    %c0_288 = arith.constant 0 : index
    %c94 = arith.constant 94 : index
    %444 = vector.load %arg6[%c0_287, %c0_288, %c94] : memref<1x32x506xf32, #tpu.memory_space<vmem>>, vector<1x32x352xf32>
    %445 = vector.shape_cast %444 : vector<1x32x352xf32> to vector<32x352xf32>
    %446 = vector.broadcast %443 : vector<32x1xf32> to vector<32x352xf32>
    %447 = arith.mulf %446, %445 : vector<32x352xf32>
    %448 = arith.addf %442, %447 : vector<32x352xf32>
    %c0_289 = arith.constant 0 : index
    %c34_290 = arith.constant 34 : index
    %449 = vector.load %arg3[%c0_289, %c34_290] : memref<32x49xf32, #tpu.memory_space<vmem>>, vector<32x1xf32>
    %c0_291 = arith.constant 0 : index
    %c0_292 = arith.constant 0 : index
    %c94_293 = arith.constant 94 : index
    %450 = vector.load %arg7[%c0_291, %c0_292, %c94_293] : memref<1x1x506xf32, #tpu.memory_space<vmem>>, vector<1x1x352xf32>
    %451 = vector.shape_cast %450 : vector<1x1x352xf32> to vector<1x352xf32>
    %452 = vector.broadcast %449 : vector<32x1xf32> to vector<32x352xf32>
    %453 = vector.broadcast %451 : vector<1x352xf32> to vector<32x352xf32>
    %454 = arith.mulf %452, %453 : vector<32x352xf32>
    %455 = arith.addf %448, %454 : vector<32x352xf32>
    %c0_294 = arith.constant 0 : index
    %c35 = arith.constant 35 : index
    %456 = vector.load %arg2[%c0_294, %c35] : memref<32x49xf32, #tpu.memory_space<vmem>>, vector<32x1xf32>
    %c0_295 = arith.constant 0 : index
    %c0_296 = arith.constant 0 : index
    %c110 = arith.constant 110 : index
    %457 = vector.load %arg6[%c0_295, %c0_296, %c110] : memref<1x32x506xf32, #tpu.memory_space<vmem>>, vector<1x32x352xf32>
    %458 = vector.shape_cast %457 : vector<1x32x352xf32> to vector<32x352xf32>
    %459 = vector.broadcast %456 : vector<32x1xf32> to vector<32x352xf32>
    %460 = arith.mulf %459, %458 : vector<32x352xf32>
    %461 = arith.addf %455, %460 : vector<32x352xf32>
    %c0_297 = arith.constant 0 : index
    %c35_298 = arith.constant 35 : index
    %462 = vector.load %arg3[%c0_297, %c35_298] : memref<32x49xf32, #tpu.memory_space<vmem>>, vector<32x1xf32>
    %c0_299 = arith.constant 0 : index
    %c0_300 = arith.constant 0 : index
    %c110_301 = arith.constant 110 : index
    %463 = vector.load %arg7[%c0_299, %c0_300, %c110_301] : memref<1x1x506xf32, #tpu.memory_space<vmem>>, vector<1x1x352xf32>
    %464 = vector.shape_cast %463 : vector<1x1x352xf32> to vector<1x352xf32>
    %465 = vector.broadcast %462 : vector<32x1xf32> to vector<32x352xf32>
    %466 = vector.broadcast %464 : vector<1x352xf32> to vector<32x352xf32>
    %467 = arith.mulf %465, %466 : vector<32x352xf32>
    %468 = arith.addf %461, %467 : vector<32x352xf32>
    %c0_302 = arith.constant 0 : index
    %c36 = arith.constant 36 : index
    %469 = vector.load %arg2[%c0_302, %c36] : memref<32x49xf32, #tpu.memory_space<vmem>>, vector<32x1xf32>
    %c0_303 = arith.constant 0 : index
    %c0_304 = arith.constant 0 : index
    %c111 = arith.constant 111 : index
    %470 = vector.load %arg6[%c0_303, %c0_304, %c111] : memref<1x32x506xf32, #tpu.memory_space<vmem>>, vector<1x32x352xf32>
    %471 = vector.shape_cast %470 : vector<1x32x352xf32> to vector<32x352xf32>
    %472 = vector.broadcast %469 : vector<32x1xf32> to vector<32x352xf32>
    %473 = arith.mulf %472, %471 : vector<32x352xf32>
    %474 = arith.addf %468, %473 : vector<32x352xf32>
    %c0_305 = arith.constant 0 : index
    %c36_306 = arith.constant 36 : index
    %475 = vector.load %arg3[%c0_305, %c36_306] : memref<32x49xf32, #tpu.memory_space<vmem>>, vector<32x1xf32>
    %c0_307 = arith.constant 0 : index
    %c0_308 = arith.constant 0 : index
    %c111_309 = arith.constant 111 : index
    %476 = vector.load %arg7[%c0_307, %c0_308, %c111_309] : memref<1x1x506xf32, #tpu.memory_space<vmem>>, vector<1x1x352xf32>
    %477 = vector.shape_cast %476 : vector<1x1x352xf32> to vector<1x352xf32>
    %478 = vector.broadcast %475 : vector<32x1xf32> to vector<32x352xf32>
    %479 = vector.broadcast %477 : vector<1x352xf32> to vector<32x352xf32>
    %480 = arith.mulf %478, %479 : vector<32x352xf32>
    %481 = arith.addf %474, %480 : vector<32x352xf32>
    %c0_310 = arith.constant 0 : index
    %c37 = arith.constant 37 : index
    %482 = vector.load %arg2[%c0_310, %c37] : memref<32x49xf32, #tpu.memory_space<vmem>>, vector<32x1xf32>
    %c0_311 = arith.constant 0 : index
    %c0_312 = arith.constant 0 : index
    %c112 = arith.constant 112 : index
    %483 = vector.load %arg6[%c0_311, %c0_312, %c112] : memref<1x32x506xf32, #tpu.memory_space<vmem>>, vector<1x32x352xf32>
    %484 = vector.shape_cast %483 : vector<1x32x352xf32> to vector<32x352xf32>
    %485 = vector.broadcast %482 : vector<32x1xf32> to vector<32x352xf32>
    %486 = arith.mulf %485, %484 : vector<32x352xf32>
    %487 = arith.addf %481, %486 : vector<32x352xf32>
    %c0_313 = arith.constant 0 : index
    %c37_314 = arith.constant 37 : index
    %488 = vector.load %arg3[%c0_313, %c37_314] : memref<32x49xf32, #tpu.memory_space<vmem>>, vector<32x1xf32>
    %c0_315 = arith.constant 0 : index
    %c0_316 = arith.constant 0 : index
    %c112_317 = arith.constant 112 : index
    %489 = vector.load %arg7[%c0_315, %c0_316, %c112_317] : memref<1x1x506xf32, #tpu.memory_space<vmem>>, vector<1x1x352xf32>
    %490 = vector.shape_cast %489 : vector<1x1x352xf32> to vector<1x352xf32>
    %491 = vector.broadcast %488 : vector<32x1xf32> to vector<32x352xf32>
    %492 = vector.broadcast %490 : vector<1x352xf32> to vector<32x352xf32>
    %493 = arith.mulf %491, %492 : vector<32x352xf32>
    %494 = arith.addf %487, %493 : vector<32x352xf32>
    %c0_318 = arith.constant 0 : index
    %c38 = arith.constant 38 : index
    %495 = vector.load %arg2[%c0_318, %c38] : memref<32x49xf32, #tpu.memory_space<vmem>>, vector<32x1xf32>
    %c0_319 = arith.constant 0 : index
    %c0_320 = arith.constant 0 : index
    %c113 = arith.constant 113 : index
    %496 = vector.load %arg6[%c0_319, %c0_320, %c113] : memref<1x32x506xf32, #tpu.memory_space<vmem>>, vector<1x32x352xf32>
    %497 = vector.shape_cast %496 : vector<1x32x352xf32> to vector<32x352xf32>
    %498 = vector.broadcast %495 : vector<32x1xf32> to vector<32x352xf32>
    %499 = arith.mulf %498, %497 : vector<32x352xf32>
    %500 = arith.addf %494, %499 : vector<32x352xf32>
    %c0_321 = arith.constant 0 : index
    %c38_322 = arith.constant 38 : index
    %501 = vector.load %arg3[%c0_321, %c38_322] : memref<32x49xf32, #tpu.memory_space<vmem>>, vector<32x1xf32>
    %c0_323 = arith.constant 0 : index
    %c0_324 = arith.constant 0 : index
    %c113_325 = arith.constant 113 : index
    %502 = vector.load %arg7[%c0_323, %c0_324, %c113_325] : memref<1x1x506xf32, #tpu.memory_space<vmem>>, vector<1x1x352xf32>
    %503 = vector.shape_cast %502 : vector<1x1x352xf32> to vector<1x352xf32>
    %504 = vector.broadcast %501 : vector<32x1xf32> to vector<32x352xf32>
    %505 = vector.broadcast %503 : vector<1x352xf32> to vector<32x352xf32>
    %506 = arith.mulf %504, %505 : vector<32x352xf32>
    %507 = arith.addf %500, %506 : vector<32x352xf32>
    %c0_326 = arith.constant 0 : index
    %c39 = arith.constant 39 : index
    %508 = vector.load %arg2[%c0_326, %c39] : memref<32x49xf32, #tpu.memory_space<vmem>>, vector<32x1xf32>
    %c0_327 = arith.constant 0 : index
    %c0_328 = arith.constant 0 : index
    %c114 = arith.constant 114 : index
    %509 = vector.load %arg6[%c0_327, %c0_328, %c114] : memref<1x32x506xf32, #tpu.memory_space<vmem>>, vector<1x32x352xf32>
    %510 = vector.shape_cast %509 : vector<1x32x352xf32> to vector<32x352xf32>
    %511 = vector.broadcast %508 : vector<32x1xf32> to vector<32x352xf32>
    %512 = arith.mulf %511, %510 : vector<32x352xf32>
    %513 = arith.addf %507, %512 : vector<32x352xf32>
    %c0_329 = arith.constant 0 : index
    %c39_330 = arith.constant 39 : index
    %514 = vector.load %arg3[%c0_329, %c39_330] : memref<32x49xf32, #tpu.memory_space<vmem>>, vector<32x1xf32>
    %c0_331 = arith.constant 0 : index
    %c0_332 = arith.constant 0 : index
    %c114_333 = arith.constant 114 : index
    %515 = vector.load %arg7[%c0_331, %c0_332, %c114_333] : memref<1x1x506xf32, #tpu.memory_space<vmem>>, vector<1x1x352xf32>
    %516 = vector.shape_cast %515 : vector<1x1x352xf32> to vector<1x352xf32>
    %517 = vector.broadcast %514 : vector<32x1xf32> to vector<32x352xf32>
    %518 = vector.broadcast %516 : vector<1x352xf32> to vector<32x352xf32>
    %519 = arith.mulf %517, %518 : vector<32x352xf32>
    %520 = arith.addf %513, %519 : vector<32x352xf32>
    %c0_334 = arith.constant 0 : index
    %c40 = arith.constant 40 : index
    %521 = vector.load %arg2[%c0_334, %c40] : memref<32x49xf32, #tpu.memory_space<vmem>>, vector<32x1xf32>
    %c0_335 = arith.constant 0 : index
    %c0_336 = arith.constant 0 : index
    %c115 = arith.constant 115 : index
    %522 = vector.load %arg6[%c0_335, %c0_336, %c115] : memref<1x32x506xf32, #tpu.memory_space<vmem>>, vector<1x32x352xf32>
    %523 = vector.shape_cast %522 : vector<1x32x352xf32> to vector<32x352xf32>
    %524 = vector.broadcast %521 : vector<32x1xf32> to vector<32x352xf32>
    %525 = arith.mulf %524, %523 : vector<32x352xf32>
    %526 = arith.addf %520, %525 : vector<32x352xf32>
    %c0_337 = arith.constant 0 : index
    %c40_338 = arith.constant 40 : index
    %527 = vector.load %arg3[%c0_337, %c40_338] : memref<32x49xf32, #tpu.memory_space<vmem>>, vector<32x1xf32>
    %c0_339 = arith.constant 0 : index
    %c0_340 = arith.constant 0 : index
    %c115_341 = arith.constant 115 : index
    %528 = vector.load %arg7[%c0_339, %c0_340, %c115_341] : memref<1x1x506xf32, #tpu.memory_space<vmem>>, vector<1x1x352xf32>
    %529 = vector.shape_cast %528 : vector<1x1x352xf32> to vector<1x352xf32>
    %530 = vector.broadcast %527 : vector<32x1xf32> to vector<32x352xf32>
    %531 = vector.broadcast %529 : vector<1x352xf32> to vector<32x352xf32>
    %532 = arith.mulf %530, %531 : vector<32x352xf32>
    %533 = arith.addf %526, %532 : vector<32x352xf32>
    %c0_342 = arith.constant 0 : index
    %c41 = arith.constant 41 : index
    %534 = vector.load %arg2[%c0_342, %c41] : memref<32x49xf32, #tpu.memory_space<vmem>>, vector<32x1xf32>
    %c0_343 = arith.constant 0 : index
    %c0_344 = arith.constant 0 : index
    %c116 = arith.constant 116 : index
    %535 = vector.load %arg6[%c0_343, %c0_344, %c116] : memref<1x32x506xf32, #tpu.memory_space<vmem>>, vector<1x32x352xf32>
    %536 = vector.shape_cast %535 : vector<1x32x352xf32> to vector<32x352xf32>
    %537 = vector.broadcast %534 : vector<32x1xf32> to vector<32x352xf32>
    %538 = arith.mulf %537, %536 : vector<32x352xf32>
    %539 = arith.addf %533, %538 : vector<32x352xf32>
    %c0_345 = arith.constant 0 : index
    %c41_346 = arith.constant 41 : index
    %540 = vector.load %arg3[%c0_345, %c41_346] : memref<32x49xf32, #tpu.memory_space<vmem>>, vector<32x1xf32>
    %c0_347 = arith.constant 0 : index
    %c0_348 = arith.constant 0 : index
    %c116_349 = arith.constant 116 : index
    %541 = vector.load %arg7[%c0_347, %c0_348, %c116_349] : memref<1x1x506xf32, #tpu.memory_space<vmem>>, vector<1x1x352xf32>
    %542 = vector.shape_cast %541 : vector<1x1x352xf32> to vector<1x352xf32>
    %543 = vector.broadcast %540 : vector<32x1xf32> to vector<32x352xf32>
    %544 = vector.broadcast %542 : vector<1x352xf32> to vector<32x352xf32>
    %545 = arith.mulf %543, %544 : vector<32x352xf32>
    %546 = arith.addf %539, %545 : vector<32x352xf32>
    %c0_350 = arith.constant 0 : index
    %c42 = arith.constant 42 : index
    %547 = vector.load %arg2[%c0_350, %c42] : memref<32x49xf32, #tpu.memory_space<vmem>>, vector<32x1xf32>
    %c0_351 = arith.constant 0 : index
    %c0_352 = arith.constant 0 : index
    %c132 = arith.constant 132 : index
    %548 = vector.load %arg6[%c0_351, %c0_352, %c132] : memref<1x32x506xf32, #tpu.memory_space<vmem>>, vector<1x32x352xf32>
    %549 = vector.shape_cast %548 : vector<1x32x352xf32> to vector<32x352xf32>
    %550 = vector.broadcast %547 : vector<32x1xf32> to vector<32x352xf32>
    %551 = arith.mulf %550, %549 : vector<32x352xf32>
    %552 = arith.addf %546, %551 : vector<32x352xf32>
    %c0_353 = arith.constant 0 : index
    %c42_354 = arith.constant 42 : index
    %553 = vector.load %arg3[%c0_353, %c42_354] : memref<32x49xf32, #tpu.memory_space<vmem>>, vector<32x1xf32>
    %c0_355 = arith.constant 0 : index
    %c0_356 = arith.constant 0 : index
    %c132_357 = arith.constant 132 : index
    %554 = vector.load %arg7[%c0_355, %c0_356, %c132_357] : memref<1x1x506xf32, #tpu.memory_space<vmem>>, vector<1x1x352xf32>
    %555 = vector.shape_cast %554 : vector<1x1x352xf32> to vector<1x352xf32>
    %556 = vector.broadcast %553 : vector<32x1xf32> to vector<32x352xf32>
    %557 = vector.broadcast %555 : vector<1x352xf32> to vector<32x352xf32>
    %558 = arith.mulf %556, %557 : vector<32x352xf32>
    %559 = arith.addf %552, %558 : vector<32x352xf32>
    %c0_358 = arith.constant 0 : index
    %c43 = arith.constant 43 : index
    %560 = vector.load %arg2[%c0_358, %c43] : memref<32x49xf32, #tpu.memory_space<vmem>>, vector<32x1xf32>
    %c0_359 = arith.constant 0 : index
    %c0_360 = arith.constant 0 : index
    %c133 = arith.constant 133 : index
    %561 = vector.load %arg6[%c0_359, %c0_360, %c133] : memref<1x32x506xf32, #tpu.memory_space<vmem>>, vector<1x32x352xf32>
    %562 = vector.shape_cast %561 : vector<1x32x352xf32> to vector<32x352xf32>
    %563 = vector.broadcast %560 : vector<32x1xf32> to vector<32x352xf32>
    %564 = arith.mulf %563, %562 : vector<32x352xf32>
    %565 = arith.addf %559, %564 : vector<32x352xf32>
    %c0_361 = arith.constant 0 : index
    %c43_362 = arith.constant 43 : index
    %566 = vector.load %arg3[%c0_361, %c43_362] : memref<32x49xf32, #tpu.memory_space<vmem>>, vector<32x1xf32>
    %c0_363 = arith.constant 0 : index
    %c0_364 = arith.constant 0 : index
    %c133_365 = arith.constant 133 : index
    %567 = vector.load %arg7[%c0_363, %c0_364, %c133_365] : memref<1x1x506xf32, #tpu.memory_space<vmem>>, vector<1x1x352xf32>
    %568 = vector.shape_cast %567 : vector<1x1x352xf32> to vector<1x352xf32>
    %569 = vector.broadcast %566 : vector<32x1xf32> to vector<32x352xf32>
    %570 = vector.broadcast %568 : vector<1x352xf32> to vector<32x352xf32>
    %571 = arith.mulf %569, %570 : vector<32x352xf32>
    %572 = arith.addf %565, %571 : vector<32x352xf32>
    %c0_366 = arith.constant 0 : index
    %c44_367 = arith.constant 44 : index
    %573 = vector.load %arg2[%c0_366, %c44_367] : memref<32x49xf32, #tpu.memory_space<vmem>>, vector<32x1xf32>
    %c0_368 = arith.constant 0 : index
    %c0_369 = arith.constant 0 : index
    %c134 = arith.constant 134 : index
    %574 = vector.load %arg6[%c0_368, %c0_369, %c134] : memref<1x32x506xf32, #tpu.memory_space<vmem>>, vector<1x32x352xf32>
    %575 = vector.shape_cast %574 : vector<1x32x352xf32> to vector<32x352xf32>
    %576 = vector.broadcast %573 : vector<32x1xf32> to vector<32x352xf32>
    %577 = arith.mulf %576, %575 : vector<32x352xf32>
    %578 = arith.addf %572, %577 : vector<32x352xf32>
    %c0_370 = arith.constant 0 : index
    %c44_371 = arith.constant 44 : index
    %579 = vector.load %arg3[%c0_370, %c44_371] : memref<32x49xf32, #tpu.memory_space<vmem>>, vector<32x1xf32>
    %c0_372 = arith.constant 0 : index
    %c0_373 = arith.constant 0 : index
    %c134_374 = arith.constant 134 : index
    %580 = vector.load %arg7[%c0_372, %c0_373, %c134_374] : memref<1x1x506xf32, #tpu.memory_space<vmem>>, vector<1x1x352xf32>
    %581 = vector.shape_cast %580 : vector<1x1x352xf32> to vector<1x352xf32>
    %582 = vector.broadcast %579 : vector<32x1xf32> to vector<32x352xf32>
    %583 = vector.broadcast %581 : vector<1x352xf32> to vector<32x352xf32>
    %584 = arith.mulf %582, %583 : vector<32x352xf32>
    %585 = arith.addf %578, %584 : vector<32x352xf32>
    %c0_375 = arith.constant 0 : index
    %c45_376 = arith.constant 45 : index
    %586 = vector.load %arg2[%c0_375, %c45_376] : memref<32x49xf32, #tpu.memory_space<vmem>>, vector<32x1xf32>
    %c0_377 = arith.constant 0 : index
    %c0_378 = arith.constant 0 : index
    %c135 = arith.constant 135 : index
    %587 = vector.load %arg6[%c0_377, %c0_378, %c135] : memref<1x32x506xf32, #tpu.memory_space<vmem>>, vector<1x32x352xf32>
    %588 = vector.shape_cast %587 : vector<1x32x352xf32> to vector<32x352xf32>
    %589 = vector.broadcast %586 : vector<32x1xf32> to vector<32x352xf32>
    %590 = arith.mulf %589, %588 : vector<32x352xf32>
    %591 = arith.addf %585, %590 : vector<32x352xf32>
    %c0_379 = arith.constant 0 : index
    %c45_380 = arith.constant 45 : index
    %592 = vector.load %arg3[%c0_379, %c45_380] : memref<32x49xf32, #tpu.memory_space<vmem>>, vector<32x1xf32>
    %c0_381 = arith.constant 0 : index
    %c0_382 = arith.constant 0 : index
    %c135_383 = arith.constant 135 : index
    %593 = vector.load %arg7[%c0_381, %c0_382, %c135_383] : memref<1x1x506xf32, #tpu.memory_space<vmem>>, vector<1x1x352xf32>
    %594 = vector.shape_cast %593 : vector<1x1x352xf32> to vector<1x352xf32>
    %595 = vector.broadcast %592 : vector<32x1xf32> to vector<32x352xf32>
    %596 = vector.broadcast %594 : vector<1x352xf32> to vector<32x352xf32>
    %597 = arith.mulf %595, %596 : vector<32x352xf32>
    %598 = arith.addf %591, %597 : vector<32x352xf32>
    %c0_384 = arith.constant 0 : index
    %c46_385 = arith.constant 46 : index
    %599 = vector.load %arg2[%c0_384, %c46_385] : memref<32x49xf32, #tpu.memory_space<vmem>>, vector<32x1xf32>
    %c0_386 = arith.constant 0 : index
    %c0_387 = arith.constant 0 : index
    %c136 = arith.constant 136 : index
    %600 = vector.load %arg6[%c0_386, %c0_387, %c136] : memref<1x32x506xf32, #tpu.memory_space<vmem>>, vector<1x32x352xf32>
    %601 = vector.shape_cast %600 : vector<1x32x352xf32> to vector<32x352xf32>
    %602 = vector.broadcast %599 : vector<32x1xf32> to vector<32x352xf32>
    %603 = arith.mulf %602, %601 : vector<32x352xf32>
    %604 = arith.addf %598, %603 : vector<32x352xf32>
    %c0_388 = arith.constant 0 : index
    %c46_389 = arith.constant 46 : index
    %605 = vector.load %arg3[%c0_388, %c46_389] : memref<32x49xf32, #tpu.memory_space<vmem>>, vector<32x1xf32>
    %c0_390 = arith.constant 0 : index
    %c0_391 = arith.constant 0 : index
    %c136_392 = arith.constant 136 : index
    %606 = vector.load %arg7[%c0_390, %c0_391, %c136_392] : memref<1x1x506xf32, #tpu.memory_space<vmem>>, vector<1x1x352xf32>
    %607 = vector.shape_cast %606 : vector<1x1x352xf32> to vector<1x352xf32>
    %608 = vector.broadcast %605 : vector<32x1xf32> to vector<32x352xf32>
    %609 = vector.broadcast %607 : vector<1x352xf32> to vector<32x352xf32>
    %610 = arith.mulf %608, %609 : vector<32x352xf32>
    %611 = arith.addf %604, %610 : vector<32x352xf32>
    %c0_393 = arith.constant 0 : index
    %c47_394 = arith.constant 47 : index
    %612 = vector.load %arg2[%c0_393, %c47_394] : memref<32x49xf32, #tpu.memory_space<vmem>>, vector<32x1xf32>
    %c0_395 = arith.constant 0 : index
    %c0_396 = arith.constant 0 : index
    %c137 = arith.constant 137 : index
    %613 = vector.load %arg6[%c0_395, %c0_396, %c137] : memref<1x32x506xf32, #tpu.memory_space<vmem>>, vector<1x32x352xf32>
    %614 = vector.shape_cast %613 : vector<1x32x352xf32> to vector<32x352xf32>
    %615 = vector.broadcast %612 : vector<32x1xf32> to vector<32x352xf32>
    %616 = arith.mulf %615, %614 : vector<32x352xf32>
    %617 = arith.addf %611, %616 : vector<32x352xf32>
    %c0_397 = arith.constant 0 : index
    %c47_398 = arith.constant 47 : index
    %618 = vector.load %arg3[%c0_397, %c47_398] : memref<32x49xf32, #tpu.memory_space<vmem>>, vector<32x1xf32>
    %c0_399 = arith.constant 0 : index
    %c0_400 = arith.constant 0 : index
    %c137_401 = arith.constant 137 : index
    %619 = vector.load %arg7[%c0_399, %c0_400, %c137_401] : memref<1x1x506xf32, #tpu.memory_space<vmem>>, vector<1x1x352xf32>
    %620 = vector.shape_cast %619 : vector<1x1x352xf32> to vector<1x352xf32>
    %621 = vector.broadcast %618 : vector<32x1xf32> to vector<32x352xf32>
    %622 = vector.broadcast %620 : vector<1x352xf32> to vector<32x352xf32>
    %623 = arith.mulf %621, %622 : vector<32x352xf32>
    %624 = arith.addf %617, %623 : vector<32x352xf32>
    %c0_402 = arith.constant 0 : index
    %c48_403 = arith.constant 48 : index
    %625 = vector.load %arg2[%c0_402, %c48_403] : memref<32x49xf32, #tpu.memory_space<vmem>>, vector<32x1xf32>
    %c0_404 = arith.constant 0 : index
    %c0_405 = arith.constant 0 : index
    %c138 = arith.constant 138 : index
    %626 = vector.load %arg6[%c0_404, %c0_405, %c138] : memref<1x32x506xf32, #tpu.memory_space<vmem>>, vector<1x32x352xf32>
    %627 = vector.shape_cast %626 : vector<1x32x352xf32> to vector<32x352xf32>
    %628 = vector.broadcast %625 : vector<32x1xf32> to vector<32x352xf32>
    %629 = arith.mulf %628, %627 : vector<32x352xf32>
    %630 = arith.addf %624, %629 : vector<32x352xf32>
    %c0_406 = arith.constant 0 : index
    %c48_407 = arith.constant 48 : index
    %631 = vector.load %arg3[%c0_406, %c48_407] : memref<32x49xf32, #tpu.memory_space<vmem>>, vector<32x1xf32>
    %c0_408 = arith.constant 0 : index
    %c0_409 = arith.constant 0 : index
    %c138_410 = arith.constant 138 : index
    %632 = vector.load %arg7[%c0_408, %c0_409, %c138_410] : memref<1x1x506xf32, #tpu.memory_space<vmem>>, vector<1x1x352xf32>
    %633 = vector.shape_cast %632 : vector<1x1x352xf32> to vector<1x352xf32>
    %634 = vector.broadcast %631 : vector<32x1xf32> to vector<32x352xf32>
    %635 = vector.broadcast %633 : vector<1x352xf32> to vector<32x352xf32>
    %636 = arith.mulf %634, %635 : vector<32x352xf32>
    %637 = arith.addf %630, %636 : vector<32x352xf32>
    %638 = vector.extract_strided_slice %637 {offsets = [0, 0], sizes = [32, 16], strides = [1, 1]} : vector<32x352xf32> to vector<32x16xf32>
    %c0_411 = arith.constant 0 : index
    %c0_412 = arith.constant 0 : index
    %639 = vector.load %arg11[%c0_411, %c0_412] : memref<32x256xf32, #tpu.memory_space<vmem>>, vector<32x16xf32>
    tpu.vector_store %arg11[%c0_411, %c0_412], %638 {strides = array<i32>} : memref<32x256xf32, #tpu.memory_space<vmem>>, vector<32x16xf32>,
    %640 = vector.extract_strided_slice %637 {offsets = [0, 22], sizes = [32, 16], strides = [1, 1]} : vector<32x352xf32> to vector<32x16xf32>
    %c0_413 = arith.constant 0 : index
    %c16_414 = arith.constant 16 : index
    %641 = vector.load %arg11[%c0_413, %c16_414] : memref<32x256xf32, #tpu.memory_space<vmem>>, vector<32x16xf32>
    tpu.vector_store %arg11[%c0_413, %c16_414], %640 {strides = array<i32>} : memref<32x256xf32, #tpu.memory_space<vmem>>, vector<32x16xf32>,
    %642 = vector.extract_strided_slice %637 {offsets = [0, 44], sizes = [32, 16], strides = [1, 1]} : vector<32x352xf32> to vector<32x16xf32>
    %c0_415 = arith.constant 0 : index
    %c32_416 = arith.constant 32 : index
    %643 = vector.load %arg11[%c0_415, %c32_416] : memref<32x256xf32, #tpu.memory_space<vmem>>, vector<32x16xf32>
    tpu.vector_store %arg11[%c0_415, %c32_416], %642 {strides = array<i32>} : memref<32x256xf32, #tpu.memory_space<vmem>>, vector<32x16xf32>,
    %644 = vector.extract_strided_slice %637 {offsets = [0, 66], sizes = [32, 16], strides = [1, 1]} : vector<32x352xf32> to vector<32x16xf32>
    %c0_417 = arith.constant 0 : index
    %c48_418 = arith.constant 48 : index
    %645 = vector.load %arg11[%c0_417, %c48_418] : memref<32x256xf32, #tpu.memory_space<vmem>>, vector<32x16xf32>
    tpu.vector_store %arg11[%c0_417, %c48_418], %644 {strides = array<i32>} : memref<32x256xf32, #tpu.memory_space<vmem>>, vector<32x16xf32>,
    %646 = vector.extract_strided_slice %637 {offsets = [0, 88], sizes = [32, 16], strides = [1, 1]} : vector<32x352xf32> to vector<32x16xf32>
    %c0_419 = arith.constant 0 : index
    %c64 = arith.constant 64 : index
    %647 = vector.load %arg11[%c0_419, %c64] : memref<32x256xf32, #tpu.memory_space<vmem>>, vector<32x16xf32>
    tpu.vector_store %arg11[%c0_419, %c64], %646 {strides = array<i32>} : memref<32x256xf32, #tpu.memory_space<vmem>>, vector<32x16xf32>,
    %648 = vector.extract_strided_slice %637 {offsets = [0, 110], sizes = [32, 16], strides = [1, 1]} : vector<32x352xf32> to vector<32x16xf32>
    %c0_420 = arith.constant 0 : index
    %c80 = arith.constant 80 : index
    %649 = vector.load %arg11[%c0_420, %c80] : memref<32x256xf32, #tpu.memory_space<vmem>>, vector<32x16xf32>
    tpu.vector_store %arg11[%c0_420, %c80], %648 {strides = array<i32>} : memref<32x256xf32, #tpu.memory_space<vmem>>, vector<32x16xf32>,
    %650 = vector.extract_strided_slice %637 {offsets = [0, 132], sizes = [32, 16], strides = [1, 1]} : vector<32x352xf32> to vector<32x16xf32>
    %c0_421 = arith.constant 0 : index
    %c96 = arith.constant 96 : index
    %651 = vector.load %arg11[%c0_421, %c96] : memref<32x256xf32, #tpu.memory_space<vmem>>, vector<32x16xf32>
    tpu.vector_store %arg11[%c0_421, %c96], %650 {strides = array<i32>} : memref<32x256xf32, #tpu.memory_space<vmem>>, vector<32x16xf32>,
    %652 = vector.extract_strided_slice %637 {offsets = [0, 154], sizes = [32, 16], strides = [1, 1]} : vector<32x352xf32> to vector<32x16xf32>
    %c0_422 = arith.constant 0 : index
    %c112_423 = arith.constant 112 : index
    %653 = vector.load %arg11[%c0_422, %c112_423] : memref<32x256xf32, #tpu.memory_space<vmem>>, vector<32x16xf32>
    tpu.vector_store %arg11[%c0_422, %c112_423], %652 {strides = array<i32>} : memref<32x256xf32, #tpu.memory_space<vmem>>, vector<32x16xf32>,
    %654 = vector.extract_strided_slice %637 {offsets = [0, 176], sizes = [32, 16], strides = [1, 1]} : vector<32x352xf32> to vector<32x16xf32>
    %c0_424 = arith.constant 0 : index
    %c128 = arith.constant 128 : index
    %655 = vector.load %arg11[%c0_424, %c128] : memref<32x256xf32, #tpu.memory_space<vmem>>, vector<32x16xf32>
    tpu.vector_store %arg11[%c0_424, %c128], %654 {strides = array<i32>} : memref<32x256xf32, #tpu.memory_space<vmem>>, vector<32x16xf32>,
    %656 = vector.extract_strided_slice %637 {offsets = [0, 198], sizes = [32, 16], strides = [1, 1]} : vector<32x352xf32> to vector<32x16xf32>
    %c0_425 = arith.constant 0 : index
    %c144 = arith.constant 144 : index
    %657 = vector.load %arg11[%c0_425, %c144] : memref<32x256xf32, #tpu.memory_space<vmem>>, vector<32x16xf32>
    tpu.vector_store %arg11[%c0_425, %c144], %656 {strides = array<i32>} : memref<32x256xf32, #tpu.memory_space<vmem>>, vector<32x16xf32>,
    %658 = vector.extract_strided_slice %637 {offsets = [0, 220], sizes = [32, 16], strides = [1, 1]} : vector<32x352xf32> to vector<32x16xf32>
    %c0_426 = arith.constant 0 : index
    %c160 = arith.constant 160 : index
    %659 = vector.load %arg11[%c0_426, %c160] : memref<32x256xf32, #tpu.memory_space<vmem>>, vector<32x16xf32>
    tpu.vector_store %arg11[%c0_426, %c160], %658 {strides = array<i32>} : memref<32x256xf32, #tpu.memory_space<vmem>>, vector<32x16xf32>,
    %660 = vector.extract_strided_slice %637 {offsets = [0, 242], sizes = [32, 16], strides = [1, 1]} : vector<32x352xf32> to vector<32x16xf32>
    %c0_427 = arith.constant 0 : index
    %c176 = arith.constant 176 : index
    %661 = vector.load %arg11[%c0_427, %c176] : memref<32x256xf32, #tpu.memory_space<vmem>>, vector<32x16xf32>
    tpu.vector_store %arg11[%c0_427, %c176], %660 {strides = array<i32>} : memref<32x256xf32, #tpu.memory_space<vmem>>, vector<32x16xf32>,
    %662 = vector.extract_strided_slice %637 {offsets = [0, 264], sizes = [32, 16], strides = [1, 1]} : vector<32x352xf32> to vector<32x16xf32>
    %c0_428 = arith.constant 0 : index
    %c192 = arith.constant 192 : index
    %663 = vector.load %arg11[%c0_428, %c192] : memref<32x256xf32, #tpu.memory_space<vmem>>, vector<32x16xf32>
    tpu.vector_store %arg11[%c0_428, %c192], %662 {strides = array<i32>} : memref<32x256xf32, #tpu.memory_space<vmem>>, vector<32x16xf32>,
    %664 = vector.extract_strided_slice %637 {offsets = [0, 286], sizes = [32, 16], strides = [1, 1]} : vector<32x352xf32> to vector<32x16xf32>
    %c0_429 = arith.constant 0 : index
    %c208 = arith.constant 208 : index
    %665 = vector.load %arg11[%c0_429, %c208] : memref<32x256xf32, #tpu.memory_space<vmem>>, vector<32x16xf32>
    tpu.vector_store %arg11[%c0_429, %c208], %664 {strides = array<i32>} : memref<32x256xf32, #tpu.memory_space<vmem>>, vector<32x16xf32>,
    %666 = vector.extract_strided_slice %637 {offsets = [0, 308], sizes = [32, 16], strides = [1, 1]} : vector<32x352xf32> to vector<32x16xf32>
    %c0_430 = arith.constant 0 : index
    %c224 = arith.constant 224 : index
    %667 = vector.load %arg11[%c0_430, %c224] : memref<32x256xf32, #tpu.memory_space<vmem>>, vector<32x16xf32>
    tpu.vector_store %arg11[%c0_430, %c224], %666 {strides = array<i32>} : memref<32x256xf32, #tpu.memory_space<vmem>>, vector<32x16xf32>,
    %668 = vector.extract_strided_slice %637 {offsets = [0, 330], sizes = [32, 16], strides = [1, 1]} : vector<32x352xf32> to vector<32x16xf32>
    %c0_431 = arith.constant 0 : index
    %c240 = arith.constant 240 : index
    %669 = vector.load %arg11[%c0_431, %c240] : memref<32x256xf32, #tpu.memory_space<vmem>>, vector<32x16xf32>
    tpu.vector_store %arg11[%c0_431, %c240], %668 {strides = array<i32>} : memref<32x256xf32, #tpu.memory_space<vmem>>, vector<32x16xf32>,
    %c0_432 = arith.constant 0 : index
    %c0_433 = arith.constant 0 : index
    %670 = vector.load %arg11[%c0_432, %c0_433] : memref<32x256xf32, #tpu.memory_space<vmem>>, vector<32x256xf32>
    %c0_434 = arith.constant 0 : index
    %c0_435 = arith.constant 0 : index
    %c0_436 = arith.constant 0 : index
    %671 = vector.load %arg1[%c0_434, %c0_435, %c0_436] : memref<1x32x1xf32, #tpu.memory_space<vmem>>, vector<1x32x1xf32>
    %672 = vector.shape_cast %671 : vector<1x32x1xf32> to vector<32x1xf32>
    %673 = vector.broadcast %672 : vector<32x1xf32> to vector<32x256xf32>
    %674 = arith.addf %670, %673 : vector<32x256xf32>
    %cst_437 = arith.constant 5.000000e-01 : f32
    %675 = vector.broadcast %cst_437 : f32 to vector<32x256xf32>
    %676 = arith.mulf %675, %674 : vector<32x256xf32>
    %677 = math.tanh %676 : vector<32x256xf32>
    %cst_438 = arith.constant 5.000000e-01 : f32
    %678 = vector.broadcast %cst_438 : f32 to vector<32x256xf32>
    %679 = arith.mulf %678, %677 : vector<32x256xf32>
    %cst_439 = arith.constant 5.000000e-01 : f32
    %680 = vector.broadcast %cst_439 : f32 to vector<32x256xf32>
    %681 = arith.addf %679, %680 : vector<32x256xf32>
    %cst_440 = arith.constant 5.000000e-01 : f32
    %682 = vector.broadcast %cst_440 : f32 to vector<32x256xf32>
    %683 = arith.mulf %682, %681 : vector<32x256xf32>
    %684 = math.tanh %683 : vector<32x256xf32>
    %cst_441 = arith.constant 5.000000e-01 : f32
    %685 = vector.broadcast %cst_441 : f32 to vector<32x256xf32>
    %686 = arith.mulf %685, %684 : vector<32x256xf32>
    %cst_442 = arith.constant 5.000000e-01 : f32
    %687 = vector.broadcast %cst_442 : f32 to vector<32x256xf32>
    %688 = arith.addf %686, %687 : vector<32x256xf32>
    %c0_443 = arith.constant 0 : index
    %c0_444 = arith.constant 0 : index
    %c0_445 = arith.constant 0 : index
    %689 = vector.load %arg8[%c0_443, %c0_444, %c0_445] : memref<1x32x256xf32, #tpu.memory_space<vmem>>, vector<1x32x256xf32>
    %690 = vector.shape_cast %689 : vector<1x32x256xf32> to vector<32x256xf32>
    %c0_446 = arith.constant 0 : index
    %c0_447 = arith.constant 0 : index
    %c0_448 = arith.constant 0 : index
    %691 = vector.load %arg9[%c0_446, %c0_447, %c0_448] : memref<1x32x256xf32, #tpu.memory_space<vmem>>, vector<1x32x256xf32>
    %692 = vector.shape_cast %691 : vector<1x32x256xf32> to vector<32x256xf32>
    %693 = arith.addf %690, %692 : vector<32x256xf32>
    %694 = arith.mulf %688, %690 : vector<32x256xf32>
    %695 = arith.addf %693, %694 : vector<32x256xf32>
    %cst_449 = arith.constant 1.000000e+00 : f32
    %696 = vector.broadcast %cst_449 : f32 to vector<32x256xf32>
    %697 = arith.subf %696, %688 : vector<32x256xf32>
    %698 = arith.mulf %697, %692 : vector<32x256xf32>
    %699 = arith.addf %695, %698 : vector<32x256xf32>
    %c0_450 = arith.constant 0 : index
    %c0_451 = arith.constant 0 : index
    %700 = vector.load %arg4[%c0_450, %c0_451] : memref<32x32xf32, #tpu.memory_space<vmem>>, vector<32x32xf32>
    %cst_452 = arith.constant dense<0.000000e+00> : vector<32x256xf32>
    %701 = tpu.matmul %700, %699, %cst_452 {dimension_numbers = #tpu.dot_dimension_numbers<[1], [0], [0], [1], [0, 0, 1, 1], [], []>} : vector<32x32xf32>, vector<32x256xf32>, vector<32x256xf32> -> vector<32x256xf32>
    %c0_453 = arith.constant 0 : index
    %c0_454 = arith.constant 0 : index
    %702 = vector.load %arg5[%c0_453, %c0_454] : memref<32x1xf32, #tpu.memory_space<vmem>>, vector<32x1xf32>
    %703 = vector.broadcast %702 : vector<32x1xf32> to vector<32x256xf32>
    %704 = arith.addf %701, %703 : vector<32x256xf32>
    %c0_455 = arith.constant 0 : index
    %c0_456 = arith.constant 0 : index
    %c0_457 = arith.constant 0 : index
    %705 = vector.load %arg10[%c0_455, %c0_456, %c0_457] : memref<1x32x256xf32, #tpu.memory_space<vmem>>, vector<1x32x256xf32>
    %706 = vector.shape_cast %705 : vector<1x32x256xf32> to vector<32x256xf32>
    %707 = vector.shape_cast %704 : vector<32x256xf32> to vector<1x32x256xf32>
    tpu.vector_store %arg10[%c0_455, %c0_456, %c0_457], %707 {strides = array<i32>} : memref<1x32x256xf32, #tpu.memory_space<vmem>>, vector<1x32x256xf32>,
    return
  }
  func.func @transform_0(%arg0: i32) -> (i32, i32, i32) {
    %c0_i32 = arith.constant 0 : i32
    %c0_i32_0 = arith.constant 0 : i32
    %c0_i32_1 = arith.constant 0 : i32
    return %arg0, %c0_i32, %c0_i32_0 : i32, i32, i32
  }
  func.func @transform_1(%arg0: i32) -> (i32, i32) {
    %c0_i32 = arith.constant 0 : i32
    %c0_i32_0 = arith.constant 0 : i32
    %c0_i32_1 = arith.constant 0 : i32
    return %c0_i32, %c0_i32_0 : i32, i32
  }
  func.func @transform_2(%arg0: i32) -> (i32, i32) {
    %c0_i32 = arith.constant 0 : i32
    %c0_i32_0 = arith.constant 0 : i32
    %c0_i32_1 = arith.constant 0 : i32
    return %c0_i32, %c0_i32_0 : i32, i32
  }
  func.func @transform_3(%arg0: i32) -> (i32, i32) {
    %c0_i32 = arith.constant 0 : i32
    %c0_i32_0 = arith.constant 0 : i32
    %c0_i32_1 = arith.constant 0 : i32
    return %c0_i32, %c0_i32_0 : i32, i32
  }
  func.func @transform_4(%arg0: i32) -> (i32, i32) {
    %c0_i32 = arith.constant 0 : i32
    %c0_i32_0 = arith.constant 0 : i32
    %c0_i32_1 = arith.constant 0 : i32
    return %c0_i32, %c0_i32_0 : i32, i32
  }
  func.func @transform_5(%arg0: i32) -> (i32, i32, i32) {
    %c0_i32 = arith.constant 0 : i32
    %c0_i32_0 = arith.constant 0 : i32
    %c0_i32_1 = arith.constant 0 : i32
    return %arg0, %c0_i32, %c0_i32_0 : i32, i32, i32
  }
  func.func @transform_6(%arg0: i32) -> (i32, i32, i32) {
    %c0_i32 = arith.constant 0 : i32
    %c0_i32_0 = arith.constant 0 : i32
    %c0_i32_1 = arith.constant 0 : i32
    return %arg0, %c0_i32, %c0_i32_0 : i32, i32, i32
  }
  func.func @transform_7(%arg0: i32) -> (i32, i32, i32) {
    %c0_i32 = arith.constant 0 : i32
    %c0_i32_0 = arith.constant 0 : i32
    %c0_i32_1 = arith.constant 0 : i32
    return %arg0, %c0_i32, %c0_i32_0 : i32, i32, i32
  }
  func.func @transform_8(%arg0: i32) -> (i32, i32, i32) {
    %c0_i32 = arith.constant 0 : i32
    %c0_i32_0 = arith.constant 0 : i32
    %c0_i32_1 = arith.constant 0 : i32
    return %arg0, %c0_i32, %c0_i32_0 : i32, i32, i32
  }
  func.func @transform_9(%arg0: i32) -> (i32, i32, i32) {
    %c0_i32 = arith.constant 0 : i32
    %c0_i32_0 = arith.constant 0 : i32
    %c0_i32_1 = arith.constant 0 : i32
    return %arg0, %c0_i32, %c0_i32_0 : i32, i32, i32
  }
}

</mosaic_0001>

<llo_original>
// kernel: squeeze.2
$region0: #{squeeze.2}
  %s0 = inlined_call_operand.vmem [shape: f32[32,7,7], index: 0, kind: input, shape index: {}]
  %s1 = inlined_call_operand.vmem [shape: f32[32,49], index: 1, kind: output, shape index: {}]
  %v2 = vld [vmem:[%s0] sm:$0x7f]
  %vm3 = vcmask 261120
  %4 = vst.msk [vmem:[%s1] sm:$0x7f] %vm3, %v2
  %s5 = scalar_lea.vmem %s0, 8
  %v6 = vld [vmem:[%s5] sm:$0x7f]
  %vm7 = vcmask 261120
  %s8 = scalar_lea.vmem %s1, 7
  %9 = vst.msk [vmem:[%s8] sm:$0x7f] %vm7, %v6
  %s10 = scalar_lea.vmem %s0, 16
  %v11 = vld [vmem:[%s10] sm:$0x7f]
  %vm12 = vcmask 261120
  %s13 = scalar_lea.vmem %s1, 14
  %14 = vst.msk [vmem:[%s13] sm:$0x7f] %vm12, %v11
  %s15 = scalar_lea.vmem %s0, 24
  %v16 = vld [vmem:[%s15] sm:$0x7f]
  %vm17 = vcmask 261120
  %s18 = scalar_lea.vmem %s1, 21
  %19 = vst.msk [vmem:[%s18] sm:$0x7f] %vm17, %v16
  %s20 = scalar_lea.vmem %s0, 32
  %v21 = vld [vmem:[%s20] sm:$0x7f]
  %vm22 = vcmask 261120
  %s23 = scalar_lea.vmem %s1, 28
  %24 = vst.msk [vmem:[%s23] sm:$0x7f] %vm22, %v21
  %s25 = scalar_lea.vmem %s0, 40
  %v26 = vld [vmem:[%s25] sm:$0x7f]
  %vm27 = vcmask 261120
  %s28 = scalar_lea.vmem %s1, 35
  %29 = vst.msk [vmem:[%s28] sm:$0x7f] %vm27, %v26
  %s30 = scalar_lea.vmem %s0, 48
  %v31 = vld [vmem:[%s30] sm:$0x7f]
  %vm32 = vcmask 261120
  %s33 = scalar_lea.vmem %s1, 42
  %34 = vst.msk [vmem:[%s33] sm:$0x7f] %vm32, %v31

</llo_original>
